<compile_context>
chip_gen: v7x
topology: tpu7x:2x2x1
jax: 0.10.0
libtpu: 0.0.40
codegen_flags: <defaults>
</compile_context>

<pallas_src>
import jax
import jax.numpy as jnp
from jax.experimental import pallas as pl
from jax.experimental.pallas import tpu as pltpu

INPUT_DIM = 512
DIMS = [INPUT_DIM, 512, 256, 128, 64, 1]
BN_EPS = 1e-5


def _mlp_kernel(x_ref,
                w1, c1,
                w2, c2,
                w3, c3,
                w4, c4,
                w5, b5,
                o_ref):
    # Layers 1-3: batch on sublanes (M = tile_b), bf16 MXU matmuls with f32
    # accumulation. BN scale is pre-folded into the weights, so the epilogue is
    # a single add + ReLU. Weights are VMEM-resident (constant index maps).
    h = jnp.dot(x_ref[...].astype(jnp.bfloat16), w1[...],
                preferred_element_type=jnp.float32)
    h = jnp.maximum(h + c1[...], 0.0)

    h = jnp.dot(h.astype(jnp.bfloat16), w2[...],
                preferred_element_type=jnp.float32)
    h = jnp.maximum(h + c2[...], 0.0)

    h = jnp.dot(h.astype(jnp.bfloat16), w3[...],
                preferred_element_type=jnp.float32)
    h = jnp.maximum(h + c3[...], 0.0)                     # (tile_b, 128) f32

    # Narrow tail: put batch on lanes. The transpose is done in bf16 (layer 4
    # consumes bf16 anyway) -> half the XLU bytes on the serial critical path.
    ht = jnp.transpose(h.astype(jnp.bfloat16))            # (128, tile_b) bf16

    # Layer 4 (transposed): (64, 128) @ (128, tile_b) on the MXU.
    h4 = jnp.dot(w4[...], ht, preferred_element_type=jnp.float32)
    h4 = jnp.maximum(h4 + c4[...], 0.0)                   # (64, tile_b) f32

    # Layer 5 (out_features = 1): VPU multiply + sublane reduce -> lane-dense
    # (1, tile_b) output slab, no N=1 MXU matmul, unmasked stores.
    o_ref[...] = jnp.sum(h4 * w5[...], axis=0, keepdims=True) + b5[...]


def prepare_params(params):
    """One-time fold/cast of PyTorch-layout params into kernel inputs (cache it).

    Eval-mode BatchNorm and the Linear bias are folded so each layer is
    y = relu(x @ W' + c), with the BN scale folded into W' in f32 BEFORE the
    bf16 cast.  Dropout is identity in eval mode (nothing to prepare).
    """
    prepared = []
    for i in range(4):
        w, b = params[f"fc{i+1}_w"], params[f"fc{i+1}_b"]            # (out,in),(out,)
        gamma, beta = params[f"bn{i+1}_gamma"], params[f"bn{i+1}_beta"]
        mean, var = params[f"bn{i+1}_mean"], params[f"bn{i+1}_var"]
        scale = gamma / jnp.sqrt(var + BN_EPS)                       # (out,)
        c = b * scale + (beta - mean * scale)                        # (out,)
        if i < 3:   # batch-on-sublanes layers: x @ (in,out), scale folded in
            prepared += [(w.T * scale[None, :]).astype(jnp.bfloat16),
                         c.reshape(1, -1).astype(jnp.float32)]
        else:       # transposed tail layer 4: (scale * W) @ h.T
            prepared += [(scale[:, None] * w).astype(jnp.bfloat16),  # (64, 128)
                         c.reshape(-1, 1).astype(jnp.float32)]       # (64, 1)
    prepared += [params["fc5_w"].reshape(-1, 1).astype(jnp.float32), # (64, 1)
                 params["fc5_b"].reshape(1, 1).astype(jnp.float32)]  # (1, 1)
    return tuple(prepared)


def paper_scoring_forward(x, prepared, *, tile_b=256):
    """x: (B, 1, INPUT_DIM) float32 -> (B, 1) float32 (eval-mode forward)."""
    assert tile_b >= 128 and tile_b % 128 == 0, "tile_b must be a multiple of 128"
    x2d = jnp.squeeze(x, axis=1)                   # matches torch x.squeeze(1)
    B, D = x2d.shape
    assert D == INPUT_DIM

    # Keep the "parallel" grid axis >= 2 when possible (v7x megacore), but
    # never below the 128-row layout floor.
    while tile_b > 128 and pl.cdiv(B, tile_b) < 2:
        tile_b //= 2

    # Pad the batch up to the tile (stays f32; the bf16 cast happens in-kernel).
    b_pad = pl.cdiv(B, tile_b) * tile_b
    if b_pad != B:
        x2d = jnp.pad(x2d, ((0, b_pad - B), (0, 0)))

    grid = (b_pad // tile_b,)
    in_specs = [pl.BlockSpec((tile_b, D), lambda i: (i, 0))]
    in_specs += [pl.BlockSpec(a.shape, lambda i: (0, 0)) for a in prepared]

    # VMEM budget from the actual footprint: double-buffered f32 x tile +
    # (double-buffered) resident weights + f32/bf16 intermediates + headroom.
    x_bytes = 2 * tile_b * D * 4
    w_bytes = 2 * sum(int(a.size) * a.dtype.itemsize for a in prepared)
    act_bytes = tile_b * (512 + 256 + 128 + 64) * (4 + 2)
    out_bytes = 2 * tile_b * 4
    vmem_limit = x_bytes + w_bytes + act_bytes + out_bytes + 4 * 1024 * 1024
    vmem_limit = int(min(max(vmem_limit, 16 * 1024 * 1024), 64 * 1024 * 1024))

    out = pl.pallas_call(
        _mlp_kernel,
        out_shape=jax.ShapeDtypeStruct((1, b_pad), jnp.float32),
        grid_spec=pltpu.PrefetchScalarGridSpec(
            num_scalar_prefetch=0,
            grid=grid,
            in_specs=in_specs,
            out_specs=pl.BlockSpec((1, tile_b), lambda i: (0, i)),
        ),
        compiler_params=pltpu.CompilerParams(
            dimension_semantics=("parallel",),
            vmem_limit_bytes=vmem_limit),
    )(x2d, *prepared)
    return out[0, :B].reshape(B, 1)


def init_params(key):
    """Deterministic synthetic parameters with the shapes from __init__."""
    params = {}
    for i in range(5):
        fan_in, fan_out = DIMS[i], DIMS[i + 1]
        key, kw, kb = jax.random.split(key, 3)
        params[f"fc{i+1}_w"] = 0.02 * jax.random.normal(
            kw, (fan_out, fan_in), jnp.float32)          # PyTorch (out, in)
        params[f"fc{i+1}_b"] = 0.01 * jax.random.normal(
            kb, (fan_out,), jnp.float32)
        if i < 4:  # BatchNorm1d after fc1..fc4
            key, kg, kbeta, km, kv = jax.random.split(key, 5)
            params[f"bn{i+1}_gamma"] = 1.0 + 0.1 * jax.random.normal(
                kg, (fan_out,), jnp.float32)
            params[f"bn{i+1}_beta"] = 0.1 * jax.random.normal(
                kbeta, (fan_out,), jnp.float32)
            params[f"bn{i+1}_mean"] = 0.05 * jax.random.normal(
                km, (fan_out,), jnp.float32)
            params[f"bn{i+1}_var"] = jax.random.uniform(
                kv, (fan_out,), jnp.float32, 0.5, 1.5)
    return params


def _reference(x, params):
    """Plain-JAX f32 reference of the same eval-mode forward pass."""
    h = jnp.squeeze(x, axis=1)
    for i in range(4):
        h = h @ params[f"fc{i+1}_w"].T + params[f"fc{i+1}_b"]
        scale = params[f"bn{i+1}_gamma"] / jnp.sqrt(params[f"bn{i+1}_var"] + BN_EPS)
        h = (h - params[f"bn{i+1}_mean"]) * scale + params[f"bn{i+1}_beta"]
        h = jnp.maximum(h, 0.0)
        # dropout: identity in eval mode
    return h @ params["fc5_w"].T + params["fc5_b"]


if __name__ == "__main__":
    key = jax.random.PRNGKey(0)
    kp, kx = jax.random.split(key)
    params = init_params(kp)

    # One-time weight preparation (BN fold + transpose + bf16 cast), cached and
    # reused for every forward call.
    prepared = prepare_params(params)

    B = 500  # not a multiple of the batch tile -> exercises wrapper padding
    x = jax.random.normal(kx, (B, 1, INPUT_DIM), jnp.float32)

    fwd = jax.jit(paper_scoring_forward, static_argnames=("tile_b",))
    out = fwd(x, prepared, tile_b=256)                    # grid = (2,)
    out = jax.block_until_ready(out)

    ref = _reference(x, params)
    assert out.shape == (B, 1)
    # bf16 matmul inputs (f32 accumulation) vs f32 reference -> loosened tol.
    assert jnp.allclose(out, ref, atol=1e-2, rtol=2e-2), \
        f"mismatch vs reference, max abs err {float(jnp.max(jnp.abs(out - ref)))}"

    print("KERNEL_OK")
</pallas_src>

<mosaic_0001>
module attributes {stable_mosaic.version = 11 : i64} {
  func.func @_mlp_kernel(%arg0: i32, %arg1: memref<256x512xf32, #tpu.memory_space<vmem>>, %arg2: memref<512x512xbf16, #tpu.memory_space<vmem>>, %arg3: memref<1x512xf32, #tpu.memory_space<vmem>>, %arg4: memref<512x256xbf16, #tpu.memory_space<vmem>>, %arg5: memref<1x256xf32, #tpu.memory_space<vmem>>, %arg6: memref<256x128xbf16, #tpu.memory_space<vmem>>, %arg7: memref<1x128xf32, #tpu.memory_space<vmem>>, %arg8: memref<64x128xbf16, #tpu.memory_space<vmem>>, %arg9: memref<64x1xf32, #tpu.memory_space<vmem>>, %arg10: memref<64x1xf32, #tpu.memory_space<vmem>>, %arg11: memref<1x1xf32, #tpu.memory_space<vmem>>, %arg12: memref<1x256xf32, #tpu.memory_space<vmem>>) attributes {dimension_semantics = [#tpu.dimension_semantics<parallel>], iteration_bounds = array<i64: 2>, scalar_prefetch = 0 : i64, scratch_operands = 0 : i64, tpu.core_type = #tpu.core_type<tc>, window_params = [{transform_indices = @transform_0, window_bounds = array<i64: 256, 512>}, {pipeline_mode = #tpu.pipeline_mode<synchronous>, transform_indices = @transform_1, window_bounds = array<i64: 512, 512>}, {pipeline_mode = #tpu.pipeline_mode<synchronous>, transform_indices = @transform_2, window_bounds = array<i64: 1, 512>}, {pipeline_mode = #tpu.pipeline_mode<synchronous>, transform_indices = @transform_3, window_bounds = array<i64: 512, 256>}, {pipeline_mode = #tpu.pipeline_mode<synchronous>, transform_indices = @transform_4, window_bounds = array<i64: 1, 256>}, {pipeline_mode = #tpu.pipeline_mode<synchronous>, transform_indices = @transform_5, window_bounds = array<i64: 256, 128>}, {pipeline_mode = #tpu.pipeline_mode<synchronous>, transform_indices = @transform_6, window_bounds = array<i64: 1, 128>}, {pipeline_mode = #tpu.pipeline_mode<synchronous>, transform_indices = @transform_7, window_bounds = array<i64: 64, 128>}, {pipeline_mode = #tpu.pipeline_mode<synchronous>, transform_indices = @transform_8, window_bounds = array<i64: 64, 1>}, {pipeline_mode = #tpu.pipeline_mode<synchronous>, transform_indices = @transform_9, window_bounds = array<i64: 64, 1>}, {pipeline_mode = #tpu.pipeline_mode<synchronous>, transform_indices = @transform_10, window_bounds = array<i64: 1, 1>}, {transform_indices = @transform_11, window_bounds = array<i64: 1, 256>}]} {
    %c0 = arith.constant 0 : index
    %c0_0 = arith.constant 0 : index
    %0 = vector.load %arg1[%c0, %c0_0] : memref<256x512xf32, #tpu.memory_space<vmem>>, vector<256x512xf32>
    %1 = arith.truncf %0 : vector<256x512xf32> to vector<256x512xbf16>
    %c0_1 = arith.constant 0 : index
    %c0_2 = arith.constant 0 : index
    %2 = vector.load %arg2[%c0_1, %c0_2] : memref<512x512xbf16, #tpu.memory_space<vmem>>, vector<512x512xbf16>
    %cst = arith.constant dense<0.000000e+00> : vector<256x512xf32>
    %3 = tpu.matmul %1, %2, %cst {dimension_numbers = #tpu.dot_dimension_numbers<[1], [0], [0], [1], [0, 0, 1, 1], [], []>} : vector<256x512xbf16>, vector<512x512xbf16>, vector<256x512xf32> -> vector<256x512xf32>
    %c0_3 = arith.constant 0 : index
    %c0_4 = arith.constant 0 : index
    %4 = vector.load %arg3[%c0_3, %c0_4] : memref<1x512xf32, #tpu.memory_space<vmem>>, vector<1x512xf32>
    %5 = vector.broadcast %4 : vector<1x512xf32> to vector<256x512xf32>
    %6 = arith.addf %3, %5 : vector<256x512xf32>
    %cst_5 = arith.constant 0.000000e+00 : f32
    %7 = vector.broadcast %cst_5 : f32 to vector<256x512xf32>
    %8 = arith.maximumf %6, %7 : vector<256x512xf32>
    %9 = arith.truncf %8 : vector<256x512xf32> to vector<256x512xbf16>
    %c0_6 = arith.constant 0 : index
    %c0_7 = arith.constant 0 : index
    %10 = vector.load %arg4[%c0_6, %c0_7] : memref<512x256xbf16, #tpu.memory_space<vmem>>, vector<512x256xbf16>
    %cst_8 = arith.constant dense<0.000000e+00> : vector<256x256xf32>
    %11 = tpu.matmul %9, %10, %cst_8 {dimension_numbers = #tpu.dot_dimension_numbers<[1], [0], [0], [1], [0, 0, 1, 1], [], []>} : vector<256x512xbf16>, vector<512x256xbf16>, vector<256x256xf32> -> vector<256x256xf32>
    %c0_9 = arith.constant 0 : index
    %c0_10 = arith.constant 0 : index
    %12 = vector.load %arg5[%c0_9, %c0_10] : memref<1x256xf32, #tpu.memory_space<vmem>>, vector<1x256xf32>
    %13 = vector.broadcast %12 : vector<1x256xf32> to vector<256x256xf32>
    %14 = arith.addf %11, %13 : vector<256x256xf32>
    %cst_11 = arith.constant 0.000000e+00 : f32
    %15 = vector.broadcast %cst_11 : f32 to vector<256x256xf32>
    %16 = arith.maximumf %14, %15 : vector<256x256xf32>
    %17 = arith.truncf %16 : vector<256x256xf32> to vector<256x256xbf16>
    %c0_12 = arith.constant 0 : index
    %c0_13 = arith.constant 0 : index
    %18 = vector.load %arg6[%c0_12, %c0_13] : memref<256x128xbf16, #tpu.memory_space<vmem>>, vector<256x128xbf16>
    %cst_14 = arith.constant dense<0.000000e+00> : vector<256x128xf32>
    %19 = tpu.matmul %17, %18, %cst_14 {dimension_numbers = #tpu.dot_dimension_numbers<[1], [0], [0], [1], [0, 0, 1, 1], [], []>} : vector<256x256xbf16>, vector<256x128xbf16>, vector<256x128xf32> -> vector<256x128xf32>
    %c0_15 = arith.constant 0 : index
    %c0_16 = arith.constant 0 : index
    %20 = vector.load %arg7[%c0_15, %c0_16] : memref<1x128xf32, #tpu.memory_space<vmem>>, vector<1x128xf32>
    %21 = vector.broadcast %20 : vector<1x128xf32> to vector<256x128xf32>
    %22 = arith.addf %19, %21 : vector<256x128xf32>
    %cst_17 = arith.constant 0.000000e+00 : f32
    %23 = vector.broadcast %cst_17 : f32 to vector<256x128xf32>
    %24 = arith.maximumf %22, %23 : vector<256x128xf32>
    %25 = arith.truncf %24 : vector<256x128xf32> to vector<256x128xbf16>
    %26 = tpu.transpose %25, [1, 0] : vector<256x128xbf16> -> vector<128x256xbf16>
    %c0_18 = arith.constant 0 : index
    %c0_19 = arith.constant 0 : index
    %27 = vector.load %arg8[%c0_18, %c0_19] : memref<64x128xbf16, #tpu.memory_space<vmem>>, vector<64x128xbf16>
    %cst_20 = arith.constant dense<0.000000e+00> : vector<64x256xf32>
    %28 = tpu.matmul %27, %26, %cst_20 {dimension_numbers = #tpu.dot_dimension_numbers<[1], [0], [0], [1], [0, 0, 1, 1], [], []>} : vector<64x128xbf16>, vector<128x256xbf16>, vector<64x256xf32> -> vector<64x256xf32>
    %c0_21 = arith.constant 0 : index
    %c0_22 = arith.constant 0 : index
    %29 = vector.load %arg9[%c0_21, %c0_22] : memref<64x1xf32, #tpu.memory_space<vmem>>, vector<64x1xf32>
    %30 = vector.broadcast %29 : vector<64x1xf32> to vector<64x256xf32>
    %31 = arith.addf %28, %30 : vector<64x256xf32>
    %cst_23 = arith.constant 0.000000e+00 : f32
    %32 = vector.broadcast %cst_23 : f32 to vector<64x256xf32>
    %33 = arith.maximumf %31, %32 : vector<64x256xf32>
    %c0_24 = arith.constant 0 : index
    %c0_25 = arith.constant 0 : index
    %34 = vector.load %arg10[%c0_24, %c0_25] : memref<64x1xf32, #tpu.memory_space<vmem>>, vector<64x1xf32>
    %35 = vector.broadcast %34 : vector<64x1xf32> to vector<64x256xf32>
    %36 = arith.mulf %33, %35 : vector<64x256xf32>
    %cst_26 = arith.constant dense<0.000000e+00> : vector<256xf32>
    %37 = vector.multi_reduction <add>, %36, %cst_26 [0] : vector<64x256xf32> to vector<256xf32>
    %38 = vector.shape_cast %37 : vector<256xf32> to vector<1x256xf32>
    %c0_27 = arith.constant 0 : index
    %c0_28 = arith.constant 0 : index
    %39 = vector.load %arg11[%c0_27, %c0_28] : memref<1x1xf32, #tpu.memory_space<vmem>>, vector<1x1xf32>
    %40 = vector.broadcast %39 : vector<1x1xf32> to vector<1x256xf32>
    %41 = arith.addf %38, %40 : vector<1x256xf32>
    %c0_29 = arith.constant 0 : index
    %c0_30 = arith.constant 0 : index
    %42 = vector.load %arg12[%c0_29, %c0_30] : memref<1x256xf32, #tpu.memory_space<vmem>>, vector<1x256xf32>
    tpu.vector_store %arg12[%c0_29, %c0_30], %41 {strides = array<i32>} : memref<1x256xf32, #tpu.memory_space<vmem>>, vector<1x256xf32>,
    return
  }
  func.func @transform_0(%arg0: i32) -> (i32, i32) {
    %c0_i32 = arith.constant 0 : i32
    %c0_i32_0 = arith.constant 0 : i32
    return %arg0, %c0_i32 : i32, i32
  }
  func.func @transform_1(%arg0: i32) -> (i32, i32) {
    %c0_i32 = arith.constant 0 : i32
    %c0_i32_0 = arith.constant 0 : i32
    %c0_i32_1 = arith.constant 0 : i32
    return %c0_i32, %c0_i32_0 : i32, i32
  }
  func.func @transform_2(%arg0: i32) -> (i32, i32) {
    %c0_i32 = arith.constant 0 : i32
    %c0_i32_0 = arith.constant 0 : i32
    %c0_i32_1 = arith.constant 0 : i32
    return %c0_i32, %c0_i32_0 : i32, i32
  }
  func.func @transform_3(%arg0: i32) -> (i32, i32) {
    %c0_i32 = arith.constant 0 : i32
    %c0_i32_0 = arith.constant 0 : i32
    %c0_i32_1 = arith.constant 0 : i32
    return %c0_i32, %c0_i32_0 : i32, i32
  }
  func.func @transform_4(%arg0: i32) -> (i32, i32) {
    %c0_i32 = arith.constant 0 : i32
    %c0_i32_0 = arith.constant 0 : i32
    %c0_i32_1 = arith.constant 0 : i32
    return %c0_i32, %c0_i32_0 : i32, i32
  }
  func.func @transform_5(%arg0: i32) -> (i32, i32) {
    %c0_i32 = arith.constant 0 : i32
    %c0_i32_0 = arith.constant 0 : i32
    %c0_i32_1 = arith.constant 0 : i32
    return %c0_i32, %c0_i32_0 : i32, i32
  }
  func.func @transform_6(%arg0: i32) -> (i32, i32) {
    %c0_i32 = arith.constant 0 : i32
    %c0_i32_0 = arith.constant 0 : i32
    %c0_i32_1 = arith.constant 0 : i32
    return %c0_i32, %c0_i32_0 : i32, i32
  }
  func.func @transform_7(%arg0: i32) -> (i32, i32) {
    %c0_i32 = arith.constant 0 : i32
    %c0_i32_0 = arith.constant 0 : i32
    %c0_i32_1 = arith.constant 0 : i32
    return %c0_i32, %c0_i32_0 : i32, i32
  }
  func.func @transform_8(%arg0: i32) -> (i32, i32) {
    %c0_i32 = arith.constant 0 : i32
    %c0_i32_0 = arith.constant 0 : i32
    %c0_i32_1 = arith.constant 0 : i32
    return %c0_i32, %c0_i32_0 : i32, i32
  }
  func.func @transform_9(%arg0: i32) -> (i32, i32) {
    %c0_i32 = arith.constant 0 : i32
    %c0_i32_0 = arith.constant 0 : i32
    %c0_i32_1 = arith.constant 0 : i32
    return %c0_i32, %c0_i32_0 : i32, i32
  }
  func.func @transform_10(%arg0: i32) -> (i32, i32) {
    %c0_i32 = arith.constant 0 : i32
    %c0_i32_0 = arith.constant 0 : i32
    %c0_i32_1 = arith.constant 0 : i32
    return %c0_i32, %c0_i32_0 : i32, i32
  }
  func.func @transform_11(%arg0: i32) -> (i32, i32) {
    %c0_i32 = arith.constant 0 : i32
    %c0_i32_0 = arith.constant 0 : i32
    return %c0_i32, %arg0 : i32, i32
  }
}

</mosaic_0001>

<llo_original>
// kernel: paper_scoring_forward.1
$region0: #{paper_scoring_forward.1}
  #allocation0 [shape = 'u32[]', space=smem, size = 0x4, offset = 0x4, fixed_abs, tag = 'smem constant byte address 0x4 - core index']
  #allocation1 [shape = 'u32[144,128]{1,0:T(1,128)}', space=vmem, size = 0x12000, scoped, tag = 'internal scratch']
  #allocation2 [shape = 'f32[1,1]{1,0:T(1,128)S(1)}', space=vmem, size = 0x200, scoped, tag = 'scoped memory for paper_scoring_forward.1']
  %s0 = inlined_call_operand.vmem [shape: f32[512,512], index: 0, kind: input, shape index: {}]
  %s1 = inlined_call_operand.vmem [shape: bf16[512,512], index: 1, kind: input, shape index: {}]
  %s2 = inlined_call_operand.vmem [shape: f32[1,512], index: 2, kind: input, shape index: {}]
  %s3 = inlined_call_operand.vmem [shape: bf16[512,256], index: 3, kind: input, shape index: {}]
  %s4 = inlined_call_operand.vmem [shape: f32[1,256], index: 4, kind: input, shape index: {}]
  %s5 = inlined_call_operand.vmem [shape: bf16[256,128], index: 5, kind: input, shape index: {}]
  %s6 = inlined_call_operand.vmem [shape: f32[1,128], index: 6, kind: input, shape index: {}]
  %s7 = inlined_call_operand.vmem [shape: bf16[64,128], index: 7, kind: input, shape index: {}]
  %s8 = inlined_call_operand.vmem [shape: f32[64,1], index: 8, kind: input, shape index: {}]
  %s9 = inlined_call_operand.vmem [shape: f32[64,1], index: 9, kind: input, shape index: {}]
  %s10 = inlined_call_operand.<no memory space> [shape: f32[1,1], index: 10, kind: input, shape index: {}]
  %s11 = inlined_call_operand.vmem [shape: f32[1,512], index: 11, kind: output, shape index: {}]
  %s12 = sld [smem:[#allocation0]]
  $region77: #{paper_scoring_forward.1} parent=0
    _
  %s14 = ssub.s32 1, %s12
  %s15 = scalar_select 0, %s14, %s12
  %v16 = vstv %s10
  %17 = vst [vmem:[#allocation2] sm:$0x1] %v16
  loop: start=0, step=1, limit=4
  $region2: #{paper_scoring_forward.1} parent=0 // loop_pre_header
    _
  $region3: #{paper_scoring_forward.1} parent=0 // loop_header
    %s19 = sphi 0, %s23
    %p20 = scmp.ge.s32.totalorder %s19, 4
    %s29 = sphi 0, %s31
    %s32 = sphi 0, %s29
    %s33 = sphi 0, %s32
    %s49 = sphi 0, %s33
    %s53 = sphi 0, %s53
    %s55 = sphi 0, %s53
    %s56 = sphi 0, %s55
    %s70 = sphi 0, %s56
    %s74 = sphi 0, %s74
    %s76 = sphi 0, %s74
    %s77 = sphi 0, %s76
    %s91 = sphi 0, %s77
    %s95 = sphi 0, %s95
    %s97 = sphi 0, %s95
    %s98 = sphi 0, %s97
    %s112 = sphi 0, %s98
    %s116 = sphi 0, %s116
    %s118 = sphi 0, %s116
    %s119 = sphi 0, %s118
    %s133 = sphi 0, %s119
    %s137 = sphi 0, %s137
    %s139 = sphi 0, %s137
    %s140 = sphi 0, %s139
    %s154 = sphi 0, %s140
    %s158 = sphi 0, %s158
    %s160 = sphi 0, %s158
    %s161 = sphi 0, %s160
    %s175 = sphi 0, %s161
    %s179 = sphi 0, %s179
    %s181 = sphi 0, %s179
    %s182 = sphi 0, %s181
    %s196 = sphi 0, %s182
    %s200 = sphi 0, %s200
    %s202 = sphi 0, %s200
    %s203 = sphi 0, %s202
    %s217 = sphi 0, %s203
    %s221 = sphi 0, %s221
    %s223 = sphi 0, %s221
    %s224 = sphi 0, %s223
    %s238 = sphi 0, %s224
    %s242 = sphi 0, %s242
    %s244 = sphi 0, %s242
    %s245 = sphi 0, %s244
    %s259 = sphi 0, %s245
    %s265 = sphi 0, %s267
    %s268 = sphi 0, %s265
    %s269 = sphi 0, %s268
    %s285 = sphi 0, %s269
  $region4: #{paper_scoring_forward.1} parent=0 // loop_header_branch
    %22 = sbr.rel (%p20) target = $region8
  $region5: #{paper_scoring_forward.1} parent=0 // loop_body
    %s24 = ssub.s32 %s19, 1
    %s25 = ssub.s32 %s19, 2
    %s26 = sadd.s32 %s19, 1
    %s27 = ssub.s32 %s19, %s26
    %p28 = scmp.eq.s32.totalorder %s27, 0
    %s30 = sadd.s32 %s29, 1
    %s31 = scalar_select %p28, %s29, %s30
    %p34 = pneg %p28
    %p35 = scmp.eq.s32.totalorder %s19, 1
    %p36 = por %p34, %p35
    %p37 = scmp.ne.s32.totalorder %s29, %s32
    %p38 = scmp.eq.s32.totalorder %s19, 0
    %p39 = por %p37, %p38
    %p40 = scmp.ne.s32.totalorder %s29, %s32
    %p41 = scmp.eq.s32.totalorder %s24, 1
    %p42 = por %p40, %p41
    %p43 = scmp.ne.s32.totalorder %s32, %s33
    %p44 = scmp.eq.s32.totalorder %s24, 0
    %p45 = por %p43, %p44
    %p46 = scmp.ne.s32.totalorder %s32, %s33
    %p47 = scmp.eq.s32.totalorder %s25, 1
    %p48 = por %p46, %p47
    %p50 = scmp.ne.s32.totalorder %s33, %s49
    %p51 = scmp.eq.s32.totalorder %s25, 0
    %p52 = por %p50, %p51
    %s54 = sadd.s32 %s53, 1
    %p57 = scmp.eq.s32.totalorder %s19, 1
    %p58 = scmp.ne.s32.totalorder %s53, %s55
    %p59 = scmp.eq.s32.totalorder %s19, 0
    %p60 = por %p58, %p59
    %p61 = scmp.ne.s32.totalorder %s53, %s55
    %p62 = scmp.eq.s32.totalorder %s24, 1
    %p63 = por %p61, %p62
    %p64 = scmp.ne.s32.totalorder %s55, %s56
    %p65 = scmp.eq.s32.totalorder %s24, 0
    %p66 = por %p64, %p65
    %p67 = scmp.ne.s32.totalorder %s55, %s56
    %p68 = scmp.eq.s32.totalorder %s25, 1
    %p69 = por %p67, %p68
    %p71 = scmp.ne.s32.totalorder %s56, %s70
    %p72 = scmp.eq.s32.totalorder %s25, 0
    %p73 = por %p71, %p72
    %s75 = sadd.s32 %s74, 1
    %p78 = scmp.eq.s32.totalorder %s19, 1
    %p79 = scmp.ne.s32.totalorder %s74, %s76
    %p80 = scmp.eq.s32.totalorder %s19, 0
    %p81 = por %p79, %p80
    %p82 = scmp.ne.s32.totalorder %s74, %s76
    %p83 = scmp.eq.s32.totalorder %s24, 1
    %p84 = por %p82, %p83
    %p85 = scmp.ne.s32.totalorder %s76, %s77
    %p86 = scmp.eq.s32.totalorder %s24, 0
    %p87 = por %p85, %p86
    %p88 = scmp.ne.s32.totalorder %s76, %s77
    %p89 = scmp.eq.s32.totalorder %s25, 1
    %p90 = por %p88, %p89
    %p92 = scmp.ne.s32.totalorder %s77, %s91
    %p93 = scmp.eq.s32.totalorder %s25, 0
    %p94 = por %p92, %p93
    %s96 = sadd.s32 %s95, 1
    %p99 = scmp.eq.s32.totalorder %s19, 1
    %p100 = scmp.ne.s32.totalorder %s95, %s97
    %p101 = scmp.eq.s32.totalorder %s19, 0
    %p102 = por %p100, %p101
    %p103 = scmp.ne.s32.totalorder %s95, %s97
    %p104 = scmp.eq.s32.totalorder %s24, 1
    %p105 = por %p103, %p104
    %p106 = scmp.ne.s32.totalorder %s97, %s98
    %p107 = scmp.eq.s32.totalorder %s24, 0
    %p108 = por %p106, %p107
    %p109 = scmp.ne.s32.totalorder %s97, %s98
    %p110 = scmp.eq.s32.totalorder %s25, 1
    %p111 = por %p109, %p110
    %p113 = scmp.ne.s32.totalorder %s98, %s112
    %p114 = scmp.eq.s32.totalorder %s25, 0
    %p115 = por %p113, %p114
    %s117 = sadd.s32 %s116, 1
    %p120 = scmp.eq.s32.totalorder %s19, 1
    %p121 = scmp.ne.s32.totalorder %s116, %s118
    %p122 = scmp.eq.s32.totalorder %s19, 0
    %p123 = por %p121, %p122
    %p124 = scmp.ne.s32.totalorder %s116, %s118
    %p125 = scmp.eq.s32.totalorder %s24, 1
    %p126 = por %p124, %p125
    %p127 = scmp.ne.s32.totalorder %s118, %s119
    %p128 = scmp.eq.s32.totalorder %s24, 0
    %p129 = por %p127, %p128
    %p130 = scmp.ne.s32.totalorder %s118, %s119
    %p131 = scmp.eq.s32.totalorder %s25, 1
    %p132 = por %p130, %p131
    %p134 = scmp.ne.s32.totalorder %s119, %s133
    %p135 = scmp.eq.s32.totalorder %s25, 0
    %p136 = por %p134, %p135
    %s138 = sadd.s32 %s137, 1
    %p141 = scmp.eq.s32.totalorder %s19, 1
    %p142 = scmp.ne.s32.totalorder %s137, %s139
    %p143 = scmp.eq.s32.totalorder %s19, 0
    %p144 = por %p142, %p143
    %p145 = scmp.ne.s32.totalorder %s137, %s139
    %p146 = scmp.eq.s32.totalorder %s24, 1
    %p147 = por %p145, %p146
    %p148 = scmp.ne.s32.totalorder %s139, %s140
    %p149 = scmp.eq.s32.totalorder %s24, 0
    %p150 = por %p148, %p149
    %p151 = scmp.ne.s32.totalorder %s139, %s140
    %p152 = scmp.eq.s32.totalorder %s25, 1
    %p153 = por %p151, %p152
    %p155 = scmp.ne.s32.totalorder %s140, %s154
    %p156 = scmp.eq.s32.totalorder %s25, 0
    %p157 = por %p155, %p156
    %s159 = sadd.s32 %s158, 1
    %p162 = scmp.eq.s32.totalorder %s19, 1
    %p163 = scmp.ne.s32.totalorder %s158, %s160
    %p164 = scmp.eq.s32.totalorder %s19, 0
    %p165 = por %p163, %p164
    %p166 = scmp.ne.s32.totalorder %s158, %s160
    %p167 = scmp.eq.s32.totalorder %s24, 1
    %p168 = por %p166, %p167
    %p169 = scmp.ne.s32.totalorder %s160, %s161
    %p170 = scmp.eq.s32.totalorder %s24, 0
    %p171 = por %p169, %p170
    %p172 = scmp.ne.s32.totalorder %s160, %s161
    %p173 = scmp.eq.s32.totalorder %s25, 1
    %p174 = por %p172, %p173
    %p176 = scmp.ne.s32.totalorder %s161, %s175
    %p177 = scmp.eq.s32.totalorder %s25, 0
    %p178 = por %p176, %p177
    %s180 = sadd.s32 %s179, 1
    %p183 = scmp.eq.s32.totalorder %s19, 1
    %p184 = scmp.ne.s32.totalorder %s179, %s181
    %p185 = scmp.eq.s32.totalorder %s19, 0
    %p186 = por %p184, %p185
    %p187 = scmp.ne.s32.totalorder %s179, %s181
    %p188 = scmp.eq.s32.totalorder %s24, 1
    %p189 = por %p187, %p188
    %p190 = scmp.ne.s32.totalorder %s181, %s182
    %p191 = scmp.eq.s32.totalorder %s24, 0
    %p192 = por %p190, %p191
    %p193 = scmp.ne.s32.totalorder %s181, %s182
    %p194 = scmp.eq.s32.totalorder %s25, 1
    %p195 = por %p193, %p194
    %p197 = scmp.ne.s32.totalorder %s182, %s196
    %p198 = scmp.eq.s32.totalorder %s25, 0
    %p199 = por %p197, %p198
    %s201 = sadd.s32 %s200, 1
    %p204 = scmp.eq.s32.totalorder %s19, 1
    %p205 = scmp.ne.s32.totalorder %s200, %s202
    %p206 = scmp.eq.s32.totalorder %s19, 0
    %p207 = por %p205, %p206
    %p208 = scmp.ne.s32.totalorder %s200, %s202
    %p209 = scmp.eq.s32.totalorder %s24, 1
    %p210 = por %p208, %p209
    %p211 = scmp.ne.s32.totalorder %s202, %s203
    %p212 = scmp.eq.s32.totalorder %s24, 0
    %p213 = por %p211, %p212
    %p214 = scmp.ne.s32.totalorder %s202, %s203
    %p215 = scmp.eq.s32.totalorder %s25, 1
    %p216 = por %p214, %p215
    %p218 = scmp.ne.s32.totalorder %s203, %s217
    %p219 = scmp.eq.s32.totalorder %s25, 0
    %p220 = por %p218, %p219
    %s222 = sadd.s32 %s221, 1
    %p225 = scmp.eq.s32.totalorder %s19, 1
    %p226 = scmp.ne.s32.totalorder %s221, %s223
    %p227 = scmp.eq.s32.totalorder %s19, 0
    %p228 = por %p226, %p227
    %p229 = scmp.ne.s32.totalorder %s221, %s223
    %p230 = scmp.eq.s32.totalorder %s24, 1
    %p231 = por %p229, %p230
    %p232 = scmp.ne.s32.totalorder %s223, %s224
    %p233 = scmp.eq.s32.totalorder %s24, 0
    %p234 = por %p232, %p233
    %p235 = scmp.ne.s32.totalorder %s223, %s224
    %p236 = scmp.eq.s32.totalorder %s25, 1
    %p237 = por %p235, %p236
    %p239 = scmp.ne.s32.totalorder %s224, %s238
    %p240 = scmp.eq.s32.totalorder %s25, 0
    %p241 = por %p239, %p240
    %s243 = sadd.s32 %s242, 1
    %p246 = scmp.eq.s32.totalorder %s19, 1
    %p247 = scmp.ne.s32.totalorder %s242, %s244
    %p248 = scmp.eq.s32.totalorder %s19, 0
    %p249 = por %p247, %p248
    %p250 = scmp.ne.s32.totalorder %s242, %s244
    %p251 = scmp.eq.s32.totalorder %s24, 1
    %p252 = por %p250, %p251
    %p253 = scmp.ne.s32.totalorder %s244, %s245
    %p254 = scmp.eq.s32.totalorder %s24, 0
    %p255 = por %p253, %p254
    %p256 = scmp.ne.s32.totalorder %s244, %s245
    %p257 = scmp.eq.s32.totalorder %s25, 1
    %p258 = por %p256, %p257
    %p260 = scmp.ne.s32.totalorder %s245, %s259
    %p261 = scmp.eq.s32.totalorder %s25, 0
    %p262 = por %p260, %p261
    %s263 = ssub.s32 %s19, %s26
    %p264 = scmp.eq.s32.totalorder %s263, 0
    %s266 = sadd.s32 %s265, 1
    %s267 = scalar_select %p264, %s265, %s266
    %p270 = pneg %p264
    %p271 = scmp.eq.s32.totalorder %s19, 1
    %p272 = por %p270, %p271
    %p273 = scmp.ne.s32.totalorder %s265, %s268
    %p274 = scmp.eq.s32.totalorder %s19, 0
    %p275 = por %p273, %p274
    %p276 = scmp.ne.s32.totalorder %s265, %s268
    %p277 = scmp.eq.s32.totalorder %s24, 1
    %p278 = por %p276, %p277
    %p279 = scmp.ne.s32.totalorder %s268, %s269
    %p280 = scmp.eq.s32.totalorder %s24, 0
    %p281 = por %p279, %p280
    %p282 = scmp.ne.s32.totalorder %s268, %s269
    %p283 = scmp.eq.s32.totalorder %s25, 1
    %p284 = por %p282, %p283
    %p286 = scmp.ne.s32.totalorder %s269, %s285
    %p287 = scmp.eq.s32.totalorder %s25, 0
    %p288 = por %p286, %p287
    %p289 = scmp.le.s32.totalorder 1, %s19
    %p290 = scmp.lt.s32.totalorder %s19, 3
    %p291 = pnand %p289, %p290
    %p292 = pneg %p291
    // Predicated region
    $region9: #{paper_scoring_forward.1} parent=5 // pred_check
      _
    $region10: #{paper_scoring_forward.1} parent=5 // pred_check_branch
      %294 = sbr.rel (%p291) target = $region12
    $region11: #{paper_scoring_forward.1} parent=5 // pred_region
      %s295 = ssub.s32 %s19, 1
      // Predicated region
      $region13: #{paper_scoring_forward.1} parent=11 // pred_check
        %p296 = pneg %p66
      $region14: #{paper_scoring_forward.1} parent=11 // pred_check_branch
        %298 = sbr.rel (%p296) target = $region16
      $region15: #{paper_scoring_forward.1} parent=11 // pred_region
        _
      $region16: #{paper_scoring_forward.1} parent=11 // pred_fallthru
        _
      // Predicated region
      $region17: #{paper_scoring_forward.1} parent=11 // pred_check
        %p299 = pneg %p87
      $region18: #{paper_scoring_forward.1} parent=11 // pred_check_branch
        %301 = sbr.rel (%p299) target = $region20
      $region19: #{paper_scoring_forward.1} parent=11 // pred_region
        _
      $region20: #{paper_scoring_forward.1} parent=11 // pred_fallthru
        _
      // Predicated region
      $region21: #{paper_scoring_forward.1} parent=11 // pred_check
        %p302 = pneg %p108
      $region22: #{paper_scoring_forward.1} parent=11 // pred_check_branch
        %304 = sbr.rel (%p302) target = $region24
      $region23: #{paper_scoring_forward.1} parent=11 // pred_region
        _
      $region24: #{paper_scoring_forward.1} parent=11 // pred_fallthru
        _
      // Predicated region
      $region25: #{paper_scoring_forward.1} parent=11 // pred_check
        %p305 = pneg %p129
      $region26: #{paper_scoring_forward.1} parent=11 // pred_check_branch
        %307 = sbr.rel (%p305) target = $region28
      $region27: #{paper_scoring_forward.1} parent=11 // pred_region
        _
      $region28: #{paper_scoring_forward.1} parent=11 // pred_fallthru
        _
      // Predicated region
      $region29: #{paper_scoring_forward.1} parent=11 // pred_check
        %p308 = pneg %p150
      $region30: #{paper_scoring_forward.1} parent=11 // pred_check_branch
        %310 = sbr.rel (%p308) target = $region32
      $region31: #{paper_scoring_forward.1} parent=11 // pred_region
        _
      $region32: #{paper_scoring_forward.1} parent=11 // pred_fallthru
        _
      // Predicated region
      $region33: #{paper_scoring_forward.1} parent=11 // pred_check
        %p311 = pneg %p171
      $region34: #{paper_scoring_forward.1} parent=11 // pred_check_branch
        %313 = sbr.rel (%p311) target = $region36
      $region35: #{paper_scoring_forward.1} parent=11 // pred_region
        _
      $region36: #{paper_scoring_forward.1} parent=11 // pred_fallthru
        _
      // Predicated region
      $region37: #{paper_scoring_forward.1} parent=11 // pred_check
        %p314 = pneg %p192
      $region38: #{paper_scoring_forward.1} parent=11 // pred_check_branch
        %316 = sbr.rel (%p314) target = $region40
      $region39: #{paper_scoring_forward.1} parent=11 // pred_region
        _
      $region40: #{paper_scoring_forward.1} parent=11 // pred_fallthru
        _
      // Predicated region
      $region41: #{paper_scoring_forward.1} parent=11 // pred_check
        %p317 = pneg %p213
      $region42: #{paper_scoring_forward.1} parent=11 // pred_check_branch
        %319 = sbr.rel (%p317) target = $region44
      $region43: #{paper_scoring_forward.1} parent=11 // pred_region
        _
      $region44: #{paper_scoring_forward.1} parent=11 // pred_fallthru
        _
      // Predicated region
      $region45: #{paper_scoring_forward.1} parent=11 // pred_check
        %p320 = pneg %p234
      $region46: #{paper_scoring_forward.1} parent=11 // pred_check_branch
        %322 = sbr.rel (%p320) target = $region48
      $region47: #{paper_scoring_forward.1} parent=11 // pred_region
        _
      $region48: #{paper_scoring_forward.1} parent=11 // pred_fallthru
        _
      // Predicated region
      $region49: #{paper_scoring_forward.1} parent=11 // pred_check
        %p323 = pneg %p255
      $region50: #{paper_scoring_forward.1} parent=11 // pred_check_branch
        %325 = sbr.rel (%p323) target = $region52
      $region51: #{paper_scoring_forward.1} parent=11 // pred_region
        _
      $region52: #{paper_scoring_forward.1} parent=11 // pred_fallthru
        _
    $region12: #{paper_scoring_forward.1} parent=5 // pred_fallthru
      _
    %p326 = scmp.lt.s32.totalorder %s19, 2
    // Predicated region
    $region53: #{paper_scoring_forward.1} parent=5 // pred_check
      %p327 = pneg %p326
    $region54: #{paper_scoring_forward.1} parent=5 // pred_check_branch
      %329 = sbr.rel (%p327) target = $region56
    $region55: #{paper_scoring_forward.1} parent=5 // pred_region
      // Predicated region
      $region57: #{paper_scoring_forward.1} parent=55 // pred_check
        %p330 = pneg %p39
      $region58: #{paper_scoring_forward.1} parent=55 // pred_check_branch
        %332 = sbr.rel (%p330) target = $region60
      $region59: #{paper_scoring_forward.1} parent=55 // pred_region
        %s333 = smul.u32 32, %s19
        %p334 = scmp.lt.s32.totalorder %s333, 63
        %s335 = scalar_select %p334, %s333, 63
        %s336 = smul.addr %s335, 4
        %s337 = smul.addr %s336, 8
        %s338 = scalar_lea.vmem %s0, %s337
        %s339 = smul.u32 32, %s19
      $region60: #{paper_scoring_forward.1} parent=55 // pred_fallthru
        _
    $region56: #{paper_scoring_forward.1} parent=5 // pred_fallthru
      _
    %p340 = scmp.le.s32.totalorder 1, %s19
    %p341 = scmp.lt.s32.totalorder %s19, 3
    %p342 = pnand %p340, %p341
    %p343 = pneg %p342
    // Predicated region
    $region61: #{paper_scoring_forward.1} parent=5 // pred_check
      _
    $region62: #{paper_scoring_forward.1} parent=5 // pred_check_branch
      %345 = sbr.rel (%p342) target = $region64
    $region63: #{paper_scoring_forward.1} parent=5 // pred_region
      %s346 = ssub.s32 %s19, 1
      %s347 = smul.u32 32, %s24
      %p348 = scmp.lt.s32.totalorder %s347, 63
      %s349 = scalar_select %p348, %s347, 63
      %s350 = smul.addr %s349, 4
      %s351 = smul.addr %s350, 8
      %s352 = scalar_lea.vmem %s0, %s351
      %p353 = pneg %p45
      %p354 = pneg %p42
      %p355 = pneg %p66
      %p356 = pneg %p63
      %p357 = pneg %p87
      %p358 = pneg %p84
      %p359 = pneg %p108
      %p360 = pneg %p105
      %p361 = pneg %p129
      %p362 = pneg %p126
      %p363 = pneg %p150
      %p364 = pneg %p147
      %p365 = pneg %p171
      %p366 = pneg %p168
      %p367 = pneg %p192
      %p368 = pneg %p189
      %p369 = pneg %p213
      %p370 = pneg %p210
      %p371 = pneg %p234
      %p372 = pneg %p231
      %p373 = pneg %p255
      %p374 = pneg %p252
      %p375 = pneg %p281
      %p376 = pneg %p278
      %s377 = smul.u32 2, %s24
      %p378 = scmp.lt.s32.totalorder %s377, 3
      %s379 = scalar_select %p378, %s377, 3
      %s380 = scalar_lea.vmem %s11, %s379
      %s381 = smul.u32 32, %s24
      %p382 = scmp.lt.s32.totalorder %s381, 63
      %s383 = scalar_select %p382, %s381, 63
      %s384 = smul.addr %s383, 4
      %s385 = smul.addr %s384, 8
      %s386 = scalar_lea.vmem %s0, %s385
      %s387 = smul.u32 32, %s24
      %s388 = smul.u32 2, %s24
      %p389 = scmp.lt.s32.totalorder %s388, 3
      %s390 = scalar_select %p389, %s388, 3
      %s391 = scalar_lea.vmem %s11, %s390
      %s392 = smul.u32 2, %s24
      %v394 = vld [vmem:[%s386] sm:$0xff]
      %v395 = vld [vmem:[%s386 + $0x8] sm:$0xff]
      %v396 = vld [vmem:[%s386 + $0x10] sm:$0xff]
      %v397 = vld [vmem:[%s386 + $0x18] sm:$0xff]
      %v398 = vld [vmem:[%s386 + $0x20] sm:$0xff]
      %v399 = vld [vmem:[%s386 + $0x28] sm:$0xff]
      %v400 = vld [vmem:[%s386 + $0x30] sm:$0xff]
      %v401 = vld [vmem:[%s386 + $0x38] sm:$0xff]
      %v402 = vld [vmem:[%s386 + $0x40] sm:$0xff]
      %v403 = vld [vmem:[%s386 + $0x48] sm:$0xff]
      %v404 = vld [vmem:[%s386 + $0x50] sm:$0xff]
      %v405 = vld [vmem:[%s386 + $0x58] sm:$0xff]
      %v406 = vld [vmem:[%s386 + $0x60] sm:$0xff]
      %v407 = vld [vmem:[%s386 + $0x68] sm:$0xff]
      %v408 = vld [vmem:[%s386 + $0x70] sm:$0xff]
      %v409 = vld [vmem:[%s386 + $0x78] sm:$0xff]
      %v410 = vld [vmem:[%s386 + $0x80] sm:$0xff]
      %v411 = vld [vmem:[%s386 + $0x88] sm:$0xff]
      %v412 = vld [vmem:[%s386 + $0x90] sm:$0xff]
      %v413 = vld [vmem:[%s386 + $0x98] sm:$0xff]
      %v414 = vld [vmem:[%s386 + $0xa0] sm:$0xff]
      %v415 = vld [vmem:[%s386 + $0xa8] sm:$0xff]
      %v416 = vld [vmem:[%s386 + $0xb0] sm:$0xff]
      %v417 = vld [vmem:[%s386 + $0xb8] sm:$0xff]
      %v418 = vld [vmem:[%s386 + $0xc0] sm:$0xff]
      %v419 = vld [vmem:[%s386 + $0xc8] sm:$0xff]
      %v420 = vld [vmem:[%s386 + $0xd0] sm:$0xff]
      %v421 = vld [vmem:[%s386 + $0xd8] sm:$0xff]
      %v422 = vld [vmem:[%s386 + $0xe0] sm:$0xff]
      %v423 = vld [vmem:[%s386 + $0xe8] sm:$0xff]
      %v424 = vld [vmem:[%s386 + $0xf0] sm:$0xff]
      %v425 = vld [vmem:[%s386 + $0xf8] sm:$0xff]
      %v426 = vld [vmem:[%s386 + $0x100] sm:$0xff]
      %v427 = vld [vmem:[%s386 + $0x108] sm:$0xff]
      %v428 = vld [vmem:[%s386 + $0x110] sm:$0xff]
      %v429 = vld [vmem:[%s386 + $0x118] sm:$0xff]
      %v430 = vld [vmem:[%s386 + $0x120] sm:$0xff]
      %v431 = vld [vmem:[%s386 + $0x128] sm:$0xff]
      %v432 = vld [vmem:[%s386 + $0x130] sm:$0xff]
      %v433 = vld [vmem:[%s386 + $0x138] sm:$0xff]
      %v434 = vld [vmem:[%s386 + $0x140] sm:$0xff]
      %v435 = vld [vmem:[%s386 + $0x148] sm:$0xff]
      %v436 = vld [vmem:[%s386 + $0x150] sm:$0xff]
      %v437 = vld [vmem:[%s386 + $0x158] sm:$0xff]
      %v438 = vld [vmem:[%s386 + $0x160] sm:$0xff]
      %v439 = vld [vmem:[%s386 + $0x168] sm:$0xff]
      %v440 = vld [vmem:[%s386 + $0x170] sm:$0xff]
      %v441 = vld [vmem:[%s386 + $0x178] sm:$0xff]
      %v442 = vld [vmem:[%s386 + $0x180] sm:$0xff]
      %v443 = vld [vmem:[%s386 + $0x188] sm:$0xff]
      %v444 = vld [vmem:[%s386 + $0x190] sm:$0xff]
      %v445 = vld [vmem:[%s386 + $0x198] sm:$0xff]
      %v446 = vld [vmem:[%s386 + $0x1a0] sm:$0xff]
      %v447 = vld [vmem:[%s386 + $0x1a8] sm:$0xff]
      %v448 = vld [vmem:[%s386 + $0x1b0] sm:$0xff]
      %v449 = vld [vmem:[%s386 + $0x1b8] sm:$0xff]
      %v450 = vld [vmem:[%s386 + $0x1c0] sm:$0xff]
      %v451 = vld [vmem:[%s386 + $0x1c8] sm:$0xff]
      %v452 = vld [vmem:[%s386 + $0x1d0] sm:$0xff]
      %v453 = vld [vmem:[%s386 + $0x1d8] sm:$0xff]
      %v454 = vld [vmem:[%s386 + $0x1e0] sm:$0xff]
      %v455 = vld [vmem:[%s386 + $0x1e8] sm:$0xff]
      %v456 = vld [vmem:[%s386 + $0x1f0] sm:$0xff]
      %v457 = vld [vmem:[%s386 + $0x1f8] sm:$0xff]
      %v458 = vld [vmem:[%s386 + $0x200] sm:$0xff]
      %v459 = vld [vmem:[%s386 + $0x208] sm:$0xff]
      %v460 = vld [vmem:[%s386 + $0x210] sm:$0xff]
      %v461 = vld [vmem:[%s386 + $0x218] sm:$0xff]
      %v462 = vld [vmem:[%s386 + $0x220] sm:$0xff]
      %v463 = vld [vmem:[%s386 + $0x228] sm:$0xff]
      %v464 = vld [vmem:[%s386 + $0x230] sm:$0xff]
      %v465 = vld [vmem:[%s386 + $0x238] sm:$0xff]
      %v466 = vld [vmem:[%s386 + $0x240] sm:$0xff]
      %v467 = vld [vmem:[%s386 + $0x248] sm:$0xff]
      %v468 = vld [vmem:[%s386 + $0x250] sm:$0xff]
      %v469 = vld [vmem:[%s386 + $0x258] sm:$0xff]
      %v470 = vld [vmem:[%s386 + $0x260] sm:$0xff]
      %v471 = vld [vmem:[%s386 + $0x268] sm:$0xff]
      %v472 = vld [vmem:[%s386 + $0x270] sm:$0xff]
      %v473 = vld [vmem:[%s386 + $0x278] sm:$0xff]
      %v474 = vld [vmem:[%s386 + $0x280] sm:$0xff]
      %v475 = vld [vmem:[%s386 + $0x288] sm:$0xff]
      %v476 = vld [vmem:[%s386 + $0x290] sm:$0xff]
      %v477 = vld [vmem:[%s386 + $0x298] sm:$0xff]
      %v478 = vld [vmem:[%s386 + $0x2a0] sm:$0xff]
      %v479 = vld [vmem:[%s386 + $0x2a8] sm:$0xff]
      %v480 = vld [vmem:[%s386 + $0x2b0] sm:$0xff]
      %v481 = vld [vmem:[%s386 + $0x2b8] sm:$0xff]
      %v482 = vld [vmem:[%s386 + $0x2c0] sm:$0xff]
      %v483 = vld [vmem:[%s386 + $0x2c8] sm:$0xff]
      %v484 = vld [vmem:[%s386 + $0x2d0] sm:$0xff]
      %v485 = vld [vmem:[%s386 + $0x2d8] sm:$0xff]
      %v486 = vld [vmem:[%s386 + $0x2e0] sm:$0xff]
      %v487 = vld [vmem:[%s386 + $0x2e8] sm:$0xff]
      %v488 = vld [vmem:[%s386 + $0x2f0] sm:$0xff]
      %v489 = vld [vmem:[%s386 + $0x2f8] sm:$0xff]
      %v490 = vld [vmem:[%s386 + $0x300] sm:$0xff]
      %v491 = vld [vmem:[%s386 + $0x308] sm:$0xff]
      %v492 = vld [vmem:[%s386 + $0x310] sm:$0xff]
      %v493 = vld [vmem:[%s386 + $0x318] sm:$0xff]
      %v494 = vld [vmem:[%s386 + $0x320] sm:$0xff]
      %v495 = vld [vmem:[%s386 + $0x328] sm:$0xff]
      %v496 = vld [vmem:[%s386 + $0x330] sm:$0xff]
      %v497 = vld [vmem:[%s386 + $0x338] sm:$0xff]
      %v498 = vld [vmem:[%s386 + $0x340] sm:$0xff]
      %v499 = vld [vmem:[%s386 + $0x348] sm:$0xff]
      %v500 = vld [vmem:[%s386 + $0x350] sm:$0xff]
      %v501 = vld [vmem:[%s386 + $0x358] sm:$0xff]
      %v502 = vld [vmem:[%s386 + $0x360] sm:$0xff]
      %v503 = vld [vmem:[%s386 + $0x368] sm:$0xff]
      %v504 = vld [vmem:[%s386 + $0x370] sm:$0xff]
      %v505 = vld [vmem:[%s386 + $0x378] sm:$0xff]
      %v506 = vld [vmem:[%s386 + $0x380] sm:$0xff]
      %v507 = vld [vmem:[%s386 + $0x388] sm:$0xff]
      %v508 = vld [vmem:[%s386 + $0x390] sm:$0xff]
      %v509 = vld [vmem:[%s386 + $0x398] sm:$0xff]
      %v510 = vld [vmem:[%s386 + $0x3a0] sm:$0xff]
      %v511 = vld [vmem:[%s386 + $0x3a8] sm:$0xff]
      %v512 = vld [vmem:[%s386 + $0x3b0] sm:$0xff]
      %v513 = vld [vmem:[%s386 + $0x3b8] sm:$0xff]
      %v514 = vld [vmem:[%s386 + $0x3c0] sm:$0xff]
      %v515 = vld [vmem:[%s386 + $0x3c8] sm:$0xff]
      %v516 = vld [vmem:[%s386 + $0x3d0] sm:$0xff]
      %v517 = vld [vmem:[%s386 + $0x3d8] sm:$0xff]
      %v518 = vld [vmem:[%s386 + $0x3e0] sm:$0xff]
      %v519 = vld [vmem:[%s386 + $0x3e8] sm:$0xff]
      %v520 = vld [vmem:[%s386 + $0x3f0] sm:$0xff]
      %v521 = vld [vmem:[%s386 + $0x3f8] sm:$0xff]
      %v522 = vpack.c.bf16 %v398, %v394
      %v523 = vpack.c.bf16 %v399, %v395
      %v524 = vpack.c.bf16 %v400, %v396
      %v525 = vpack.c.bf16 %v401, %v397
      %v526 = vpack.c.bf16 %v406, %v402
      %v527 = vpack.c.bf16 %v407, %v403
      %v528 = vpack.c.bf16 %v408, %v404
      %v529 = vpack.c.bf16 %v409, %v405
      %v530 = vpack.c.bf16 %v414, %v410
      %v531 = vpack.c.bf16 %v415, %v411
      %v532 = vpack.c.bf16 %v416, %v412
      %v533 = vpack.c.bf16 %v417, %v413
      %v534 = vpack.c.bf16 %v422, %v418
      %v535 = vpack.c.bf16 %v423, %v419
      %v536 = vpack.c.bf16 %v424, %v420
      %v537 = vpack.c.bf16 %v425, %v421
      %v538 = vpack.c.bf16 %v430, %v426
      %v539 = vpack.c.bf16 %v431, %v427
      %v540 = vpack.c.bf16 %v432, %v428
      %v541 = vpack.c.bf16 %v433, %v429
      %v542 = vpack.c.bf16 %v438, %v434
      %v543 = vpack.c.bf16 %v439, %v435
      %v544 = vpack.c.bf16 %v440, %v436
      %v545 = vpack.c.bf16 %v441, %v437
      %v546 = vpack.c.bf16 %v446, %v442
      %v547 = vpack.c.bf16 %v447, %v443
      %v548 = vpack.c.bf16 %v448, %v444
      %v549 = vpack.c.bf16 %v449, %v445
      %v550 = vpack.c.bf16 %v454, %v450
      %v551 = vpack.c.bf16 %v455, %v451
      %v552 = vpack.c.bf16 %v456, %v452
      %v553 = vpack.c.bf16 %v457, %v453
      %v554 = vpack.c.bf16 %v462, %v458
      %v555 = vpack.c.bf16 %v463, %v459
      %v556 = vpack.c.bf16 %v464, %v460
      %v557 = vpack.c.bf16 %v465, %v461
      %v558 = vpack.c.bf16 %v470, %v466
      %v559 = vpack.c.bf16 %v471, %v467
      %v560 = vpack.c.bf16 %v472, %v468
      %v561 = vpack.c.bf16 %v473, %v469
      %v562 = vpack.c.bf16 %v478, %v474
      %v563 = vpack.c.bf16 %v479, %v475
      %v564 = vpack.c.bf16 %v480, %v476
      %v565 = vpack.c.bf16 %v481, %v477
      %v566 = vpack.c.bf16 %v486, %v482
      %v567 = vpack.c.bf16 %v487, %v483
      %v568 = vpack.c.bf16 %v488, %v484
      %v569 = vpack.c.bf16 %v489, %v485
      %v570 = vpack.c.bf16 %v494, %v490
      %v571 = vpack.c.bf16 %v495, %v491
      %v572 = vpack.c.bf16 %v496, %v492
      %v573 = vpack.c.bf16 %v497, %v493
      %v574 = vpack.c.bf16 %v502, %v498
      %v575 = vpack.c.bf16 %v503, %v499
      %v576 = vpack.c.bf16 %v504, %v500
      %v577 = vpack.c.bf16 %v505, %v501
      %v578 = vpack.c.bf16 %v510, %v506
      %v579 = vpack.c.bf16 %v511, %v507
      %v580 = vpack.c.bf16 %v512, %v508
      %v581 = vpack.c.bf16 %v513, %v509
      %v582 = vpack.c.bf16 %v518, %v514
      %v583 = vpack.c.bf16 %v519, %v515
      %v584 = vpack.c.bf16 %v520, %v516
      %v585 = vpack.c.bf16 %v521, %v517
      %v586 = vld [vmem:[%s1] sm:$0xff]
      %v587 = vld [vmem:[%s1 + $0x8] sm:$0xff]
      %v588 = vld [vmem:[%s1 + $0x10] sm:$0xff]
      %v589 = vld [vmem:[%s1 + $0x18] sm:$0xff]
      %v590 = vld [vmem:[%s1 + $0x20] sm:$0xff]
      %v591 = vld [vmem:[%s1 + $0x28] sm:$0xff]
      %v592 = vld [vmem:[%s1 + $0x30] sm:$0xff]
      %v593 = vld [vmem:[%s1 + $0x38] sm:$0xff]
      %v594 = vld [vmem:[%s1 + $0x40] sm:$0xff]
      %v595 = vld [vmem:[%s1 + $0x48] sm:$0xff]
      %v596 = vld [vmem:[%s1 + $0x50] sm:$0xff]
      %v597 = vld [vmem:[%s1 + $0x58] sm:$0xff]
      %v598 = vld [vmem:[%s1 + $0x60] sm:$0xff]
      %v599 = vld [vmem:[%s1 + $0x68] sm:$0xff]
      %v600 = vld [vmem:[%s1 + $0x70] sm:$0xff]
      %v601 = vld [vmem:[%s1 + $0x78] sm:$0xff]
      %v602 = vld [vmem:[%s1 + $0x80] sm:$0xff]
      %v603 = vld [vmem:[%s1 + $0x88] sm:$0xff]
      %v604 = vld [vmem:[%s1 + $0x90] sm:$0xff]
      %v605 = vld [vmem:[%s1 + $0x98] sm:$0xff]
      %v606 = vld [vmem:[%s1 + $0xa0] sm:$0xff]
      %v607 = vld [vmem:[%s1 + $0xa8] sm:$0xff]
      %v608 = vld [vmem:[%s1 + $0xb0] sm:$0xff]
      %v609 = vld [vmem:[%s1 + $0xb8] sm:$0xff]
      %v610 = vld [vmem:[%s1 + $0xc0] sm:$0xff]
      %v611 = vld [vmem:[%s1 + $0xc8] sm:$0xff]
      %v612 = vld [vmem:[%s1 + $0xd0] sm:$0xff]
      %v613 = vld [vmem:[%s1 + $0xd8] sm:$0xff]
      %v614 = vld [vmem:[%s1 + $0xe0] sm:$0xff]
      %v615 = vld [vmem:[%s1 + $0xe8] sm:$0xff]
      %v616 = vld [vmem:[%s1 + $0xf0] sm:$0xff]
      %v617 = vld [vmem:[%s1 + $0xf8] sm:$0xff]
      %v618 = vld [vmem:[%s1 + $0x100] sm:$0xff]
      %v619 = vld [vmem:[%s1 + $0x108] sm:$0xff]
      %v620 = vld [vmem:[%s1 + $0x110] sm:$0xff]
      %v621 = vld [vmem:[%s1 + $0x118] sm:$0xff]
      %v622 = vld [vmem:[%s1 + $0x120] sm:$0xff]
      %v623 = vld [vmem:[%s1 + $0x128] sm:$0xff]
      %v624 = vld [vmem:[%s1 + $0x130] sm:$0xff]
      %v625 = vld [vmem:[%s1 + $0x138] sm:$0xff]
      %v626 = vld [vmem:[%s1 + $0x140] sm:$0xff]
      %v627 = vld [vmem:[%s1 + $0x148] sm:$0xff]
      %v628 = vld [vmem:[%s1 + $0x150] sm:$0xff]
      %v629 = vld [vmem:[%s1 + $0x158] sm:$0xff]
      %v630 = vld [vmem:[%s1 + $0x160] sm:$0xff]
      %v631 = vld [vmem:[%s1 + $0x168] sm:$0xff]
      %v632 = vld [vmem:[%s1 + $0x170] sm:$0xff]
      %v633 = vld [vmem:[%s1 + $0x178] sm:$0xff]
      %v634 = vld [vmem:[%s1 + $0x180] sm:$0xff]
      %v635 = vld [vmem:[%s1 + $0x188] sm:$0xff]
      %v636 = vld [vmem:[%s1 + $0x190] sm:$0xff]
      %v637 = vld [vmem:[%s1 + $0x198] sm:$0xff]
      %v638 = vld [vmem:[%s1 + $0x1a0] sm:$0xff]
      %v639 = vld [vmem:[%s1 + $0x1a8] sm:$0xff]
      %v640 = vld [vmem:[%s1 + $0x1b0] sm:$0xff]
      %v641 = vld [vmem:[%s1 + $0x1b8] sm:$0xff]
      %v642 = vld [vmem:[%s1 + $0x1c0] sm:$0xff]
      %v643 = vld [vmem:[%s1 + $0x1c8] sm:$0xff]
      %v644 = vld [vmem:[%s1 + $0x1d0] sm:$0xff]
      %v645 = vld [vmem:[%s1 + $0x1d8] sm:$0xff]
      %v646 = vld [vmem:[%s1 + $0x1e0] sm:$0xff]
      %v647 = vld [vmem:[%s1 + $0x1e8] sm:$0xff]
      %v648 = vld [vmem:[%s1 + $0x1f0] sm:$0xff]
      %v649 = vld [vmem:[%s1 + $0x1f8] sm:$0xff]
      %v650 = vld [vmem:[%s1 + $0x200] sm:$0xff]
      %v651 = vld [vmem:[%s1 + $0x208] sm:$0xff]
      %v652 = vld [vmem:[%s1 + $0x210] sm:$0xff]
      %v653 = vld [vmem:[%s1 + $0x218] sm:$0xff]
      %v654 = vld [vmem:[%s1 + $0x220] sm:$0xff]
      %v655 = vld [vmem:[%s1 + $0x228] sm:$0xff]
      %v656 = vld [vmem:[%s1 + $0x230] sm:$0xff]
      %v657 = vld [vmem:[%s1 + $0x238] sm:$0xff]
      %v658 = vld [vmem:[%s1 + $0x240] sm:$0xff]
      %v659 = vld [vmem:[%s1 + $0x248] sm:$0xff]
      %v660 = vld [vmem:[%s1 + $0x250] sm:$0xff]
      %v661 = vld [vmem:[%s1 + $0x258] sm:$0xff]
      %v662 = vld [vmem:[%s1 + $0x260] sm:$0xff]
      %v663 = vld [vmem:[%s1 + $0x268] sm:$0xff]
      %v664 = vld [vmem:[%s1 + $0x270] sm:$0xff]
      %v665 = vld [vmem:[%s1 + $0x278] sm:$0xff]
      %v666 = vld [vmem:[%s1 + $0x280] sm:$0xff]
      %v667 = vld [vmem:[%s1 + $0x288] sm:$0xff]
      %v668 = vld [vmem:[%s1 + $0x290] sm:$0xff]
      %v669 = vld [vmem:[%s1 + $0x298] sm:$0xff]
      %v670 = vld [vmem:[%s1 + $0x2a0] sm:$0xff]
      %v671 = vld [vmem:[%s1 + $0x2a8] sm:$0xff]
      %v672 = vld [vmem:[%s1 + $0x2b0] sm:$0xff]
      %v673 = vld [vmem:[%s1 + $0x2b8] sm:$0xff]
      %v674 = vld [vmem:[%s1 + $0x2c0] sm:$0xff]
      %v675 = vld [vmem:[%s1 + $0x2c8] sm:$0xff]
      %v676 = vld [vmem:[%s1 + $0x2d0] sm:$0xff]
      %v677 = vld [vmem:[%s1 + $0x2d8] sm:$0xff]
      %v678 = vld [vmem:[%s1 + $0x2e0] sm:$0xff]
      %v679 = vld [vmem:[%s1 + $0x2e8] sm:$0xff]
      %v680 = vld [vmem:[%s1 + $0x2f0] sm:$0xff]
      %v681 = vld [vmem:[%s1 + $0x2f8] sm:$0xff]
      %v682 = vld [vmem:[%s1 + $0x300] sm:$0xff]
      %v683 = vld [vmem:[%s1 + $0x308] sm:$0xff]
      %v684 = vld [vmem:[%s1 + $0x310] sm:$0xff]
      %v685 = vld [vmem:[%s1 + $0x318] sm:$0xff]
      %v686 = vld [vmem:[%s1 + $0x320] sm:$0xff]
      %v687 = vld [vmem:[%s1 + $0x328] sm:$0xff]
      %v688 = vld [vmem:[%s1 + $0x330] sm:$0xff]
      %v689 = vld [vmem:[%s1 + $0x338] sm:$0xff]
      %v690 = vld [vmem:[%s1 + $0x340] sm:$0xff]
      %v691 = vld [vmem:[%s1 + $0x348] sm:$0xff]
      %v692 = vld [vmem:[%s1 + $0x350] sm:$0xff]
      %v693 = vld [vmem:[%s1 + $0x358] sm:$0xff]
      %v694 = vld [vmem:[%s1 + $0x360] sm:$0xff]
      %v695 = vld [vmem:[%s1 + $0x368] sm:$0xff]
      %v696 = vld [vmem:[%s1 + $0x370] sm:$0xff]
      %v697 = vld [vmem:[%s1 + $0x378] sm:$0xff]
      %v698 = vld [vmem:[%s1 + $0x380] sm:$0xff]
      %v699 = vld [vmem:[%s1 + $0x388] sm:$0xff]
      %v700 = vld [vmem:[%s1 + $0x390] sm:$0xff]
      %v701 = vld [vmem:[%s1 + $0x398] sm:$0xff]
      %v702 = vld [vmem:[%s1 + $0x3a0] sm:$0xff]
      %v703 = vld [vmem:[%s1 + $0x3a8] sm:$0xff]
      %v704 = vld [vmem:[%s1 + $0x3b0] sm:$0xff]
      %v705 = vld [vmem:[%s1 + $0x3b8] sm:$0xff]
      %v706 = vld [vmem:[%s1 + $0x3c0] sm:$0xff]
      %v707 = vld [vmem:[%s1 + $0x3c8] sm:$0xff]
      %v708 = vld [vmem:[%s1 + $0x3d0] sm:$0xff]
      %v709 = vld [vmem:[%s1 + $0x3d8] sm:$0xff]
      %v710 = vld [vmem:[%s1 + $0x3e0] sm:$0xff]
      %v711 = vld [vmem:[%s1 + $0x3e8] sm:$0xff]
      %v712 = vld [vmem:[%s1 + $0x3f0] sm:$0xff]
      %v713 = vld [vmem:[%s1 + $0x3f8] sm:$0xff]
      %v714 = vld [vmem:[%s2] sm:$0xf]
      %v716 = vlaneseq
      %v717 = vshrl.u32 %v716, 7
      %v718 = vsub.s32 0, %v717
      %v719 = vrot.slane %v714, %v718
      %v720 = vlaneseq
      %v721 = vshrl.u32 %v720, 7
      %v722 = vsub.s32 1, %v721
      %v723 = vrot.slane %v714, %v722
      %v724 = vlaneseq
      %v725 = vshrl.u32 %v724, 7
      %v726 = vsub.s32 2, %v725
      %v727 = vrot.slane %v714, %v726
      %v728 = vlaneseq
      %v729 = vshrl.u32 %v728, 7
      %v730 = vsub.s32 3, %v729
      %v731 = vrot.slane %v714, %v730
      %v864 = vunpack.c.l.b16 %v586
      %v865 = vunpack.c.h.b16 %v586
      %v866 = vunpack.c.l.b16 %v587
      %v867 = vunpack.c.h.b16 %v587
      %v868 = vunpack.c.l.b16 %v588
      %v869 = vunpack.c.h.b16 %v588
      %v870 = vunpack.c.l.b16 %v589
      %v871 = vunpack.c.h.b16 %v589
      %v872 = vunpack.c.l.b16 %v590
      %v873 = vunpack.c.h.b16 %v590
      %v874 = vunpack.c.l.b16 %v591
      %v875 = vunpack.c.h.b16 %v591
      %v876 = vunpack.c.l.b16 %v592
      %v877 = vunpack.c.h.b16 %v592
      %v878 = vunpack.c.l.b16 %v593
      %v879 = vunpack.c.h.b16 %v593
      %v880 = vunpack.c.l.b16 %v594
      %v881 = vunpack.c.h.b16 %v594
      %v882 = vunpack.c.l.b16 %v595
      %v883 = vunpack.c.h.b16 %v595
      %v884 = vunpack.c.l.b16 %v596
      %v885 = vunpack.c.h.b16 %v596
      %v886 = vunpack.c.l.b16 %v597
      %v887 = vunpack.c.h.b16 %v597
      %v888 = vunpack.c.l.b16 %v598
      %v889 = vunpack.c.h.b16 %v598
      %v890 = vunpack.c.l.b16 %v599
      %v891 = vunpack.c.h.b16 %v599
      %v892 = vunpack.c.l.b16 %v600
      %v893 = vunpack.c.h.b16 %v600
      %v894 = vunpack.c.l.b16 %v601
      %v895 = vunpack.c.h.b16 %v601
      %v896 = vunpack.c.l.b16 %v602
      %v897 = vunpack.c.h.b16 %v602
      %v898 = vunpack.c.l.b16 %v603
      %v899 = vunpack.c.h.b16 %v603
      %v900 = vunpack.c.l.b16 %v604
      %v901 = vunpack.c.h.b16 %v604
      %v902 = vunpack.c.l.b16 %v605
      %v903 = vunpack.c.h.b16 %v605
      %v904 = vunpack.c.l.b16 %v606
      %v905 = vunpack.c.h.b16 %v606
      %v906 = vunpack.c.l.b16 %v607
      %v907 = vunpack.c.h.b16 %v607
      %v908 = vunpack.c.l.b16 %v608
      %v909 = vunpack.c.h.b16 %v608
      %v910 = vunpack.c.l.b16 %v609
      %v911 = vunpack.c.h.b16 %v609
      %v912 = vunpack.c.l.b16 %v610
      %v913 = vunpack.c.h.b16 %v610
      %v914 = vunpack.c.l.b16 %v611
      %v915 = vunpack.c.h.b16 %v611
      %v916 = vunpack.c.l.b16 %v612
      %v917 = vunpack.c.h.b16 %v612
      %v918 = vunpack.c.l.b16 %v613
      %v919 = vunpack.c.h.b16 %v613
      %v920 = vunpack.c.l.b16 %v614
      %v921 = vunpack.c.h.b16 %v614
      %v922 = vunpack.c.l.b16 %v615
      %v923 = vunpack.c.h.b16 %v615
      %v924 = vunpack.c.l.b16 %v616
      %v925 = vunpack.c.h.b16 %v616
      %v926 = vunpack.c.l.b16 %v617
      %v927 = vunpack.c.h.b16 %v617
      %v928 = vunpack.c.l.b16 %v618
      %v929 = vunpack.c.h.b16 %v618
      %v930 = vunpack.c.l.b16 %v619
      %v931 = vunpack.c.h.b16 %v619
      %v932 = vunpack.c.l.b16 %v620
      %v933 = vunpack.c.h.b16 %v620
      %v934 = vunpack.c.l.b16 %v621
      %v935 = vunpack.c.h.b16 %v621
      %v936 = vunpack.c.l.b16 %v622
      %v937 = vunpack.c.h.b16 %v622
      %v938 = vunpack.c.l.b16 %v623
      %v939 = vunpack.c.h.b16 %v623
      %v940 = vunpack.c.l.b16 %v624
      %v941 = vunpack.c.h.b16 %v624
      %v942 = vunpack.c.l.b16 %v625
      %v943 = vunpack.c.h.b16 %v625
      %v944 = vunpack.c.l.b16 %v626
      %v945 = vunpack.c.h.b16 %v626
      %v946 = vunpack.c.l.b16 %v627
      %v947 = vunpack.c.h.b16 %v627
      %v948 = vunpack.c.l.b16 %v628
      %v949 = vunpack.c.h.b16 %v628
      %v950 = vunpack.c.l.b16 %v629
      %v951 = vunpack.c.h.b16 %v629
      %v952 = vunpack.c.l.b16 %v630
      %v953 = vunpack.c.h.b16 %v630
      %v954 = vunpack.c.l.b16 %v631
      %v955 = vunpack.c.h.b16 %v631
      %v956 = vunpack.c.l.b16 %v632
      %v957 = vunpack.c.h.b16 %v632
      %v958 = vunpack.c.l.b16 %v633
      %v959 = vunpack.c.h.b16 %v633
      %v960 = vunpack.c.l.b16 %v634
      %v961 = vunpack.c.h.b16 %v634
      %v962 = vunpack.c.l.b16 %v635
      %v963 = vunpack.c.h.b16 %v635
      %v964 = vunpack.c.l.b16 %v636
      %v965 = vunpack.c.h.b16 %v636
      %v966 = vunpack.c.l.b16 %v637
      %v967 = vunpack.c.h.b16 %v637
      %v968 = vunpack.c.l.b16 %v638
      %v969 = vunpack.c.h.b16 %v638
      %v970 = vunpack.c.l.b16 %v639
      %v971 = vunpack.c.h.b16 %v639
      %v972 = vunpack.c.l.b16 %v640
      %v973 = vunpack.c.h.b16 %v640
      %v974 = vunpack.c.l.b16 %v641
      %v975 = vunpack.c.h.b16 %v641
      %v976 = vunpack.c.l.b16 %v642
      %v977 = vunpack.c.h.b16 %v642
      %v978 = vunpack.c.l.b16 %v643
      %v979 = vunpack.c.h.b16 %v643
      %v980 = vunpack.c.l.b16 %v644
      %v981 = vunpack.c.h.b16 %v644
      %v982 = vunpack.c.l.b16 %v645
      %v983 = vunpack.c.h.b16 %v645
      %v984 = vunpack.c.l.b16 %v646
      %v985 = vunpack.c.h.b16 %v646
      %v986 = vunpack.c.l.b16 %v647
      %v987 = vunpack.c.h.b16 %v647
      %v988 = vunpack.c.l.b16 %v648
      %v989 = vunpack.c.h.b16 %v648
      %v990 = vunpack.c.l.b16 %v649
      %v991 = vunpack.c.h.b16 %v649
      %v992 = vunpack.c.l.b16 %v650
      %v993 = vunpack.c.h.b16 %v650
      %v994 = vunpack.c.l.b16 %v651
      %v995 = vunpack.c.h.b16 %v651
      %v996 = vunpack.c.l.b16 %v652
      %v997 = vunpack.c.h.b16 %v652
      %v998 = vunpack.c.l.b16 %v653
      %v999 = vunpack.c.h.b16 %v653
      %v1000 = vunpack.c.l.b16 %v654
      %v1001 = vunpack.c.h.b16 %v654
      %v1002 = vunpack.c.l.b16 %v655
      %v1003 = vunpack.c.h.b16 %v655
      %v1004 = vunpack.c.l.b16 %v656
      %v1005 = vunpack.c.h.b16 %v656
      %v1006 = vunpack.c.l.b16 %v657
      %v1007 = vunpack.c.h.b16 %v657
      %v1008 = vunpack.c.l.b16 %v658
      %v1009 = vunpack.c.h.b16 %v658
      %v1010 = vunpack.c.l.b16 %v659
      %v1011 = vunpack.c.h.b16 %v659
      %v1012 = vunpack.c.l.b16 %v660
      %v1013 = vunpack.c.h.b16 %v660
      %v1014 = vunpack.c.l.b16 %v661
      %v1015 = vunpack.c.h.b16 %v661
      %v1016 = vunpack.c.l.b16 %v662
      %v1017 = vunpack.c.h.b16 %v662
      %v1018 = vunpack.c.l.b16 %v663
      %v1019 = vunpack.c.h.b16 %v663
      %v1020 = vunpack.c.l.b16 %v664
      %v1021 = vunpack.c.h.b16 %v664
      %v1022 = vunpack.c.l.b16 %v665
      %v1023 = vunpack.c.h.b16 %v665
      %v1024 = vunpack.c.l.b16 %v666
      %v1025 = vunpack.c.h.b16 %v666
      %v1026 = vunpack.c.l.b16 %v667
      %v1027 = vunpack.c.h.b16 %v667
      %v1028 = vunpack.c.l.b16 %v668
      %v1029 = vunpack.c.h.b16 %v668
      %v1030 = vunpack.c.l.b16 %v669
      %v1031 = vunpack.c.h.b16 %v669
      %v1032 = vunpack.c.l.b16 %v670
      %v1033 = vunpack.c.h.b16 %v670
      %v1034 = vunpack.c.l.b16 %v671
      %v1035 = vunpack.c.h.b16 %v671
      %v1036 = vunpack.c.l.b16 %v672
      %v1037 = vunpack.c.h.b16 %v672
      %v1038 = vunpack.c.l.b16 %v673
      %v1039 = vunpack.c.h.b16 %v673
      %v1040 = vunpack.c.l.b16 %v674
      %v1041 = vunpack.c.h.b16 %v674
      %v1042 = vunpack.c.l.b16 %v675
      %v1043 = vunpack.c.h.b16 %v675
      %v1044 = vunpack.c.l.b16 %v676
      %v1045 = vunpack.c.h.b16 %v676
      %v1046 = vunpack.c.l.b16 %v677
      %v1047 = vunpack.c.h.b16 %v677
      %v1048 = vunpack.c.l.b16 %v678
      %v1049 = vunpack.c.h.b16 %v678
      %v1050 = vunpack.c.l.b16 %v679
      %v1051 = vunpack.c.h.b16 %v679
      %v1052 = vunpack.c.l.b16 %v680
      %v1053 = vunpack.c.h.b16 %v680
      %v1054 = vunpack.c.l.b16 %v681
      %v1055 = vunpack.c.h.b16 %v681
      %v1056 = vunpack.c.l.b16 %v682
      %v1057 = vunpack.c.h.b16 %v682
      %v1058 = vunpack.c.l.b16 %v683
      %v1059 = vunpack.c.h.b16 %v683
      %v1060 = vunpack.c.l.b16 %v684
      %v1061 = vunpack.c.h.b16 %v684
      %v1062 = vunpack.c.l.b16 %v685
      %v1063 = vunpack.c.h.b16 %v685
      %v1064 = vunpack.c.l.b16 %v686
      %v1065 = vunpack.c.h.b16 %v686
      %v1066 = vunpack.c.l.b16 %v687
      %v1067 = vunpack.c.h.b16 %v687
      %v1068 = vunpack.c.l.b16 %v688
      %v1069 = vunpack.c.h.b16 %v688
      %v1070 = vunpack.c.l.b16 %v689
      %v1071 = vunpack.c.h.b16 %v689
      %v1072 = vunpack.c.l.b16 %v690
      %v1073 = vunpack.c.h.b16 %v690
      %v1074 = vunpack.c.l.b16 %v691
      %v1075 = vunpack.c.h.b16 %v691
      %v1076 = vunpack.c.l.b16 %v692
      %v1077 = vunpack.c.h.b16 %v692
      %v1078 = vunpack.c.l.b16 %v693
      %v1079 = vunpack.c.h.b16 %v693
      %v1080 = vunpack.c.l.b16 %v694
      %v1081 = vunpack.c.h.b16 %v694
      %v1082 = vunpack.c.l.b16 %v695
      %v1083 = vunpack.c.h.b16 %v695
      %v1084 = vunpack.c.l.b16 %v696
      %v1085 = vunpack.c.h.b16 %v696
      %v1086 = vunpack.c.l.b16 %v697
      %v1087 = vunpack.c.h.b16 %v697
      %v1088 = vunpack.c.l.b16 %v698
      %v1089 = vunpack.c.h.b16 %v698
      %v1090 = vunpack.c.l.b16 %v699
      %v1091 = vunpack.c.h.b16 %v699
      %v1092 = vunpack.c.l.b16 %v700
      %v1093 = vunpack.c.h.b16 %v700
      %v1094 = vunpack.c.l.b16 %v701
      %v1095 = vunpack.c.h.b16 %v701
      %v1096 = vunpack.c.l.b16 %v702
      %v1097 = vunpack.c.h.b16 %v702
      %v1098 = vunpack.c.l.b16 %v703
      %v1099 = vunpack.c.h.b16 %v703
      %v1100 = vunpack.c.l.b16 %v704
      %v1101 = vunpack.c.h.b16 %v704
      %v1102 = vunpack.c.l.b16 %v705
      %v1103 = vunpack.c.h.b16 %v705
      %v1104 = vunpack.c.l.b16 %v706
      %v1105 = vunpack.c.h.b16 %v706
      %v1106 = vunpack.c.l.b16 %v707
      %v1107 = vunpack.c.h.b16 %v707
      %v1108 = vunpack.c.l.b16 %v708
      %v1109 = vunpack.c.h.b16 %v708
      %v1110 = vunpack.c.l.b16 %v709
      %v1111 = vunpack.c.h.b16 %v709
      %v1112 = vunpack.c.l.b16 %v710
      %v1113 = vunpack.c.h.b16 %v710
      %v1114 = vunpack.c.l.b16 %v711
      %v1115 = vunpack.c.h.b16 %v711
      %v1116 = vunpack.c.l.b16 %v712
      %v1117 = vunpack.c.h.b16 %v712
      %v1118 = vunpack.c.l.b16 %v713
      %v1119 = vunpack.c.h.b16 %v713
      %v1120 = vpack.c.b16 %v868, %v864
      %v1121 = vpack.c.b16 %v869, %v865
      %v1122 = vpack.c.b16 %v870, %v866
      %v1123 = vpack.c.b16 %v871, %v867
      %v1124 = vpack.c.b16 %v876, %v872
      %v1125 = vpack.c.b16 %v877, %v873
      %v1126 = vpack.c.b16 %v878, %v874
      %v1127 = vpack.c.b16 %v879, %v875
      %v1128 = vpack.c.b16 %v884, %v880
      %v1129 = vpack.c.b16 %v885, %v881
      %v1130 = vpack.c.b16 %v886, %v882
      %v1131 = vpack.c.b16 %v887, %v883
      %v1132 = vpack.c.b16 %v892, %v888
      %v1133 = vpack.c.b16 %v893, %v889
      %v1134 = vpack.c.b16 %v894, %v890
      %v1135 = vpack.c.b16 %v895, %v891
      %v1136 = vpack.c.b16 %v900, %v896
      %v1137 = vpack.c.b16 %v901, %v897
      %v1138 = vpack.c.b16 %v902, %v898
      %v1139 = vpack.c.b16 %v903, %v899
      %v1140 = vpack.c.b16 %v908, %v904
      %v1141 = vpack.c.b16 %v909, %v905
      %v1142 = vpack.c.b16 %v910, %v906
      %v1143 = vpack.c.b16 %v911, %v907
      %v1144 = vpack.c.b16 %v916, %v912
      %v1145 = vpack.c.b16 %v917, %v913
      %v1146 = vpack.c.b16 %v918, %v914
      %v1147 = vpack.c.b16 %v919, %v915
      %v1148 = vpack.c.b16 %v924, %v920
      %v1149 = vpack.c.b16 %v925, %v921
      %v1150 = vpack.c.b16 %v926, %v922
      %v1151 = vpack.c.b16 %v927, %v923
      %v1152 = vpack.c.b16 %v932, %v928
      %v1153 = vpack.c.b16 %v933, %v929
      %v1154 = vpack.c.b16 %v934, %v930
      %v1155 = vpack.c.b16 %v935, %v931
      %v1156 = vpack.c.b16 %v940, %v936
      %v1157 = vpack.c.b16 %v941, %v937
      %v1158 = vpack.c.b16 %v942, %v938
      %v1159 = vpack.c.b16 %v943, %v939
      %v1160 = vpack.c.b16 %v948, %v944
      %v1161 = vpack.c.b16 %v949, %v945
      %v1162 = vpack.c.b16 %v950, %v946
      %v1163 = vpack.c.b16 %v951, %v947
      %v1164 = vpack.c.b16 %v956, %v952
      %v1165 = vpack.c.b16 %v957, %v953
      %v1166 = vpack.c.b16 %v958, %v954
      %v1167 = vpack.c.b16 %v959, %v955
      %v1168 = vpack.c.b16 %v964, %v960
      %v1169 = vpack.c.b16 %v965, %v961
      %v1170 = vpack.c.b16 %v966, %v962
      %v1171 = vpack.c.b16 %v967, %v963
      %v1172 = vpack.c.b16 %v972, %v968
      %v1173 = vpack.c.b16 %v973, %v969
      %v1174 = vpack.c.b16 %v974, %v970
      %v1175 = vpack.c.b16 %v975, %v971
      %v1176 = vpack.c.b16 %v980, %v976
      %v1177 = vpack.c.b16 %v981, %v977
      %v1178 = vpack.c.b16 %v982, %v978
      %v1179 = vpack.c.b16 %v983, %v979
      %v1180 = vpack.c.b16 %v988, %v984
      %v1181 = vpack.c.b16 %v989, %v985
      %v1182 = vpack.c.b16 %v990, %v986
      %v1183 = vpack.c.b16 %v991, %v987
      %v1184 = vpack.c.b16 %v996, %v992
      %v1185 = vpack.c.b16 %v997, %v993
      %v1186 = vpack.c.b16 %v998, %v994
      %v1187 = vpack.c.b16 %v999, %v995
      %v1188 = vpack.c.b16 %v1004, %v1000
      %v1189 = vpack.c.b16 %v1005, %v1001
      %v1190 = vpack.c.b16 %v1006, %v1002
      %v1191 = vpack.c.b16 %v1007, %v1003
      %v1192 = vpack.c.b16 %v1012, %v1008
      %v1193 = vpack.c.b16 %v1013, %v1009
      %v1194 = vpack.c.b16 %v1014, %v1010
      %v1195 = vpack.c.b16 %v1015, %v1011
      %v1196 = vpack.c.b16 %v1020, %v1016
      %v1197 = vpack.c.b16 %v1021, %v1017
      %v1198 = vpack.c.b16 %v1022, %v1018
      %v1199 = vpack.c.b16 %v1023, %v1019
      %v1200 = vpack.c.b16 %v1028, %v1024
      %v1201 = vpack.c.b16 %v1029, %v1025
      %v1202 = vpack.c.b16 %v1030, %v1026
      %v1203 = vpack.c.b16 %v1031, %v1027
      %v1204 = vpack.c.b16 %v1036, %v1032
      %v1205 = vpack.c.b16 %v1037, %v1033
      %v1206 = vpack.c.b16 %v1038, %v1034
      %v1207 = vpack.c.b16 %v1039, %v1035
      %v1208 = vpack.c.b16 %v1044, %v1040
      %v1209 = vpack.c.b16 %v1045, %v1041
      %v1210 = vpack.c.b16 %v1046, %v1042
      %v1211 = vpack.c.b16 %v1047, %v1043
      %v1212 = vpack.c.b16 %v1052, %v1048
      %v1213 = vpack.c.b16 %v1053, %v1049
      %v1214 = vpack.c.b16 %v1054, %v1050
      %v1215 = vpack.c.b16 %v1055, %v1051
      %v1216 = vpack.c.b16 %v1060, %v1056
      %v1217 = vpack.c.b16 %v1061, %v1057
      %v1218 = vpack.c.b16 %v1062, %v1058
      %v1219 = vpack.c.b16 %v1063, %v1059
      %v1220 = vpack.c.b16 %v1068, %v1064
      %v1221 = vpack.c.b16 %v1069, %v1065
      %v1222 = vpack.c.b16 %v1070, %v1066
      %v1223 = vpack.c.b16 %v1071, %v1067
      %v1224 = vpack.c.b16 %v1076, %v1072
      %v1225 = vpack.c.b16 %v1077, %v1073
      %v1226 = vpack.c.b16 %v1078, %v1074
      %v1227 = vpack.c.b16 %v1079, %v1075
      %v1228 = vpack.c.b16 %v1084, %v1080
      %v1229 = vpack.c.b16 %v1085, %v1081
      %v1230 = vpack.c.b16 %v1086, %v1082
      %v1231 = vpack.c.b16 %v1087, %v1083
      %v1232 = vpack.c.b16 %v1092, %v1088
      %v1233 = vpack.c.b16 %v1093, %v1089
      %v1234 = vpack.c.b16 %v1094, %v1090
      %v1235 = vpack.c.b16 %v1095, %v1091
      %v1236 = vpack.c.b16 %v1100, %v1096
      %v1237 = vpack.c.b16 %v1101, %v1097
      %v1238 = vpack.c.b16 %v1102, %v1098
      %v1239 = vpack.c.b16 %v1103, %v1099
      %v1240 = vpack.c.b16 %v1108, %v1104
      %v1241 = vpack.c.b16 %v1109, %v1105
      %v1242 = vpack.c.b16 %v1110, %v1106
      %v1243 = vpack.c.b16 %v1111, %v1107
      %v1244 = vpack.c.b16 %v1116, %v1112
      %v1245 = vpack.c.b16 %v1117, %v1113
      %v1246 = vpack.c.b16 %v1118, %v1114
      %v1247 = vpack.c.b16 %v1119, %v1115
      %1376 = vmatprep.subr.bf16.mxu0 %v1121
      %1377 = vmatpush1.bf16.msra.mxu0 %v1120
      %1378 = vmatprep.subr.bf16.mxu0 %v1125
      %1379 = vmatpush1.bf16.msra.mxu0 %v1124
      %1380 = vmatprep.subr.bf16.mxu0 %v1129
      %1381 = vmatpush1.bf16.msra.mxu0 %v1128
      %1382 = vmatprep.subr.bf16.mxu0 %v1133
      %1383 = vmatpush1.bf16.msra.mxu0 %v1132
      %1384 = vmatprep.subr.bf16.mxu0 %v1137
      %1385 = vmatpush1.bf16.msra.mxu0 %v1136
      %1386 = vmatprep.subr.bf16.mxu0 %v1141
      %1387 = vmatpush1.bf16.msra.mxu0 %v1140
      %1388 = vmatprep.subr.bf16.mxu0 %v1145
      %1389 = vmatpush1.bf16.msra.mxu0 %v1144
      %1390 = vmatprep.subr.bf16.mxu0 %v1149
      %1391 = vmatpush1.bf16.msra.mxu0 %v1148
      %1392 = vmatprep.subr.bf16.mxu0 %v1153
      %1393 = vmatpush1.bf16.msra.mxu0 %v1152
      %1394 = vmatprep.subr.bf16.mxu0 %v1157
      %1395 = vmatpush1.bf16.msra.mxu0 %v1156
      %1396 = vmatprep.subr.bf16.mxu0 %v1161
      %1397 = vmatpush1.bf16.msra.mxu0 %v1160
      %1398 = vmatprep.subr.bf16.mxu0 %v1165
      %1399 = vmatpush1.bf16.msra.mxu0 %v1164
      %1400 = vmatprep.subr.bf16.mxu0 %v1169
      %1401 = vmatpush1.bf16.msra.mxu0 %v1168
      %1402 = vmatprep.subr.bf16.mxu0 %v1173
      %1403 = vmatpush1.bf16.msra.mxu0 %v1172
      %1404 = vmatprep.subr.bf16.mxu0 %v1177
      %1405 = vmatpush1.bf16.msra.mxu0 %v1176
      %1406 = vmatprep.subr.bf16.mxu0 %v1181
      %1407 = vmatpush1.bf16.msra.mxu0 %v1180
      %1408 = vmatprep.mubr.bf16.mxu0 %v523
      %1409 = vmatmul.mubr.bf16.gmra.mrb[0].mxu0 %v522
      %v1410 = vpop.f32.mrb[0].mxu0
      %v1411 = vadd.f32 %v719, %v1410
      %v1412 = vpop.f32.mrb[0].mxu0
      %v1413 = vadd.f32 %v723, %v1412
      %v1414 = vpop.f32.mrb[0].mxu0
      %v1415 = vadd.f32 %v719, %v1414
      %v1416 = vpop.f32.mrb[0].mxu0
      %v1417 = vadd.f32 %v723, %v1416
      %1418 = vmatprep.mubr.bf16.mxu0 %v527
      %1419 = vmatmul.mubr.bf16.gmra.mrb[0].mxu0 %v526
      %v1420 = vpop.f32.mrb[0].mxu0
      %v1421 = vadd.f32 %v719, %v1420
      %v1422 = vpop.f32.mrb[0].mxu0
      %v1423 = vadd.f32 %v723, %v1422
      %v1424 = vpop.f32.mrb[0].mxu0
      %v1425 = vadd.f32 %v719, %v1424
      %v1426 = vpop.f32.mrb[0].mxu0
      %v1427 = vadd.f32 %v723, %v1426
      %1428 = vmatprep.mubr.bf16.mxu0 %v531
      %1429 = vmatmul.mubr.bf16.gmra.mrb[0].mxu0 %v530
      %v1430 = vpop.f32.mrb[0].mxu0
      %v1431 = vadd.f32 %v719, %v1430
      %v1432 = vpop.f32.mrb[0].mxu0
      %v1433 = vadd.f32 %v723, %v1432
      %v1434 = vpop.f32.mrb[0].mxu0
      %v1435 = vadd.f32 %v719, %v1434
      %v1436 = vpop.f32.mrb[0].mxu0
      %v1437 = vadd.f32 %v723, %v1436
      %1438 = vmatprep.mubr.bf16.mxu0 %v535
      %1439 = vmatmul.mubr.bf16.gmra.mrb[0].mxu0 %v534
      %v1440 = vpop.f32.mrb[0].mxu0
      %v1441 = vadd.f32 %v719, %v1440
      %v1442 = vpop.f32.mrb[0].mxu0
      %v1443 = vadd.f32 %v723, %v1442
      %v1444 = vpop.f32.mrb[0].mxu0
      %v1445 = vadd.f32 %v719, %v1444
      %v1446 = vpop.f32.mrb[0].mxu0
      %v1447 = vadd.f32 %v723, %v1446
      %1448 = vmatprep.mubr.bf16.mxu0 %v539
      %1449 = vmatmul.mubr.bf16.gmra.mrb[0].mxu0 %v538
      %v1450 = vpop.f32.mrb[0].mxu0
      %v1451 = vadd.f32 %v719, %v1450
      %v1452 = vpop.f32.mrb[0].mxu0
      %v1453 = vadd.f32 %v723, %v1452
      %v1454 = vpop.f32.mrb[0].mxu0
      %v1455 = vadd.f32 %v719, %v1454
      %v1456 = vpop.f32.mrb[0].mxu0
      %v1457 = vadd.f32 %v723, %v1456
      %1458 = vmatprep.mubr.bf16.mxu0 %v543
      %1459 = vmatmul.mubr.bf16.gmra.mrb[0].mxu0 %v542
      %v1460 = vpop.f32.mrb[0].mxu0
      %v1461 = vadd.f32 %v719, %v1460
      %v1462 = vpop.f32.mrb[0].mxu0
      %v1463 = vadd.f32 %v723, %v1462
      %v1464 = vpop.f32.mrb[0].mxu0
      %v1465 = vadd.f32 %v719, %v1464
      %v1466 = vpop.f32.mrb[0].mxu0
      %v1467 = vadd.f32 %v723, %v1466
      %1468 = vmatprep.mubr.bf16.mxu0 %v547
      %1469 = vmatmul.mubr.bf16.gmra.mrb[0].mxu0 %v546
      %v1470 = vpop.f32.mrb[0].mxu0
      %v1471 = vadd.f32 %v719, %v1470
      %v1472 = vpop.f32.mrb[0].mxu0
      %v1473 = vadd.f32 %v723, %v1472
      %v1474 = vpop.f32.mrb[0].mxu0
      %v1475 = vadd.f32 %v719, %v1474
      %v1476 = vpop.f32.mrb[0].mxu0
      %v1477 = vadd.f32 %v723, %v1476
      %1478 = vmatprep.mubr.bf16.mxu0 %v551
      %1479 = vmatmul.mubr.bf16.gmra.mrb[0].mxu0 %v550
      %v1480 = vpop.f32.mrb[0].mxu0
      %v1481 = vadd.f32 %v719, %v1480
      %v1482 = vpop.f32.mrb[0].mxu0
      %v1483 = vadd.f32 %v723, %v1482
      %v1484 = vpop.f32.mrb[0].mxu0
      %v1485 = vadd.f32 %v719, %v1484
      %v1486 = vpop.f32.mrb[0].mxu0
      %v1487 = vadd.f32 %v723, %v1486
      %1488 = vmatprep.mubr.bf16.mxu0 %v555
      %1489 = vmatmul.mubr.bf16.gmra.mrb[0].mxu0 %v554
      %v1490 = vpop.f32.mrb[0].mxu0
      %v1491 = vadd.f32 %v719, %v1490
      %v1492 = vpop.f32.mrb[0].mxu0
      %v1493 = vadd.f32 %v723, %v1492
      %v1494 = vpop.f32.mrb[0].mxu0
      %v1495 = vadd.f32 %v719, %v1494
      %v1496 = vpop.f32.mrb[0].mxu0
      %v1497 = vadd.f32 %v723, %v1496
      %1498 = vmatprep.mubr.bf16.mxu0 %v559
      %1499 = vmatmul.mubr.bf16.gmra.mrb[0].mxu0 %v558
      %v1500 = vpop.f32.mrb[0].mxu0
      %v1501 = vadd.f32 %v719, %v1500
      %v1502 = vpop.f32.mrb[0].mxu0
      %v1503 = vadd.f32 %v723, %v1502
      %v1504 = vpop.f32.mrb[0].mxu0
      %v1505 = vadd.f32 %v719, %v1504
      %v1506 = vpop.f32.mrb[0].mxu0
      %v1507 = vadd.f32 %v723, %v1506
      %1508 = vmatprep.mubr.bf16.mxu0 %v563
      %1509 = vmatmul.mubr.bf16.gmra.mrb[0].mxu0 %v562
      %v1510 = vpop.f32.mrb[0].mxu0
      %v1511 = vadd.f32 %v719, %v1510
      %v1512 = vpop.f32.mrb[0].mxu0
      %v1513 = vadd.f32 %v723, %v1512
      %v1514 = vpop.f32.mrb[0].mxu0
      %v1515 = vadd.f32 %v719, %v1514
      %v1516 = vpop.f32.mrb[0].mxu0
      %v1517 = vadd.f32 %v723, %v1516
      %1518 = vmatprep.mubr.bf16.mxu0 %v567
      %1519 = vmatmul.mubr.bf16.gmra.mrb[0].mxu0 %v566
      %v1520 = vpop.f32.mrb[0].mxu0
      %v1521 = vadd.f32 %v719, %v1520
      %v1522 = vpop.f32.mrb[0].mxu0
      %v1523 = vadd.f32 %v723, %v1522
      %v1524 = vpop.f32.mrb[0].mxu0
      %v1525 = vadd.f32 %v719, %v1524
      %v1526 = vpop.f32.mrb[0].mxu0
      %v1527 = vadd.f32 %v723, %v1526
      %1528 = vmatprep.mubr.bf16.mxu0 %v571
      %1529 = vmatmul.mubr.bf16.gmra.mrb[0].mxu0 %v570
      %v1530 = vpop.f32.mrb[0].mxu0
      %v1531 = vadd.f32 %v719, %v1530
      %v1532 = vpop.f32.mrb[0].mxu0
      %v1533 = vadd.f32 %v723, %v1532
      %v1534 = vpop.f32.mrb[0].mxu0
      %v1535 = vadd.f32 %v719, %v1534
      %v1536 = vpop.f32.mrb[0].mxu0
      %v1537 = vadd.f32 %v723, %v1536
      %1538 = vmatprep.mubr.bf16.mxu0 %v575
      %1539 = vmatmul.mubr.bf16.gmra.mrb[0].mxu0 %v574
      %v1540 = vpop.f32.mrb[0].mxu0
      %v1541 = vadd.f32 %v719, %v1540
      %v1542 = vpop.f32.mrb[0].mxu0
      %v1543 = vadd.f32 %v723, %v1542
      %v1544 = vpop.f32.mrb[0].mxu0
      %v1545 = vadd.f32 %v719, %v1544
      %v1546 = vpop.f32.mrb[0].mxu0
      %v1547 = vadd.f32 %v723, %v1546
      %1548 = vmatprep.mubr.bf16.mxu0 %v579
      %1549 = vmatmul.mubr.bf16.gmra.mrb[0].mxu0 %v578
      %v1550 = vpop.f32.mrb[0].mxu0
      %v1551 = vadd.f32 %v719, %v1550
      %v1552 = vpop.f32.mrb[0].mxu0
      %v1553 = vadd.f32 %v723, %v1552
      %v1554 = vpop.f32.mrb[0].mxu0
      %v1555 = vadd.f32 %v719, %v1554
      %v1556 = vpop.f32.mrb[0].mxu0
      %v1557 = vadd.f32 %v723, %v1556
      %1558 = vmatprep.mubr.bf16.mxu0 %v583
      %1559 = vmatmul.mubr.bf16.gmra.mrb[0].mxu0 %v582
      %v1560 = vpop.f32.mrb[0].mxu0
      %v1561 = vadd.f32 %v719, %v1560
      %v1562 = vpop.f32.mrb[0].mxu0
      %v1563 = vadd.f32 %v723, %v1562
      %v1564 = vpop.f32.mrb[0].mxu0
      %v1565 = vadd.f32 %v719, %v1564
      %v1566 = vpop.f32.mrb[0].mxu0
      %v1567 = vadd.f32 %v723, %v1566
      %1568 = vdwg.mxu0
      %1569 = vmatprep.subr.bf16.mxu0 %v1185
      %1570 = vmatpush1.bf16.msra.mxu0 %v1184
      %1571 = vmatprep.subr.bf16.mxu0 %v1189
      %1572 = vmatpush1.bf16.msra.mxu0 %v1188
      %1573 = vmatprep.subr.bf16.mxu0 %v1193
      %1574 = vmatpush1.bf16.msra.mxu0 %v1192
      %1575 = vmatprep.subr.bf16.mxu0 %v1197
      %1576 = vmatpush1.bf16.msra.mxu0 %v1196
      %1577 = vmatprep.subr.bf16.mxu0 %v1201
      %1578 = vmatpush1.bf16.msra.mxu0 %v1200
      %1579 = vmatprep.subr.bf16.mxu0 %v1205
      %1580 = vmatpush1.bf16.msra.mxu0 %v1204
      %1581 = vmatprep.subr.bf16.mxu0 %v1209
      %1582 = vmatpush1.bf16.msra.mxu0 %v1208
      %1583 = vmatprep.subr.bf16.mxu0 %v1213
      %1584 = vmatpush1.bf16.msra.mxu0 %v1212
      %1585 = vmatprep.subr.bf16.mxu0 %v1217
      %1586 = vmatpush1.bf16.msra.mxu0 %v1216
      %1587 = vmatprep.subr.bf16.mxu0 %v1221
      %1588 = vmatpush1.bf16.msra.mxu0 %v1220
      %1589 = vmatprep.subr.bf16.mxu0 %v1225
      %1590 = vmatpush1.bf16.msra.mxu0 %v1224
      %1591 = vmatprep.subr.bf16.mxu0 %v1229
      %1592 = vmatpush1.bf16.msra.mxu0 %v1228
      %1593 = vmatprep.subr.bf16.mxu0 %v1233
      %1594 = vmatpush1.bf16.msra.mxu0 %v1232
      %1595 = vmatprep.subr.bf16.mxu0 %v1237
      %1596 = vmatpush1.bf16.msra.mxu0 %v1236
      %1597 = vmatprep.subr.bf16.mxu0 %v1241
      %1598 = vmatpush1.bf16.msra.mxu0 %v1240
      %1599 = vmatprep.subr.bf16.mxu0 %v1245
      %1600 = vmatpush1.bf16.msra.mxu0 %v1244
      %1601 = vmatprep.mubr.bf16.mxu0 %v525
      %1602 = vmatmul.mubr.bf16.gmra.mrb[0].mxu0 %v524
      %v1603 = vpop.f32.mrb[0].mxu0
      %v1604 = vadd.f32 %v1411, %v1603
      %v1605 = vpop.f32.mrb[0].mxu0
      %v1606 = vadd.f32 %v1413, %v1605
      %v1607 = vpop.f32.mrb[0].mxu0
      %v1608 = vadd.f32 %v1415, %v1607
      %v1609 = vpop.f32.mrb[0].mxu0
      %v1610 = vadd.f32 %v1417, %v1609
      %1611 = vmatprep.mubr.bf16.mxu0 %v529
      %1612 = vmatmul.mubr.bf16.gmra.mrb[0].mxu0 %v528
      %v1613 = vpop.f32.mrb[0].mxu0
      %v1614 = vadd.f32 %v1421, %v1613
      %v1615 = vpop.f32.mrb[0].mxu0
      %v1616 = vadd.f32 %v1423, %v1615
      %v1617 = vpop.f32.mrb[0].mxu0
      %v1618 = vadd.f32 %v1425, %v1617
      %v1619 = vpop.f32.mrb[0].mxu0
      %v1620 = vadd.f32 %v1427, %v1619
      %1621 = vmatprep.mubr.bf16.mxu0 %v533
      %1622 = vmatmul.mubr.bf16.gmra.mrb[0].mxu0 %v532
      %v1623 = vpop.f32.mrb[0].mxu0
      %v1624 = vadd.f32 %v1431, %v1623
      %v1625 = vpop.f32.mrb[0].mxu0
      %v1626 = vadd.f32 %v1433, %v1625
      %v1627 = vpop.f32.mrb[0].mxu0
      %v1628 = vadd.f32 %v1435, %v1627
      %v1629 = vpop.f32.mrb[0].mxu0
      %v1630 = vadd.f32 %v1437, %v1629
      %1631 = vmatprep.mubr.bf16.mxu0 %v537
      %1632 = vmatmul.mubr.bf16.gmra.mrb[0].mxu0 %v536
      %v1633 = vpop.f32.mrb[0].mxu0
      %v1634 = vadd.f32 %v1441, %v1633
      %v1635 = vpop.f32.mrb[0].mxu0
      %v1636 = vadd.f32 %v1443, %v1635
      %v1637 = vpop.f32.mrb[0].mxu0
      %v1638 = vadd.f32 %v1445, %v1637
      %v1639 = vpop.f32.mrb[0].mxu0
      %v1640 = vadd.f32 %v1447, %v1639
      %1641 = vmatprep.mubr.bf16.mxu0 %v541
      %1642 = vmatmul.mubr.bf16.gmra.mrb[0].mxu0 %v540
      %v1643 = vpop.f32.mrb[0].mxu0
      %v1644 = vadd.f32 %v1451, %v1643
      %v1645 = vpop.f32.mrb[0].mxu0
      %v1646 = vadd.f32 %v1453, %v1645
      %v1647 = vpop.f32.mrb[0].mxu0
      %v1648 = vadd.f32 %v1455, %v1647
      %v1649 = vpop.f32.mrb[0].mxu0
      %v1650 = vadd.f32 %v1457, %v1649
      %1651 = vmatprep.mubr.bf16.mxu0 %v545
      %1652 = vmatmul.mubr.bf16.gmra.mrb[0].mxu0 %v544
      %v1653 = vpop.f32.mrb[0].mxu0
      %v1654 = vadd.f32 %v1461, %v1653
      %v1655 = vpop.f32.mrb[0].mxu0
      %v1656 = vadd.f32 %v1463, %v1655
      %v1657 = vpop.f32.mrb[0].mxu0
      %v1658 = vadd.f32 %v1465, %v1657
      %v1659 = vpop.f32.mrb[0].mxu0
      %v1660 = vadd.f32 %v1467, %v1659
      %1661 = vmatprep.mubr.bf16.mxu0 %v549
      %1662 = vmatmul.mubr.bf16.gmra.mrb[0].mxu0 %v548
      %v1663 = vpop.f32.mrb[0].mxu0
      %v1664 = vadd.f32 %v1471, %v1663
      %v1665 = vpop.f32.mrb[0].mxu0
      %v1666 = vadd.f32 %v1473, %v1665
      %v1667 = vpop.f32.mrb[0].mxu0
      %v1668 = vadd.f32 %v1475, %v1667
      %v1669 = vpop.f32.mrb[0].mxu0
      %v1670 = vadd.f32 %v1477, %v1669
      %1671 = vmatprep.mubr.bf16.mxu0 %v553
      %1672 = vmatmul.mubr.bf16.gmra.mrb[0].mxu0 %v552
      %v1673 = vpop.f32.mrb[0].mxu0
      %v1674 = vadd.f32 %v1481, %v1673
      %v1675 = vpop.f32.mrb[0].mxu0
      %v1676 = vadd.f32 %v1483, %v1675
      %v1677 = vpop.f32.mrb[0].mxu0
      %v1678 = vadd.f32 %v1485, %v1677
      %v1679 = vpop.f32.mrb[0].mxu0
      %v1680 = vadd.f32 %v1487, %v1679
      %1681 = vmatprep.mubr.bf16.mxu0 %v557
      %1682 = vmatmul.mubr.bf16.gmra.mrb[0].mxu0 %v556
      %v1683 = vpop.f32.mrb[0].mxu0
      %v1684 = vadd.f32 %v1491, %v1683
      %v1685 = vpop.f32.mrb[0].mxu0
      %v1686 = vadd.f32 %v1493, %v1685
      %v1687 = vpop.f32.mrb[0].mxu0
      %v1688 = vadd.f32 %v1495, %v1687
      %v1689 = vpop.f32.mrb[0].mxu0
      %v1690 = vadd.f32 %v1497, %v1689
      %1691 = vmatprep.mubr.bf16.mxu0 %v561
      %1692 = vmatmul.mubr.bf16.gmra.mrb[0].mxu0 %v560
      %v1693 = vpop.f32.mrb[0].mxu0
      %v1694 = vadd.f32 %v1501, %v1693
      %v1695 = vpop.f32.mrb[0].mxu0
      %v1696 = vadd.f32 %v1503, %v1695
      %v1697 = vpop.f32.mrb[0].mxu0
      %v1698 = vadd.f32 %v1505, %v1697
      %v1699 = vpop.f32.mrb[0].mxu0
      %v1700 = vadd.f32 %v1507, %v1699
      %1701 = vmatprep.mubr.bf16.mxu0 %v565
      %1702 = vmatmul.mubr.bf16.gmra.mrb[0].mxu0 %v564
      %v1703 = vpop.f32.mrb[0].mxu0
      %v1704 = vadd.f32 %v1511, %v1703
      %v1705 = vpop.f32.mrb[0].mxu0
      %v1706 = vadd.f32 %v1513, %v1705
      %v1707 = vpop.f32.mrb[0].mxu0
      %v1708 = vadd.f32 %v1515, %v1707
      %v1709 = vpop.f32.mrb[0].mxu0
      %v1710 = vadd.f32 %v1517, %v1709
      %1711 = vmatprep.mubr.bf16.mxu0 %v569
      %1712 = vmatmul.mubr.bf16.gmra.mrb[0].mxu0 %v568
      %v1713 = vpop.f32.mrb[0].mxu0
      %v1714 = vadd.f32 %v1521, %v1713
      %v1715 = vpop.f32.mrb[0].mxu0
      %v1716 = vadd.f32 %v1523, %v1715
      %v1717 = vpop.f32.mrb[0].mxu0
      %v1718 = vadd.f32 %v1525, %v1717
      %v1719 = vpop.f32.mrb[0].mxu0
      %v1720 = vadd.f32 %v1527, %v1719
      %1721 = vmatprep.mubr.bf16.mxu0 %v573
      %1722 = vmatmul.mubr.bf16.gmra.mrb[0].mxu0 %v572
      %v1723 = vpop.f32.mrb[0].mxu0
      %v1724 = vadd.f32 %v1531, %v1723
      %v1725 = vpop.f32.mrb[0].mxu0
      %v1726 = vadd.f32 %v1533, %v1725
      %v1727 = vpop.f32.mrb[0].mxu0
      %v1728 = vadd.f32 %v1535, %v1727
      %v1729 = vpop.f32.mrb[0].mxu0
      %v1730 = vadd.f32 %v1537, %v1729
      %1731 = vmatprep.mubr.bf16.mxu0 %v577
      %1732 = vmatmul.mubr.bf16.gmra.mrb[0].mxu0 %v576
      %v1733 = vpop.f32.mrb[0].mxu0
      %v1734 = vadd.f32 %v1541, %v1733
      %v1735 = vpop.f32.mrb[0].mxu0
      %v1736 = vadd.f32 %v1543, %v1735
      %v1737 = vpop.f32.mrb[0].mxu0
      %v1738 = vadd.f32 %v1545, %v1737
      %v1739 = vpop.f32.mrb[0].mxu0
      %v1740 = vadd.f32 %v1547, %v1739
      %1741 = vmatprep.mubr.bf16.mxu0 %v581
      %1742 = vmatmul.mubr.bf16.gmra.mrb[0].mxu0 %v580
      %v1743 = vpop.f32.mrb[0].mxu0
      %v1744 = vadd.f32 %v1551, %v1743
      %v1745 = vpop.f32.mrb[0].mxu0
      %v1746 = vadd.f32 %v1553, %v1745
      %v1747 = vpop.f32.mrb[0].mxu0
      %v1748 = vadd.f32 %v1555, %v1747
      %v1749 = vpop.f32.mrb[0].mxu0
      %v1750 = vadd.f32 %v1557, %v1749
      %1751 = vmatprep.mubr.bf16.mxu0 %v585
      %1752 = vmatmul.mubr.bf16.gmra.mrb[0].mxu0 %v584
      %v1753 = vpop.f32.mrb[0].mxu0
      %v1754 = vadd.f32 %v1561, %v1753
      %v1755 = vpop.f32.mrb[0].mxu0
      %v1756 = vadd.f32 %v1563, %v1755
      %v1757 = vpop.f32.mrb[0].mxu0
      %v1758 = vadd.f32 %v1565, %v1757
      %v1759 = vpop.f32.mrb[0].mxu0
      %v1760 = vadd.f32 %v1567, %v1759
      %1761 = vdwg.mxu0
      %1762 = vmatprep.subr.bf16.mxu0 %v1123
      %1763 = vmatpush1.bf16.msra.mxu0 %v1122
      %1764 = vmatprep.subr.bf16.mxu0 %v1127
      %1765 = vmatpush1.bf16.msra.mxu0 %v1126
      %1766 = vmatprep.subr.bf16.mxu0 %v1131
      %1767 = vmatpush1.bf16.msra.mxu0 %v1130
      %1768 = vmatprep.subr.bf16.mxu0 %v1135
      %1769 = vmatpush1.bf16.msra.mxu0 %v1134
      %1770 = vmatprep.subr.bf16.mxu0 %v1139
      %1771 = vmatpush1.bf16.msra.mxu0 %v1138
      %1772 = vmatprep.subr.bf16.mxu0 %v1143
      %1773 = vmatpush1.bf16.msra.mxu0 %v1142
      %1774 = vmatprep.subr.bf16.mxu0 %v1147
      %1775 = vmatpush1.bf16.msra.mxu0 %v1146
      %1776 = vmatprep.subr.bf16.mxu0 %v1151
      %1777 = vmatpush1.bf16.msra.mxu0 %v1150
      %1778 = vmatprep.subr.bf16.mxu0 %v1155
      %1779 = vmatpush1.bf16.msra.mxu0 %v1154
      %1780 = vmatprep.subr.bf16.mxu0 %v1159
      %1781 = vmatpush1.bf16.msra.mxu0 %v1158
      %1782 = vmatprep.subr.bf16.mxu0 %v1163
      %1783 = vmatpush1.bf16.msra.mxu0 %v1162
      %1784 = vmatprep.subr.bf16.mxu0 %v1167
      %1785 = vmatpush1.bf16.msra.mxu0 %v1166
      %1786 = vmatprep.subr.bf16.mxu0 %v1171
      %1787 = vmatpush1.bf16.msra.mxu0 %v1170
      %1788 = vmatprep.subr.bf16.mxu0 %v1175
      %1789 = vmatpush1.bf16.msra.mxu0 %v1174
      %1790 = vmatprep.subr.bf16.mxu0 %v1179
      %1791 = vmatpush1.bf16.msra.mxu0 %v1178
      %1792 = vmatprep.subr.bf16.mxu0 %v1183
      %1793 = vmatpush1.bf16.msra.mxu0 %v1182
      %1794 = vmatprep.mubr.bf16.mxu0 %v523
      %1795 = vmatmul.mubr.bf16.gmra.mrb[0].mxu0 %v522
      %v1796 = vpop.f32.mrb[0].mxu0
      %v1797 = vadd.f32 %v727, %v1796
      %v1798 = vpop.f32.mrb[0].mxu0
      %v1799 = vadd.f32 %v731, %v1798
      %v1800 = vpop.f32.mrb[0].mxu0
      %v1801 = vadd.f32 %v727, %v1800
      %v1802 = vpop.f32.mrb[0].mxu0
      %v1803 = vadd.f32 %v731, %v1802
      %1804 = vmatprep.mubr.bf16.mxu0 %v527
      %1805 = vmatmul.mubr.bf16.gmra.mrb[0].mxu0 %v526
      %v1806 = vpop.f32.mrb[0].mxu0
      %v1807 = vadd.f32 %v727, %v1806
      %v1808 = vpop.f32.mrb[0].mxu0
      %v1809 = vadd.f32 %v731, %v1808
      %v1810 = vpop.f32.mrb[0].mxu0
      %v1811 = vadd.f32 %v727, %v1810
      %v1812 = vpop.f32.mrb[0].mxu0
      %v1813 = vadd.f32 %v731, %v1812
      %1814 = vmatprep.mubr.bf16.mxu0 %v531
      %1815 = vmatmul.mubr.bf16.gmra.mrb[0].mxu0 %v530
      %v1816 = vpop.f32.mrb[0].mxu0
      %v1817 = vadd.f32 %v727, %v1816
      %v1818 = vpop.f32.mrb[0].mxu0
      %v1819 = vadd.f32 %v731, %v1818
      %v1820 = vpop.f32.mrb[0].mxu0
      %v1821 = vadd.f32 %v727, %v1820
      %v1822 = vpop.f32.mrb[0].mxu0
      %v1823 = vadd.f32 %v731, %v1822
      %1824 = vmatprep.mubr.bf16.mxu0 %v535
      %1825 = vmatmul.mubr.bf16.gmra.mrb[0].mxu0 %v534
      %v1826 = vpop.f32.mrb[0].mxu0
      %v1827 = vadd.f32 %v727, %v1826
      %v1828 = vpop.f32.mrb[0].mxu0
      %v1829 = vadd.f32 %v731, %v1828
      %v1830 = vpop.f32.mrb[0].mxu0
      %v1831 = vadd.f32 %v727, %v1830
      %v1832 = vpop.f32.mrb[0].mxu0
      %v1833 = vadd.f32 %v731, %v1832
      %1834 = vmatprep.mubr.bf16.mxu0 %v539
      %1835 = vmatmul.mubr.bf16.gmra.mrb[0].mxu0 %v538
      %v1836 = vpop.f32.mrb[0].mxu0
      %v1837 = vadd.f32 %v727, %v1836
      %v1838 = vpop.f32.mrb[0].mxu0
      %v1839 = vadd.f32 %v731, %v1838
      %v1840 = vpop.f32.mrb[0].mxu0
      %v1841 = vadd.f32 %v727, %v1840
      %v1842 = vpop.f32.mrb[0].mxu0
      %v1843 = vadd.f32 %v731, %v1842
      %1844 = vmatprep.mubr.bf16.mxu0 %v543
      %1845 = vmatmul.mubr.bf16.gmra.mrb[0].mxu0 %v542
      %v1846 = vpop.f32.mrb[0].mxu0
      %v1847 = vadd.f32 %v727, %v1846
      %v1848 = vpop.f32.mrb[0].mxu0
      %v1849 = vadd.f32 %v731, %v1848
      %v1850 = vpop.f32.mrb[0].mxu0
      %v1851 = vadd.f32 %v727, %v1850
      %v1852 = vpop.f32.mrb[0].mxu0
      %v1853 = vadd.f32 %v731, %v1852
      %1854 = vmatprep.mubr.bf16.mxu0 %v547
      %1855 = vmatmul.mubr.bf16.gmra.mrb[0].mxu0 %v546
      %v1856 = vpop.f32.mrb[0].mxu0
      %v1857 = vadd.f32 %v727, %v1856
      %v1858 = vpop.f32.mrb[0].mxu0
      %v1859 = vadd.f32 %v731, %v1858
      %v1860 = vpop.f32.mrb[0].mxu0
      %v1861 = vadd.f32 %v727, %v1860
      %v1862 = vpop.f32.mrb[0].mxu0
      %v1863 = vadd.f32 %v731, %v1862
      %1864 = vmatprep.mubr.bf16.mxu0 %v551
      %1865 = vmatmul.mubr.bf16.gmra.mrb[0].mxu0 %v550
      %v1866 = vpop.f32.mrb[0].mxu0
      %v1867 = vadd.f32 %v727, %v1866
      %v1868 = vpop.f32.mrb[0].mxu0
      %v1869 = vadd.f32 %v731, %v1868
      %v1870 = vpop.f32.mrb[0].mxu0
      %v1871 = vadd.f32 %v727, %v1870
      %v1872 = vpop.f32.mrb[0].mxu0
      %v1873 = vadd.f32 %v731, %v1872
      %1874 = vmatprep.mubr.bf16.mxu0 %v555
      %1875 = vmatmul.mubr.bf16.gmra.mrb[0].mxu0 %v554
      %v1876 = vpop.f32.mrb[0].mxu0
      %v1877 = vadd.f32 %v727, %v1876
      %v1878 = vpop.f32.mrb[0].mxu0
      %v1879 = vadd.f32 %v731, %v1878
      %v1880 = vpop.f32.mrb[0].mxu0
      %v1881 = vadd.f32 %v727, %v1880
      %v1882 = vpop.f32.mrb[0].mxu0
      %v1883 = vadd.f32 %v731, %v1882
      %1884 = vmatprep.mubr.bf16.mxu0 %v559
      %1885 = vmatmul.mubr.bf16.gmra.mrb[0].mxu0 %v558
      %v1886 = vpop.f32.mrb[0].mxu0
      %v1887 = vadd.f32 %v727, %v1886
      %v1888 = vpop.f32.mrb[0].mxu0
      %v1889 = vadd.f32 %v731, %v1888
      %v1890 = vpop.f32.mrb[0].mxu0
      %v1891 = vadd.f32 %v727, %v1890
      %v1892 = vpop.f32.mrb[0].mxu0
      %v1893 = vadd.f32 %v731, %v1892
      %1894 = vmatprep.mubr.bf16.mxu0 %v563
      %1895 = vmatmul.mubr.bf16.gmra.mrb[0].mxu0 %v562
      %v1896 = vpop.f32.mrb[0].mxu0
      %v1897 = vadd.f32 %v727, %v1896
      %v1898 = vpop.f32.mrb[0].mxu0
      %v1899 = vadd.f32 %v731, %v1898
      %v1900 = vpop.f32.mrb[0].mxu0
      %v1901 = vadd.f32 %v727, %v1900
      %v1902 = vpop.f32.mrb[0].mxu0
      %v1903 = vadd.f32 %v731, %v1902
      %1904 = vmatprep.mubr.bf16.mxu0 %v567
      %1905 = vmatmul.mubr.bf16.gmra.mrb[0].mxu0 %v566
      %v1906 = vpop.f32.mrb[0].mxu0
      %v1907 = vadd.f32 %v727, %v1906
      %v1908 = vpop.f32.mrb[0].mxu0
      %v1909 = vadd.f32 %v731, %v1908
      %v1910 = vpop.f32.mrb[0].mxu0
      %v1911 = vadd.f32 %v727, %v1910
      %v1912 = vpop.f32.mrb[0].mxu0
      %v1913 = vadd.f32 %v731, %v1912
      %1914 = vmatprep.mubr.bf16.mxu0 %v571
      %1915 = vmatmul.mubr.bf16.gmra.mrb[0].mxu0 %v570
      %v1916 = vpop.f32.mrb[0].mxu0
      %v1917 = vadd.f32 %v727, %v1916
      %v1918 = vpop.f32.mrb[0].mxu0
      %v1919 = vadd.f32 %v731, %v1918
      %v1920 = vpop.f32.mrb[0].mxu0
      %v1921 = vadd.f32 %v727, %v1920
      %v1922 = vpop.f32.mrb[0].mxu0
      %v1923 = vadd.f32 %v731, %v1922
      %1924 = vmatprep.mubr.bf16.mxu0 %v575
      %1925 = vmatmul.mubr.bf16.gmra.mrb[0].mxu0 %v574
      %v1926 = vpop.f32.mrb[0].mxu0
      %v1927 = vadd.f32 %v727, %v1926
      %v1928 = vpop.f32.mrb[0].mxu0
      %v1929 = vadd.f32 %v731, %v1928
      %v1930 = vpop.f32.mrb[0].mxu0
      %v1931 = vadd.f32 %v727, %v1930
      %v1932 = vpop.f32.mrb[0].mxu0
      %v1933 = vadd.f32 %v731, %v1932
      %1934 = vmatprep.mubr.bf16.mxu0 %v579
      %1935 = vmatmul.mubr.bf16.gmra.mrb[0].mxu0 %v578
      %v1936 = vpop.f32.mrb[0].mxu0
      %v1937 = vadd.f32 %v727, %v1936
      %v1938 = vpop.f32.mrb[0].mxu0
      %v1939 = vadd.f32 %v731, %v1938
      %v1940 = vpop.f32.mrb[0].mxu0
      %v1941 = vadd.f32 %v727, %v1940
      %v1942 = vpop.f32.mrb[0].mxu0
      %v1943 = vadd.f32 %v731, %v1942
      %1944 = vmatprep.mubr.bf16.mxu0 %v583
      %1945 = vmatmul.mubr.bf16.gmra.mrb[0].mxu0 %v582
      %v1946 = vpop.f32.mrb[0].mxu0
      %v1947 = vadd.f32 %v727, %v1946
      %v1948 = vpop.f32.mrb[0].mxu0
      %v1949 = vadd.f32 %v731, %v1948
      %v1950 = vpop.f32.mrb[0].mxu0
      %v1951 = vadd.f32 %v727, %v1950
      %v1952 = vpop.f32.mrb[0].mxu0
      %v1953 = vadd.f32 %v731, %v1952
      %1954 = vdwg.mxu0
      %1955 = vmatprep.subr.bf16.mxu0 %v1187
      %1956 = vmatpush1.bf16.msra.mxu0 %v1186
      %1957 = vmatprep.subr.bf16.mxu0 %v1191
      %1958 = vmatpush1.bf16.msra.mxu0 %v1190
      %1959 = vmatprep.subr.bf16.mxu0 %v1195
      %1960 = vmatpush1.bf16.msra.mxu0 %v1194
      %1961 = vmatprep.subr.bf16.mxu0 %v1199
      %1962 = vmatpush1.bf16.msra.mxu0 %v1198
      %1963 = vmatprep.subr.bf16.mxu0 %v1203
      %1964 = vmatpush1.bf16.msra.mxu0 %v1202
      %1965 = vmatprep.subr.bf16.mxu0 %v1207
      %1966 = vmatpush1.bf16.msra.mxu0 %v1206
      %1967 = vmatprep.subr.bf16.mxu0 %v1211
      %1968 = vmatpush1.bf16.msra.mxu0 %v1210
      %1969 = vmatprep.subr.bf16.mxu0 %v1215
      %1970 = vmatpush1.bf16.msra.mxu0 %v1214
      %1971 = vmatprep.subr.bf16.mxu0 %v1219
      %1972 = vmatpush1.bf16.msra.mxu0 %v1218
      %1973 = vmatprep.subr.bf16.mxu0 %v1223
      %1974 = vmatpush1.bf16.msra.mxu0 %v1222
      %1975 = vmatprep.subr.bf16.mxu0 %v1227
      %1976 = vmatpush1.bf16.msra.mxu0 %v1226
      %1977 = vmatprep.subr.bf16.mxu0 %v1231
      %1978 = vmatpush1.bf16.msra.mxu0 %v1230
      %1979 = vmatprep.subr.bf16.mxu0 %v1235
      %1980 = vmatpush1.bf16.msra.mxu0 %v1234
      %1981 = vmatprep.subr.bf16.mxu0 %v1239
      %1982 = vmatpush1.bf16.msra.mxu0 %v1238
      %1983 = vmatprep.subr.bf16.mxu0 %v1243
      %1984 = vmatpush1.bf16.msra.mxu0 %v1242
      %1985 = vmatprep.subr.bf16.mxu0 %v1247
      %1986 = vmatpush1.bf16.msra.mxu0 %v1246
      %1987 = vmatprep.mubr.bf16.mxu0 %v525
      %1988 = vmatmul.mubr.bf16.gmra.mrb[0].mxu0 %v524
      %v1989 = vpop.f32.mrb[0].mxu0
      %v1990 = vadd.f32 %v1797, %v1989
      %v1991 = vpop.f32.mrb[0].mxu0
      %v1992 = vadd.f32 %v1799, %v1991
      %v1993 = vpop.f32.mrb[0].mxu0
      %v1994 = vadd.f32 %v1801, %v1993
      %v1995 = vpop.f32.mrb[0].mxu0
      %v1996 = vadd.f32 %v1803, %v1995
      %1997 = vmatprep.mubr.bf16.mxu0 %v529
      %1998 = vmatmul.mubr.bf16.gmra.mrb[0].mxu0 %v528
      %v1999 = vpop.f32.mrb[0].mxu0
      %v2000 = vadd.f32 %v1807, %v1999
      %v2001 = vpop.f32.mrb[0].mxu0
      %v2002 = vadd.f32 %v1809, %v2001
      %v2003 = vpop.f32.mrb[0].mxu0
      %v2004 = vadd.f32 %v1811, %v2003
      %v2005 = vpop.f32.mrb[0].mxu0
      %v2006 = vadd.f32 %v1813, %v2005
      %2007 = vmatprep.mubr.bf16.mxu0 %v533
      %2008 = vmatmul.mubr.bf16.gmra.mrb[0].mxu0 %v532
      %v2009 = vpop.f32.mrb[0].mxu0
      %v2010 = vadd.f32 %v1817, %v2009
      %v2011 = vpop.f32.mrb[0].mxu0
      %v2012 = vadd.f32 %v1819, %v2011
      %v2013 = vpop.f32.mrb[0].mxu0
      %v2014 = vadd.f32 %v1821, %v2013
      %v2015 = vpop.f32.mrb[0].mxu0
      %v2016 = vadd.f32 %v1823, %v2015
      %2017 = vmatprep.mubr.bf16.mxu0 %v537
      %2018 = vmatmul.mubr.bf16.gmra.mrb[0].mxu0 %v536
      %v2019 = vpop.f32.mrb[0].mxu0
      %v2020 = vadd.f32 %v1827, %v2019
      %v2021 = vpop.f32.mrb[0].mxu0
      %v2022 = vadd.f32 %v1829, %v2021
      %v2023 = vpop.f32.mrb[0].mxu0
      %v2024 = vadd.f32 %v1831, %v2023
      %v2025 = vpop.f32.mrb[0].mxu0
      %v2026 = vadd.f32 %v1833, %v2025
      %2027 = vmatprep.mubr.bf16.mxu0 %v541
      %2028 = vmatmul.mubr.bf16.gmra.mrb[0].mxu0 %v540
      %v2029 = vpop.f32.mrb[0].mxu0
      %v2030 = vadd.f32 %v1837, %v2029
      %v2031 = vpop.f32.mrb[0].mxu0
      %v2032 = vadd.f32 %v1839, %v2031
      %v2033 = vpop.f32.mrb[0].mxu0
      %v2034 = vadd.f32 %v1841, %v2033
      %v2035 = vpop.f32.mrb[0].mxu0
      %v2036 = vadd.f32 %v1843, %v2035
      %2037 = vmatprep.mubr.bf16.mxu0 %v545
      %2038 = vmatmul.mubr.bf16.gmra.mrb[0].mxu0 %v544
      %v2039 = vpop.f32.mrb[0].mxu0
      %v2040 = vadd.f32 %v1847, %v2039
      %v2041 = vpop.f32.mrb[0].mxu0
      %v2042 = vadd.f32 %v1849, %v2041
      %v2043 = vpop.f32.mrb[0].mxu0
      %v2044 = vadd.f32 %v1851, %v2043
      %v2045 = vpop.f32.mrb[0].mxu0
      %v2046 = vadd.f32 %v1853, %v2045
      %2047 = vmatprep.mubr.bf16.mxu0 %v549
      %2048 = vmatmul.mubr.bf16.gmra.mrb[0].mxu0 %v548
      %v2049 = vpop.f32.mrb[0].mxu0
      %v2050 = vadd.f32 %v1857, %v2049
      %v2051 = vpop.f32.mrb[0].mxu0
      %v2052 = vadd.f32 %v1859, %v2051
      %v2053 = vpop.f32.mrb[0].mxu0
      %v2054 = vadd.f32 %v1861, %v2053
      %v2055 = vpop.f32.mrb[0].mxu0
      %v2056 = vadd.f32 %v1863, %v2055
      %2057 = vmatprep.mubr.bf16.mxu0 %v553
      %2058 = vmatmul.mubr.bf16.gmra.mrb[0].mxu0 %v552
      %v2059 = vpop.f32.mrb[0].mxu0
      %v2060 = vadd.f32 %v1867, %v2059
      %v2061 = vpop.f32.mrb[0].mxu0
      %v2062 = vadd.f32 %v1869, %v2061
      %v2063 = vpop.f32.mrb[0].mxu0
      %v2064 = vadd.f32 %v1871, %v2063
      %v2065 = vpop.f32.mrb[0].mxu0
      %v2066 = vadd.f32 %v1873, %v2065
      %2067 = vmatprep.mubr.bf16.mxu0 %v557
      %2068 = vmatmul.mubr.bf16.gmra.mrb[0].mxu0 %v556
      %v2069 = vpop.f32.mrb[0].mxu0
      %v2070 = vadd.f32 %v1877, %v2069
      %v2071 = vpop.f32.mrb[0].mxu0
      %v2072 = vadd.f32 %v1879, %v2071
      %v2073 = vpop.f32.mrb[0].mxu0
      %v2074 = vadd.f32 %v1881, %v2073
      %v2075 = vpop.f32.mrb[0].mxu0
      %v2076 = vadd.f32 %v1883, %v2075
      %2077 = vmatprep.mubr.bf16.mxu0 %v561
      %2078 = vmatmul.mubr.bf16.gmra.mrb[0].mxu0 %v560
      %v2079 = vpop.f32.mrb[0].mxu0
      %v2080 = vadd.f32 %v1887, %v2079
      %v2081 = vpop.f32.mrb[0].mxu0
      %v2082 = vadd.f32 %v1889, %v2081
      %v2083 = vpop.f32.mrb[0].mxu0
      %v2084 = vadd.f32 %v1891, %v2083
      %v2085 = vpop.f32.mrb[0].mxu0
      %v2086 = vadd.f32 %v1893, %v2085
      %2087 = vmatprep.mubr.bf16.mxu0 %v565
      %2088 = vmatmul.mubr.bf16.gmra.mrb[0].mxu0 %v564
      %v2089 = vpop.f32.mrb[0].mxu0
      %v2090 = vadd.f32 %v1897, %v2089
      %v2091 = vpop.f32.mrb[0].mxu0
      %v2092 = vadd.f32 %v1899, %v2091
      %v2093 = vpop.f32.mrb[0].mxu0
      %v2094 = vadd.f32 %v1901, %v2093
      %v2095 = vpop.f32.mrb[0].mxu0
      %v2096 = vadd.f32 %v1903, %v2095
      %2097 = vmatprep.mubr.bf16.mxu0 %v569
      %2098 = vmatmul.mubr.bf16.gmra.mrb[0].mxu0 %v568
      %v2099 = vpop.f32.mrb[0].mxu0
      %v2100 = vadd.f32 %v1907, %v2099
      %v2101 = vpop.f32.mrb[0].mxu0
      %v2102 = vadd.f32 %v1909, %v2101
      %v2103 = vpop.f32.mrb[0].mxu0
      %v2104 = vadd.f32 %v1911, %v2103
      %v2105 = vpop.f32.mrb[0].mxu0
      %v2106 = vadd.f32 %v1913, %v2105
      %2107 = vmatprep.mubr.bf16.mxu0 %v573
      %2108 = vmatmul.mubr.bf16.gmra.mrb[0].mxu0 %v572
      %v2109 = vpop.f32.mrb[0].mxu0
      %v2110 = vadd.f32 %v1917, %v2109
      %v2111 = vpop.f32.mrb[0].mxu0
      %v2112 = vadd.f32 %v1919, %v2111
      %v2113 = vpop.f32.mrb[0].mxu0
      %v2114 = vadd.f32 %v1921, %v2113
      %v2115 = vpop.f32.mrb[0].mxu0
      %v2116 = vadd.f32 %v1923, %v2115
      %2117 = vmatprep.mubr.bf16.mxu0 %v577
      %2118 = vmatmul.mubr.bf16.gmra.mrb[0].mxu0 %v576
      %v2119 = vpop.f32.mrb[0].mxu0
      %v2120 = vadd.f32 %v1927, %v2119
      %v2121 = vpop.f32.mrb[0].mxu0
      %v2122 = vadd.f32 %v1929, %v2121
      %v2123 = vpop.f32.mrb[0].mxu0
      %v2124 = vadd.f32 %v1931, %v2123
      %v2125 = vpop.f32.mrb[0].mxu0
      %v2126 = vadd.f32 %v1933, %v2125
      %2127 = vmatprep.mubr.bf16.mxu0 %v581
      %2128 = vmatmul.mubr.bf16.gmra.mrb[0].mxu0 %v580
      %v2129 = vpop.f32.mrb[0].mxu0
      %v2130 = vadd.f32 %v1937, %v2129
      %v2131 = vpop.f32.mrb[0].mxu0
      %v2132 = vadd.f32 %v1939, %v2131
      %v2133 = vpop.f32.mrb[0].mxu0
      %v2134 = vadd.f32 %v1941, %v2133
      %v2135 = vpop.f32.mrb[0].mxu0
      %v2136 = vadd.f32 %v1943, %v2135
      %2137 = vmatprep.mubr.bf16.mxu0 %v585
      %2138 = vmatmul.mubr.bf16.gmra.mrb[0].mxu0 %v584
      %v2139 = vpop.f32.mrb[0].mxu0
      %v2140 = vadd.f32 %v1947, %v2139
      %v2141 = vpop.f32.mrb[0].mxu0
      %v2142 = vadd.f32 %v1949, %v2141
      %v2143 = vpop.f32.mrb[0].mxu0
      %v2144 = vadd.f32 %v1951, %v2143
      %v2145 = vpop.f32.mrb[0].mxu0
      %v2146 = vadd.f32 %v1953, %v2145
      %2147 = vdwg.mxu0
      %v2148 = vmax.f32 %v1604, 0.0
      %v2149 = vmax.f32 %v1606, 0.0
      %v2150 = vmax.f32 %v1990, 0.0
      %v2151 = vmax.f32 %v1992, 0.0
      %v2152 = vmax.f32 %v1608, 0.0
      %v2153 = vmax.f32 %v1610, 0.0
      %v2154 = vmax.f32 %v1994, 0.0
      %v2155 = vmax.f32 %v1996, 0.0
      %v2156 = vmax.f32 %v1614, 0.0
      %v2157 = vmax.f32 %v1616, 0.0
      %v2158 = vmax.f32 %v2000, 0.0
      %v2159 = vmax.f32 %v2002, 0.0
      %v2160 = vmax.f32 %v1618, 0.0
      %v2161 = vmax.f32 %v1620, 0.0
      %v2162 = vmax.f32 %v2004, 0.0
      %v2163 = vmax.f32 %v2006, 0.0
      %v2164 = vmax.f32 %v1624, 0.0
      %v2165 = vmax.f32 %v1626, 0.0
      %v2166 = vmax.f32 %v2010, 0.0
      %v2167 = vmax.f32 %v2012, 0.0
      %v2168 = vmax.f32 %v1628, 0.0
      %v2169 = vmax.f32 %v1630, 0.0
      %v2170 = vmax.f32 %v2014, 0.0
      %v2171 = vmax.f32 %v2016, 0.0
      %v2172 = vmax.f32 %v1634, 0.0
      %v2173 = vmax.f32 %v1636, 0.0
      %v2174 = vmax.f32 %v2020, 0.0
      %v2175 = vmax.f32 %v2022, 0.0
      %v2176 = vmax.f32 %v1638, 0.0
      %v2177 = vmax.f32 %v1640, 0.0
      %v2178 = vmax.f32 %v2024, 0.0
      %v2179 = vmax.f32 %v2026, 0.0
      %v2180 = vmax.f32 %v1644, 0.0
      %v2181 = vmax.f32 %v1646, 0.0
      %v2182 = vmax.f32 %v2030, 0.0
      %v2183 = vmax.f32 %v2032, 0.0
      %v2184 = vmax.f32 %v1648, 0.0
      %v2185 = vmax.f32 %v1650, 0.0
      %v2186 = vmax.f32 %v2034, 0.0
      %v2187 = vmax.f32 %v2036, 0.0
      %v2188 = vmax.f32 %v1654, 0.0
      %v2189 = vmax.f32 %v1656, 0.0
      %v2190 = vmax.f32 %v2040, 0.0
      %v2191 = vmax.f32 %v2042, 0.0
      %v2192 = vmax.f32 %v1658, 0.0
      %v2193 = vmax.f32 %v1660, 0.0
      %v2194 = vmax.f32 %v2044, 0.0
      %v2195 = vmax.f32 %v2046, 0.0
      %v2196 = vmax.f32 %v1664, 0.0
      %v2197 = vmax.f32 %v1666, 0.0
      %v2198 = vmax.f32 %v2050, 0.0
      %v2199 = vmax.f32 %v2052, 0.0
      %v2200 = vmax.f32 %v1668, 0.0
      %v2201 = vmax.f32 %v1670, 0.0
      %v2202 = vmax.f32 %v2054, 0.0
      %v2203 = vmax.f32 %v2056, 0.0
      %v2204 = vmax.f32 %v1674, 0.0
      %v2205 = vmax.f32 %v1676, 0.0
      %v2206 = vmax.f32 %v2060, 0.0
      %v2207 = vmax.f32 %v2062, 0.0
      %v2208 = vmax.f32 %v1678, 0.0
      %v2209 = vmax.f32 %v1680, 0.0
      %v2210 = vmax.f32 %v2064, 0.0
      %v2211 = vmax.f32 %v2066, 0.0
      %v2212 = vmax.f32 %v1684, 0.0
      %v2213 = vmax.f32 %v1686, 0.0
      %v2214 = vmax.f32 %v2070, 0.0
      %v2215 = vmax.f32 %v2072, 0.0
      %v2216 = vmax.f32 %v1688, 0.0
      %v2217 = vmax.f32 %v1690, 0.0
      %v2218 = vmax.f32 %v2074, 0.0
      %v2219 = vmax.f32 %v2076, 0.0
      %v2220 = vmax.f32 %v1694, 0.0
      %v2221 = vmax.f32 %v1696, 0.0
      %v2222 = vmax.f32 %v2080, 0.0
      %v2223 = vmax.f32 %v2082, 0.0
      %v2224 = vmax.f32 %v1698, 0.0
      %v2225 = vmax.f32 %v1700, 0.0
      %v2226 = vmax.f32 %v2084, 0.0
      %v2227 = vmax.f32 %v2086, 0.0
      %v2228 = vmax.f32 %v1704, 0.0
      %v2229 = vmax.f32 %v1706, 0.0
      %v2230 = vmax.f32 %v2090, 0.0
      %v2231 = vmax.f32 %v2092, 0.0
      %v2232 = vmax.f32 %v1708, 0.0
      %v2233 = vmax.f32 %v1710, 0.0
      %v2234 = vmax.f32 %v2094, 0.0
      %v2235 = vmax.f32 %v2096, 0.0
      %v2236 = vmax.f32 %v1714, 0.0
      %v2237 = vmax.f32 %v1716, 0.0
      %v2238 = vmax.f32 %v2100, 0.0
      %v2239 = vmax.f32 %v2102, 0.0
      %v2240 = vmax.f32 %v1718, 0.0
      %v2241 = vmax.f32 %v1720, 0.0
      %v2242 = vmax.f32 %v2104, 0.0
      %v2243 = vmax.f32 %v2106, 0.0
      %v2244 = vmax.f32 %v1724, 0.0
      %v2245 = vmax.f32 %v1726, 0.0
      %v2246 = vmax.f32 %v2110, 0.0
      %v2247 = vmax.f32 %v2112, 0.0
      %v2248 = vmax.f32 %v1728, 0.0
      %v2249 = vmax.f32 %v1730, 0.0
      %v2250 = vmax.f32 %v2114, 0.0
      %v2251 = vmax.f32 %v2116, 0.0
      %v2252 = vmax.f32 %v1734, 0.0
      %v2253 = vmax.f32 %v1736, 0.0
      %v2254 = vmax.f32 %v2120, 0.0
      %v2255 = vmax.f32 %v2122, 0.0
      %v2256 = vmax.f32 %v1738, 0.0
      %v2257 = vmax.f32 %v1740, 0.0
      %v2258 = vmax.f32 %v2124, 0.0
      %v2259 = vmax.f32 %v2126, 0.0
      %v2260 = vmax.f32 %v1744, 0.0
      %v2261 = vmax.f32 %v1746, 0.0
      %v2262 = vmax.f32 %v2130, 0.0
      %v2263 = vmax.f32 %v2132, 0.0
      %v2264 = vmax.f32 %v1748, 0.0
      %v2265 = vmax.f32 %v1750, 0.0
      %v2266 = vmax.f32 %v2134, 0.0
      %v2267 = vmax.f32 %v2136, 0.0
      %v2268 = vmax.f32 %v1754, 0.0
      %v2269 = vmax.f32 %v1756, 0.0
      %v2270 = vmax.f32 %v2140, 0.0
      %v2271 = vmax.f32 %v2142, 0.0
      %v2272 = vmax.f32 %v1758, 0.0
      %v2273 = vmax.f32 %v1760, 0.0
      %v2274 = vmax.f32 %v2144, 0.0
      %v2275 = vmax.f32 %v2146, 0.0
      %v2276 = vpack.c.bf16 %v2152, %v2148
      %v2277 = vpack.c.bf16 %v2153, %v2149
      %v2278 = vpack.c.bf16 %v2154, %v2150
      %v2279 = vpack.c.bf16 %v2155, %v2151
      %v2280 = vpack.c.bf16 %v2160, %v2156
      %v2281 = vpack.c.bf16 %v2161, %v2157
      %v2282 = vpack.c.bf16 %v2162, %v2158
      %v2283 = vpack.c.bf16 %v2163, %v2159
      %v2284 = vpack.c.bf16 %v2168, %v2164
      %v2285 = vpack.c.bf16 %v2169, %v2165
      %v2286 = vpack.c.bf16 %v2170, %v2166
      %v2287 = vpack.c.bf16 %v2171, %v2167
      %v2288 = vpack.c.bf16 %v2176, %v2172
      %v2289 = vpack.c.bf16 %v2177, %v2173
      %v2290 = vpack.c.bf16 %v2178, %v2174
      %v2291 = vpack.c.bf16 %v2179, %v2175
      %v2292 = vpack.c.bf16 %v2184, %v2180
      %v2293 = vpack.c.bf16 %v2185, %v2181
      %v2294 = vpack.c.bf16 %v2186, %v2182
      %v2295 = vpack.c.bf16 %v2187, %v2183
      %v2296 = vpack.c.bf16 %v2192, %v2188
      %v2297 = vpack.c.bf16 %v2193, %v2189
      %v2298 = vpack.c.bf16 %v2194, %v2190
      %v2299 = vpack.c.bf16 %v2195, %v2191
      %v2300 = vpack.c.bf16 %v2200, %v2196
      %v2301 = vpack.c.bf16 %v2201, %v2197
      %v2302 = vpack.c.bf16 %v2202, %v2198
      %v2303 = vpack.c.bf16 %v2203, %v2199
      %v2304 = vpack.c.bf16 %v2208, %v2204
      %v2305 = vpack.c.bf16 %v2209, %v2205
      %v2306 = vpack.c.bf16 %v2210, %v2206
      %v2307 = vpack.c.bf16 %v2211, %v2207
      %v2308 = vpack.c.bf16 %v2216, %v2212
      %v2309 = vpack.c.bf16 %v2217, %v2213
      %v2310 = vpack.c.bf16 %v2218, %v2214
      %v2311 = vpack.c.bf16 %v2219, %v2215
      %v2312 = vpack.c.bf16 %v2224, %v2220
      %v2313 = vpack.c.bf16 %v2225, %v2221
      %v2314 = vpack.c.bf16 %v2226, %v2222
      %v2315 = vpack.c.bf16 %v2227, %v2223
      %v2316 = vpack.c.bf16 %v2232, %v2228
      %v2317 = vpack.c.bf16 %v2233, %v2229
      %v2318 = vpack.c.bf16 %v2234, %v2230
      %v2319 = vpack.c.bf16 %v2235, %v2231
      %v2320 = vpack.c.bf16 %v2240, %v2236
      %v2321 = vpack.c.bf16 %v2241, %v2237
      %v2322 = vpack.c.bf16 %v2242, %v2238
      %v2323 = vpack.c.bf16 %v2243, %v2239
      %v2324 = vpack.c.bf16 %v2248, %v2244
      %v2325 = vpack.c.bf16 %v2249, %v2245
      %v2326 = vpack.c.bf16 %v2250, %v2246
      %v2327 = vpack.c.bf16 %v2251, %v2247
      %v2328 = vpack.c.bf16 %v2256, %v2252
      %v2329 = vpack.c.bf16 %v2257, %v2253
      %v2330 = vpack.c.bf16 %v2258, %v2254
      %v2331 = vpack.c.bf16 %v2259, %v2255
      %v2332 = vpack.c.bf16 %v2264, %v2260
      %v2333 = vpack.c.bf16 %v2265, %v2261
      %v2334 = vpack.c.bf16 %v2266, %v2262
      %v2335 = vpack.c.bf16 %v2267, %v2263
      %v2336 = vpack.c.bf16 %v2272, %v2268
      %v2337 = vpack.c.bf16 %v2273, %v2269
      %v2338 = vpack.c.bf16 %v2274, %v2270
      %v2339 = vpack.c.bf16 %v2275, %v2271
      %v2340 = vld [vmem:[%s3] sm:$0xff]
      %v2341 = vld [vmem:[%s3 + $0x8] sm:$0xff]
      %v2342 = vld [vmem:[%s3 + $0x10] sm:$0xff]
      %v2343 = vld [vmem:[%s3 + $0x18] sm:$0xff]
      %v2344 = vld [vmem:[%s3 + $0x20] sm:$0xff]
      %v2345 = vld [vmem:[%s3 + $0x28] sm:$0xff]
      %v2346 = vld [vmem:[%s3 + $0x30] sm:$0xff]
      %v2347 = vld [vmem:[%s3 + $0x38] sm:$0xff]
      %v2348 = vld [vmem:[%s3 + $0x40] sm:$0xff]
      %v2349 = vld [vmem:[%s3 + $0x48] sm:$0xff]
      %v2350 = vld [vmem:[%s3 + $0x50] sm:$0xff]
      %v2351 = vld [vmem:[%s3 + $0x58] sm:$0xff]
      %v2352 = vld [vmem:[%s3 + $0x60] sm:$0xff]
      %v2353 = vld [vmem:[%s3 + $0x68] sm:$0xff]
      %v2354 = vld [vmem:[%s3 + $0x70] sm:$0xff]
      %v2355 = vld [vmem:[%s3 + $0x78] sm:$0xff]
      %v2356 = vld [vmem:[%s3 + $0x80] sm:$0xff]
      %v2357 = vld [vmem:[%s3 + $0x88] sm:$0xff]
      %v2358 = vld [vmem:[%s3 + $0x90] sm:$0xff]
      %v2359 = vld [vmem:[%s3 + $0x98] sm:$0xff]
      %v2360 = vld [vmem:[%s3 + $0xa0] sm:$0xff]
      %v2361 = vld [vmem:[%s3 + $0xa8] sm:$0xff]
      %v2362 = vld [vmem:[%s3 + $0xb0] sm:$0xff]
      %v2363 = vld [vmem:[%s3 + $0xb8] sm:$0xff]
      %v2364 = vld [vmem:[%s3 + $0xc0] sm:$0xff]
      %v2365 = vld [vmem:[%s3 + $0xc8] sm:$0xff]
      %v2366 = vld [vmem:[%s3 + $0xd0] sm:$0xff]
      %v2367 = vld [vmem:[%s3 + $0xd8] sm:$0xff]
      %v2368 = vld [vmem:[%s3 + $0xe0] sm:$0xff]
      %v2369 = vld [vmem:[%s3 + $0xe8] sm:$0xff]
      %v2370 = vld [vmem:[%s3 + $0xf0] sm:$0xff]
      %v2371 = vld [vmem:[%s3 + $0xf8] sm:$0xff]
      %v2372 = vld [vmem:[%s3 + $0x100] sm:$0xff]
      %v2373 = vld [vmem:[%s3 + $0x108] sm:$0xff]
      %v2374 = vld [vmem:[%s3 + $0x110] sm:$0xff]
      %v2375 = vld [vmem:[%s3 + $0x118] sm:$0xff]
      %v2376 = vld [vmem:[%s3 + $0x120] sm:$0xff]
      %v2377 = vld [vmem:[%s3 + $0x128] sm:$0xff]
      %v2378 = vld [vmem:[%s3 + $0x130] sm:$0xff]
      %v2379 = vld [vmem:[%s3 + $0x138] sm:$0xff]
      %v2380 = vld [vmem:[%s3 + $0x140] sm:$0xff]
      %v2381 = vld [vmem:[%s3 + $0x148] sm:$0xff]
      %v2382 = vld [vmem:[%s3 + $0x150] sm:$0xff]
      %v2383 = vld [vmem:[%s3 + $0x158] sm:$0xff]
      %v2384 = vld [vmem:[%s3 + $0x160] sm:$0xff]
      %v2385 = vld [vmem:[%s3 + $0x168] sm:$0xff]
      %v2386 = vld [vmem:[%s3 + $0x170] sm:$0xff]
      %v2387 = vld [vmem:[%s3 + $0x178] sm:$0xff]
      %v2388 = vld [vmem:[%s3 + $0x180] sm:$0xff]
      %v2389 = vld [vmem:[%s3 + $0x188] sm:$0xff]
      %v2390 = vld [vmem:[%s3 + $0x190] sm:$0xff]
      %v2391 = vld [vmem:[%s3 + $0x198] sm:$0xff]
      %v2392 = vld [vmem:[%s3 + $0x1a0] sm:$0xff]
      %v2393 = vld [vmem:[%s3 + $0x1a8] sm:$0xff]
      %v2394 = vld [vmem:[%s3 + $0x1b0] sm:$0xff]
      %v2395 = vld [vmem:[%s3 + $0x1b8] sm:$0xff]
      %v2396 = vld [vmem:[%s3 + $0x1c0] sm:$0xff]
      %v2397 = vld [vmem:[%s3 + $0x1c8] sm:$0xff]
      %v2398 = vld [vmem:[%s3 + $0x1d0] sm:$0xff]
      %v2399 = vld [vmem:[%s3 + $0x1d8] sm:$0xff]
      %v2400 = vld [vmem:[%s3 + $0x1e0] sm:$0xff]
      %v2401 = vld [vmem:[%s3 + $0x1e8] sm:$0xff]
      %v2402 = vld [vmem:[%s3 + $0x1f0] sm:$0xff]
      %v2403 = vld [vmem:[%s3 + $0x1f8] sm:$0xff]
      %v2404 = vld [vmem:[%s4] sm:$0x3]
      %v2406 = vlaneseq
      %v2407 = vshrl.u32 %v2406, 7
      %v2408 = vsub.s32 0, %v2407
      %v2409 = vrot.slane %v2404, %v2408
      %v2410 = vlaneseq
      %v2411 = vshrl.u32 %v2410, 7
      %v2412 = vsub.s32 1, %v2411
      %v2413 = vrot.slane %v2404, %v2412
      %v2480 = vunpack.c.l.b16 %v2340
      %v2481 = vunpack.c.h.b16 %v2340
      %v2482 = vunpack.c.l.b16 %v2341
      %v2483 = vunpack.c.h.b16 %v2341
      %v2484 = vunpack.c.l.b16 %v2342
      %v2485 = vunpack.c.h.b16 %v2342
      %v2486 = vunpack.c.l.b16 %v2343
      %v2487 = vunpack.c.h.b16 %v2343
      %v2488 = vunpack.c.l.b16 %v2344
      %v2489 = vunpack.c.h.b16 %v2344
      %v2490 = vunpack.c.l.b16 %v2345
      %v2491 = vunpack.c.h.b16 %v2345
      %v2492 = vunpack.c.l.b16 %v2346
      %v2493 = vunpack.c.h.b16 %v2346
      %v2494 = vunpack.c.l.b16 %v2347
      %v2495 = vunpack.c.h.b16 %v2347
      %v2496 = vunpack.c.l.b16 %v2348
      %v2497 = vunpack.c.h.b16 %v2348
      %v2498 = vunpack.c.l.b16 %v2349
      %v2499 = vunpack.c.h.b16 %v2349
      %v2500 = vunpack.c.l.b16 %v2350
      %v2501 = vunpack.c.h.b16 %v2350
      %v2502 = vunpack.c.l.b16 %v2351
      %v2503 = vunpack.c.h.b16 %v2351
      %v2504 = vunpack.c.l.b16 %v2352
      %v2505 = vunpack.c.h.b16 %v2352
      %v2506 = vunpack.c.l.b16 %v2353
      %v2507 = vunpack.c.h.b16 %v2353
      %v2508 = vunpack.c.l.b16 %v2354
      %v2509 = vunpack.c.h.b16 %v2354
      %v2510 = vunpack.c.l.b16 %v2355
      %v2511 = vunpack.c.h.b16 %v2355
      %v2512 = vunpack.c.l.b16 %v2356
      %v2513 = vunpack.c.h.b16 %v2356
      %v2514 = vunpack.c.l.b16 %v2357
      %v2515 = vunpack.c.h.b16 %v2357
      %v2516 = vunpack.c.l.b16 %v2358
      %v2517 = vunpack.c.h.b16 %v2358
      %v2518 = vunpack.c.l.b16 %v2359
      %v2519 = vunpack.c.h.b16 %v2359
      %v2520 = vunpack.c.l.b16 %v2360
      %v2521 = vunpack.c.h.b16 %v2360
      %v2522 = vunpack.c.l.b16 %v2361
      %v2523 = vunpack.c.h.b16 %v2361
      %v2524 = vunpack.c.l.b16 %v2362
      %v2525 = vunpack.c.h.b16 %v2362
      %v2526 = vunpack.c.l.b16 %v2363
      %v2527 = vunpack.c.h.b16 %v2363
      %v2528 = vunpack.c.l.b16 %v2364
      %v2529 = vunpack.c.h.b16 %v2364
      %v2530 = vunpack.c.l.b16 %v2365
      %v2531 = vunpack.c.h.b16 %v2365
      %v2532 = vunpack.c.l.b16 %v2366
      %v2533 = vunpack.c.h.b16 %v2366
      %v2534 = vunpack.c.l.b16 %v2367
      %v2535 = vunpack.c.h.b16 %v2367
      %v2536 = vunpack.c.l.b16 %v2368
      %v2537 = vunpack.c.h.b16 %v2368
      %v2538 = vunpack.c.l.b16 %v2369
      %v2539 = vunpack.c.h.b16 %v2369
      %v2540 = vunpack.c.l.b16 %v2370
      %v2541 = vunpack.c.h.b16 %v2370
      %v2542 = vunpack.c.l.b16 %v2371
      %v2543 = vunpack.c.h.b16 %v2371
      %v2544 = vunpack.c.l.b16 %v2372
      %v2545 = vunpack.c.h.b16 %v2372
      %v2546 = vunpack.c.l.b16 %v2373
      %v2547 = vunpack.c.h.b16 %v2373
      %v2548 = vunpack.c.l.b16 %v2374
      %v2549 = vunpack.c.h.b16 %v2374
      %v2550 = vunpack.c.l.b16 %v2375
      %v2551 = vunpack.c.h.b16 %v2375
      %v2552 = vunpack.c.l.b16 %v2376
      %v2553 = vunpack.c.h.b16 %v2376
      %v2554 = vunpack.c.l.b16 %v2377
      %v2555 = vunpack.c.h.b16 %v2377
      %v2556 = vunpack.c.l.b16 %v2378
      %v2557 = vunpack.c.h.b16 %v2378
      %v2558 = vunpack.c.l.b16 %v2379
      %v2559 = vunpack.c.h.b16 %v2379
      %v2560 = vunpack.c.l.b16 %v2380
      %v2561 = vunpack.c.h.b16 %v2380
      %v2562 = vunpack.c.l.b16 %v2381
      %v2563 = vunpack.c.h.b16 %v2381
      %v2564 = vunpack.c.l.b16 %v2382
      %v2565 = vunpack.c.h.b16 %v2382
      %v2566 = vunpack.c.l.b16 %v2383
      %v2567 = vunpack.c.h.b16 %v2383
      %v2568 = vunpack.c.l.b16 %v2384
      %v2569 = vunpack.c.h.b16 %v2384
      %v2570 = vunpack.c.l.b16 %v2385
      %v2571 = vunpack.c.h.b16 %v2385
      %v2572 = vunpack.c.l.b16 %v2386
      %v2573 = vunpack.c.h.b16 %v2386
      %v2574 = vunpack.c.l.b16 %v2387
      %v2575 = vunpack.c.h.b16 %v2387
      %v2576 = vunpack.c.l.b16 %v2388
      %v2577 = vunpack.c.h.b16 %v2388
      %v2578 = vunpack.c.l.b16 %v2389
      %v2579 = vunpack.c.h.b16 %v2389
      %v2580 = vunpack.c.l.b16 %v2390
      %v2581 = vunpack.c.h.b16 %v2390
      %v2582 = vunpack.c.l.b16 %v2391
      %v2583 = vunpack.c.h.b16 %v2391
      %v2584 = vunpack.c.l.b16 %v2392
      %v2585 = vunpack.c.h.b16 %v2392
      %v2586 = vunpack.c.l.b16 %v2393
      %v2587 = vunpack.c.h.b16 %v2393
      %v2588 = vunpack.c.l.b16 %v2394
      %v2589 = vunpack.c.h.b16 %v2394
      %v2590 = vunpack.c.l.b16 %v2395
      %v2591 = vunpack.c.h.b16 %v2395
      %v2592 = vunpack.c.l.b16 %v2396
      %v2593 = vunpack.c.h.b16 %v2396
      %v2594 = vunpack.c.l.b16 %v2397
      %v2595 = vunpack.c.h.b16 %v2397
      %v2596 = vunpack.c.l.b16 %v2398
      %v2597 = vunpack.c.h.b16 %v2398
      %v2598 = vunpack.c.l.b16 %v2399
      %v2599 = vunpack.c.h.b16 %v2399
      %v2600 = vunpack.c.l.b16 %v2400
      %v2601 = vunpack.c.h.b16 %v2400
      %v2602 = vunpack.c.l.b16 %v2401
      %v2603 = vunpack.c.h.b16 %v2401
      %v2604 = vunpack.c.l.b16 %v2402
      %v2605 = vunpack.c.h.b16 %v2402
      %v2606 = vunpack.c.l.b16 %v2403
      %v2607 = vunpack.c.h.b16 %v2403
      %v2608 = vpack.c.b16 %v2482, %v2480
      %v2609 = vpack.c.b16 %v2483, %v2481
      %v2610 = vpack.c.b16 %v2486, %v2484
      %v2611 = vpack.c.b16 %v2487, %v2485
      %v2612 = vpack.c.b16 %v2490, %v2488
      %v2613 = vpack.c.b16 %v2491, %v2489
      %v2614 = vpack.c.b16 %v2494, %v2492
      %v2615 = vpack.c.b16 %v2495, %v2493
      %v2616 = vpack.c.b16 %v2498, %v2496
      %v2617 = vpack.c.b16 %v2499, %v2497
      %v2618 = vpack.c.b16 %v2502, %v2500
      %v2619 = vpack.c.b16 %v2503, %v2501
      %v2620 = vpack.c.b16 %v2506, %v2504
      %v2621 = vpack.c.b16 %v2507, %v2505
      %v2622 = vpack.c.b16 %v2510, %v2508
      %v2623 = vpack.c.b16 %v2511, %v2509
      %v2624 = vpack.c.b16 %v2514, %v2512
      %v2625 = vpack.c.b16 %v2515, %v2513
      %v2626 = vpack.c.b16 %v2518, %v2516
      %v2627 = vpack.c.b16 %v2519, %v2517
      %v2628 = vpack.c.b16 %v2522, %v2520
      %v2629 = vpack.c.b16 %v2523, %v2521
      %v2630 = vpack.c.b16 %v2526, %v2524
      %v2631 = vpack.c.b16 %v2527, %v2525
      %v2632 = vpack.c.b16 %v2530, %v2528
      %v2633 = vpack.c.b16 %v2531, %v2529
      %v2634 = vpack.c.b16 %v2534, %v2532
      %v2635 = vpack.c.b16 %v2535, %v2533
      %v2636 = vpack.c.b16 %v2538, %v2536
      %v2637 = vpack.c.b16 %v2539, %v2537
      %v2638 = vpack.c.b16 %v2542, %v2540
      %v2639 = vpack.c.b16 %v2543, %v2541
      %v2640 = vpack.c.b16 %v2546, %v2544
      %v2641 = vpack.c.b16 %v2547, %v2545
      %v2642 = vpack.c.b16 %v2550, %v2548
      %v2643 = vpack.c.b16 %v2551, %v2549
      %v2644 = vpack.c.b16 %v2554, %v2552
      %v2645 = vpack.c.b16 %v2555, %v2553
      %v2646 = vpack.c.b16 %v2558, %v2556
      %v2647 = vpack.c.b16 %v2559, %v2557
      %v2648 = vpack.c.b16 %v2562, %v2560
      %v2649 = vpack.c.b16 %v2563, %v2561
      %v2650 = vpack.c.b16 %v2566, %v2564
      %v2651 = vpack.c.b16 %v2567, %v2565
      %v2652 = vpack.c.b16 %v2570, %v2568
      %v2653 = vpack.c.b16 %v2571, %v2569
      %v2654 = vpack.c.b16 %v2574, %v2572
      %v2655 = vpack.c.b16 %v2575, %v2573
      %v2656 = vpack.c.b16 %v2578, %v2576
      %v2657 = vpack.c.b16 %v2579, %v2577
      %v2658 = vpack.c.b16 %v2582, %v2580
      %v2659 = vpack.c.b16 %v2583, %v2581
      %v2660 = vpack.c.b16 %v2586, %v2584
      %v2661 = vpack.c.b16 %v2587, %v2585
      %v2662 = vpack.c.b16 %v2590, %v2588
      %v2663 = vpack.c.b16 %v2591, %v2589
      %v2664 = vpack.c.b16 %v2594, %v2592
      %v2665 = vpack.c.b16 %v2595, %v2593
      %v2666 = vpack.c.b16 %v2598, %v2596
      %v2667 = vpack.c.b16 %v2599, %v2597
      %v2668 = vpack.c.b16 %v2602, %v2600
      %v2669 = vpack.c.b16 %v2603, %v2601
      %v2670 = vpack.c.b16 %v2606, %v2604
      %v2671 = vpack.c.b16 %v2607, %v2605
      %2736 = vmatprep.subr.bf16.mxu0 %v2609
      %2737 = vmatpush1.bf16.msra.mxu0 %v2608
      %2738 = vmatprep.subr.bf16.mxu0 %v2611
      %2739 = vmatpush1.bf16.msra.mxu0 %v2610
      %2740 = vmatprep.subr.bf16.mxu0 %v2613
      %2741 = vmatpush1.bf16.msra.mxu0 %v2612
      %2742 = vmatprep.subr.bf16.mxu0 %v2615
      %2743 = vmatpush1.bf16.msra.mxu0 %v2614
      %2744 = vmatprep.subr.bf16.mxu0 %v2617
      %2745 = vmatpush1.bf16.msra.mxu0 %v2616
      %2746 = vmatprep.subr.bf16.mxu0 %v2619
      %2747 = vmatpush1.bf16.msra.mxu0 %v2618
      %2748 = vmatprep.subr.bf16.mxu0 %v2621
      %2749 = vmatpush1.bf16.msra.mxu0 %v2620
      %2750 = vmatprep.subr.bf16.mxu0 %v2623
      %2751 = vmatpush1.bf16.msra.mxu0 %v2622
      %2752 = vmatprep.subr.bf16.mxu0 %v2625
      %2753 = vmatpush1.bf16.msra.mxu0 %v2624
      %2754 = vmatprep.subr.bf16.mxu0 %v2627
      %2755 = vmatpush1.bf16.msra.mxu0 %v2626
      %2756 = vmatprep.subr.bf16.mxu0 %v2629
      %2757 = vmatpush1.bf16.msra.mxu0 %v2628
      %2758 = vmatprep.subr.bf16.mxu0 %v2631
      %2759 = vmatpush1.bf16.msra.mxu0 %v2630
      %2760 = vmatprep.subr.bf16.mxu0 %v2633
      %2761 = vmatpush1.bf16.msra.mxu0 %v2632
      %2762 = vmatprep.subr.bf16.mxu0 %v2635
      %2763 = vmatpush1.bf16.msra.mxu0 %v2634
      %2764 = vmatprep.subr.bf16.mxu0 %v2637
      %2765 = vmatpush1.bf16.msra.mxu0 %v2636
      %2766 = vmatprep.subr.bf16.mxu0 %v2639
      %2767 = vmatpush1.bf16.msra.mxu0 %v2638
      %2768 = vmatprep.mubr.bf16.mxu0 %v2277
      %2769 = vmatmul.mubr.bf16.gmra.mrb[0].mxu0 %v2276
      %v2770 = vpop.f32.mrb[0].mxu0
      %v2771 = vadd.f32 %v2409, %v2770
      %v2772 = vpop.f32.mrb[0].mxu0
      %v2773 = vadd.f32 %v2413, %v2772
      %v2774 = vpop.f32.mrb[0].mxu0
      %v2775 = vadd.f32 %v2409, %v2774
      %v2776 = vpop.f32.mrb[0].mxu0
      %v2777 = vadd.f32 %v2413, %v2776
      %2778 = vmatprep.mubr.bf16.mxu0 %v2281
      %2779 = vmatmul.mubr.bf16.gmra.mrb[0].mxu0 %v2280
      %v2780 = vpop.f32.mrb[0].mxu0
      %v2781 = vadd.f32 %v2409, %v2780
      %v2782 = vpop.f32.mrb[0].mxu0
      %v2783 = vadd.f32 %v2413, %v2782
      %v2784 = vpop.f32.mrb[0].mxu0
      %v2785 = vadd.f32 %v2409, %v2784
      %v2786 = vpop.f32.mrb[0].mxu0
      %v2787 = vadd.f32 %v2413, %v2786
      %2788 = vmatprep.mubr.bf16.mxu0 %v2285
      %2789 = vmatmul.mubr.bf16.gmra.mrb[0].mxu0 %v2284
      %v2790 = vpop.f32.mrb[0].mxu0
      %v2791 = vadd.f32 %v2409, %v2790
      %v2792 = vpop.f32.mrb[0].mxu0
      %v2793 = vadd.f32 %v2413, %v2792
      %v2794 = vpop.f32.mrb[0].mxu0
      %v2795 = vadd.f32 %v2409, %v2794
      %v2796 = vpop.f32.mrb[0].mxu0
      %v2797 = vadd.f32 %v2413, %v2796
      %2798 = vmatprep.mubr.bf16.mxu0 %v2289
      %2799 = vmatmul.mubr.bf16.gmra.mrb[0].mxu0 %v2288
      %v2800 = vpop.f32.mrb[0].mxu0
      %v2801 = vadd.f32 %v2409, %v2800
      %v2802 = vpop.f32.mrb[0].mxu0
      %v2803 = vadd.f32 %v2413, %v2802
      %v2804 = vpop.f32.mrb[0].mxu0
      %v2805 = vadd.f32 %v2409, %v2804
      %v2806 = vpop.f32.mrb[0].mxu0
      %v2807 = vadd.f32 %v2413, %v2806
      %2808 = vmatprep.mubr.bf16.mxu0 %v2293
      %2809 = vmatmul.mubr.bf16.gmra.mrb[0].mxu0 %v2292
      %v2810 = vpop.f32.mrb[0].mxu0
      %v2811 = vadd.f32 %v2409, %v2810
      %v2812 = vpop.f32.mrb[0].mxu0
      %v2813 = vadd.f32 %v2413, %v2812
      %v2814 = vpop.f32.mrb[0].mxu0
      %v2815 = vadd.f32 %v2409, %v2814
      %v2816 = vpop.f32.mrb[0].mxu0
      %v2817 = vadd.f32 %v2413, %v2816
      %2818 = vmatprep.mubr.bf16.mxu0 %v2297
      %2819 = vmatmul.mubr.bf16.gmra.mrb[0].mxu0 %v2296
      %v2820 = vpop.f32.mrb[0].mxu0
      %v2821 = vadd.f32 %v2409, %v2820
      %v2822 = vpop.f32.mrb[0].mxu0
      %v2823 = vadd.f32 %v2413, %v2822
      %v2824 = vpop.f32.mrb[0].mxu0
      %v2825 = vadd.f32 %v2409, %v2824
      %v2826 = vpop.f32.mrb[0].mxu0
      %v2827 = vadd.f32 %v2413, %v2826
      %2828 = vmatprep.mubr.bf16.mxu0 %v2301
      %2829 = vmatmul.mubr.bf16.gmra.mrb[0].mxu0 %v2300
      %v2830 = vpop.f32.mrb[0].mxu0
      %v2831 = vadd.f32 %v2409, %v2830
      %v2832 = vpop.f32.mrb[0].mxu0
      %v2833 = vadd.f32 %v2413, %v2832
      %v2834 = vpop.f32.mrb[0].mxu0
      %v2835 = vadd.f32 %v2409, %v2834
      %v2836 = vpop.f32.mrb[0].mxu0
      %v2837 = vadd.f32 %v2413, %v2836
      %2838 = vmatprep.mubr.bf16.mxu0 %v2305
      %2839 = vmatmul.mubr.bf16.gmra.mrb[0].mxu0 %v2304
      %v2840 = vpop.f32.mrb[0].mxu0
      %v2841 = vadd.f32 %v2409, %v2840
      %v2842 = vpop.f32.mrb[0].mxu0
      %v2843 = vadd.f32 %v2413, %v2842
      %v2844 = vpop.f32.mrb[0].mxu0
      %v2845 = vadd.f32 %v2409, %v2844
      %v2846 = vpop.f32.mrb[0].mxu0
      %v2847 = vadd.f32 %v2413, %v2846
      %2848 = vmatprep.mubr.bf16.mxu0 %v2309
      %2849 = vmatmul.mubr.bf16.gmra.mrb[0].mxu0 %v2308
      %v2850 = vpop.f32.mrb[0].mxu0
      %v2851 = vadd.f32 %v2409, %v2850
      %v2852 = vpop.f32.mrb[0].mxu0
      %v2853 = vadd.f32 %v2413, %v2852
      %v2854 = vpop.f32.mrb[0].mxu0
      %v2855 = vadd.f32 %v2409, %v2854
      %v2856 = vpop.f32.mrb[0].mxu0
      %v2857 = vadd.f32 %v2413, %v2856
      %2858 = vmatprep.mubr.bf16.mxu0 %v2313
      %2859 = vmatmul.mubr.bf16.gmra.mrb[0].mxu0 %v2312
      %v2860 = vpop.f32.mrb[0].mxu0
      %v2861 = vadd.f32 %v2409, %v2860
      %v2862 = vpop.f32.mrb[0].mxu0
      %v2863 = vadd.f32 %v2413, %v2862
      %v2864 = vpop.f32.mrb[0].mxu0
      %v2865 = vadd.f32 %v2409, %v2864
      %v2866 = vpop.f32.mrb[0].mxu0
      %v2867 = vadd.f32 %v2413, %v2866
      %2868 = vmatprep.mubr.bf16.mxu0 %v2317
      %2869 = vmatmul.mubr.bf16.gmra.mrb[0].mxu0 %v2316
      %v2870 = vpop.f32.mrb[0].mxu0
      %v2871 = vadd.f32 %v2409, %v2870
      %v2872 = vpop.f32.mrb[0].mxu0
      %v2873 = vadd.f32 %v2413, %v2872
      %v2874 = vpop.f32.mrb[0].mxu0
      %v2875 = vadd.f32 %v2409, %v2874
      %v2876 = vpop.f32.mrb[0].mxu0
      %v2877 = vadd.f32 %v2413, %v2876
      %2878 = vmatprep.mubr.bf16.mxu0 %v2321
      %2879 = vmatmul.mubr.bf16.gmra.mrb[0].mxu0 %v2320
      %v2880 = vpop.f32.mrb[0].mxu0
      %v2881 = vadd.f32 %v2409, %v2880
      %v2882 = vpop.f32.mrb[0].mxu0
      %v2883 = vadd.f32 %v2413, %v2882
      %v2884 = vpop.f32.mrb[0].mxu0
      %v2885 = vadd.f32 %v2409, %v2884
      %v2886 = vpop.f32.mrb[0].mxu0
      %v2887 = vadd.f32 %v2413, %v2886
      %2888 = vmatprep.mubr.bf16.mxu0 %v2325
      %2889 = vmatmul.mubr.bf16.gmra.mrb[0].mxu0 %v2324
      %v2890 = vpop.f32.mrb[0].mxu0
      %v2891 = vadd.f32 %v2409, %v2890
      %v2892 = vpop.f32.mrb[0].mxu0
      %v2893 = vadd.f32 %v2413, %v2892
      %v2894 = vpop.f32.mrb[0].mxu0
      %v2895 = vadd.f32 %v2409, %v2894
      %v2896 = vpop.f32.mrb[0].mxu0
      %v2897 = vadd.f32 %v2413, %v2896
      %2898 = vmatprep.mubr.bf16.mxu0 %v2329
      %2899 = vmatmul.mubr.bf16.gmra.mrb[0].mxu0 %v2328
      %v2900 = vpop.f32.mrb[0].mxu0
      %v2901 = vadd.f32 %v2409, %v2900
      %v2902 = vpop.f32.mrb[0].mxu0
      %v2903 = vadd.f32 %v2413, %v2902
      %v2904 = vpop.f32.mrb[0].mxu0
      %v2905 = vadd.f32 %v2409, %v2904
      %v2906 = vpop.f32.mrb[0].mxu0
      %v2907 = vadd.f32 %v2413, %v2906
      %2908 = vmatprep.mubr.bf16.mxu0 %v2333
      %2909 = vmatmul.mubr.bf16.gmra.mrb[0].mxu0 %v2332
      %v2910 = vpop.f32.mrb[0].mxu0
      %v2911 = vadd.f32 %v2409, %v2910
      %v2912 = vpop.f32.mrb[0].mxu0
      %v2913 = vadd.f32 %v2413, %v2912
      %v2914 = vpop.f32.mrb[0].mxu0
      %v2915 = vadd.f32 %v2409, %v2914
      %v2916 = vpop.f32.mrb[0].mxu0
      %v2917 = vadd.f32 %v2413, %v2916
      %2918 = vmatprep.mubr.bf16.mxu0 %v2337
      %2919 = vmatmul.mubr.bf16.gmra.mrb[0].mxu0 %v2336
      %v2920 = vpop.f32.mrb[0].mxu0
      %v2921 = vadd.f32 %v2409, %v2920
      %v2922 = vpop.f32.mrb[0].mxu0
      %v2923 = vadd.f32 %v2413, %v2922
      %v2924 = vpop.f32.mrb[0].mxu0
      %v2925 = vadd.f32 %v2409, %v2924
      %v2926 = vpop.f32.mrb[0].mxu0
      %v2927 = vadd.f32 %v2413, %v2926
      %2928 = vdwg.mxu0
      %2929 = vmatprep.subr.bf16.mxu0 %v2641
      %2930 = vmatpush1.bf16.msra.mxu0 %v2640
      %2931 = vmatprep.subr.bf16.mxu0 %v2643
      %2932 = vmatpush1.bf16.msra.mxu0 %v2642
      %2933 = vmatprep.subr.bf16.mxu0 %v2645
      %2934 = vmatpush1.bf16.msra.mxu0 %v2644
      %2935 = vmatprep.subr.bf16.mxu0 %v2647
      %2936 = vmatpush1.bf16.msra.mxu0 %v2646
      %2937 = vmatprep.subr.bf16.mxu0 %v2649
      %2938 = vmatpush1.bf16.msra.mxu0 %v2648
      %2939 = vmatprep.subr.bf16.mxu0 %v2651
      %2940 = vmatpush1.bf16.msra.mxu0 %v2650
      %2941 = vmatprep.subr.bf16.mxu0 %v2653
      %2942 = vmatpush1.bf16.msra.mxu0 %v2652
      %2943 = vmatprep.subr.bf16.mxu0 %v2655
      %2944 = vmatpush1.bf16.msra.mxu0 %v2654
      %2945 = vmatprep.subr.bf16.mxu0 %v2657
      %2946 = vmatpush1.bf16.msra.mxu0 %v2656
      %2947 = vmatprep.subr.bf16.mxu0 %v2659
      %2948 = vmatpush1.bf16.msra.mxu0 %v2658
      %2949 = vmatprep.subr.bf16.mxu0 %v2661
      %2950 = vmatpush1.bf16.msra.mxu0 %v2660
      %2951 = vmatprep.subr.bf16.mxu0 %v2663
      %2952 = vmatpush1.bf16.msra.mxu0 %v2662
      %2953 = vmatprep.subr.bf16.mxu0 %v2665
      %2954 = vmatpush1.bf16.msra.mxu0 %v2664
      %2955 = vmatprep.subr.bf16.mxu0 %v2667
      %2956 = vmatpush1.bf16.msra.mxu0 %v2666
      %2957 = vmatprep.subr.bf16.mxu0 %v2669
      %2958 = vmatpush1.bf16.msra.mxu0 %v2668
      %2959 = vmatprep.subr.bf16.mxu0 %v2671
      %2960 = vmatpush1.bf16.msra.mxu0 %v2670
      %2961 = vmatprep.mubr.bf16.mxu0 %v2279
      %2962 = vmatmul.mubr.bf16.gmra.mrb[0].mxu0 %v2278
      %v2963 = vpop.f32.mrb[0].mxu0
      %v2964 = vadd.f32 %v2771, %v2963
      %v2965 = vpop.f32.mrb[0].mxu0
      %v2966 = vadd.f32 %v2773, %v2965
      %v2967 = vpop.f32.mrb[0].mxu0
      %v2968 = vadd.f32 %v2775, %v2967
      %v2969 = vpop.f32.mrb[0].mxu0
      %v2970 = vadd.f32 %v2777, %v2969
      %2971 = vmatprep.mubr.bf16.mxu0 %v2283
      %2972 = vmatmul.mubr.bf16.gmra.mrb[0].mxu0 %v2282
      %v2973 = vpop.f32.mrb[0].mxu0
      %v2974 = vadd.f32 %v2781, %v2973
      %v2975 = vpop.f32.mrb[0].mxu0
      %v2976 = vadd.f32 %v2783, %v2975
      %v2977 = vpop.f32.mrb[0].mxu0
      %v2978 = vadd.f32 %v2785, %v2977
      %v2979 = vpop.f32.mrb[0].mxu0
      %v2980 = vadd.f32 %v2787, %v2979
      %2981 = vmatprep.mubr.bf16.mxu0 %v2287
      %2982 = vmatmul.mubr.bf16.gmra.mrb[0].mxu0 %v2286
      %v2983 = vpop.f32.mrb[0].mxu0
      %v2984 = vadd.f32 %v2791, %v2983
      %v2985 = vpop.f32.mrb[0].mxu0
      %v2986 = vadd.f32 %v2793, %v2985
      %v2987 = vpop.f32.mrb[0].mxu0
      %v2988 = vadd.f32 %v2795, %v2987
      %v2989 = vpop.f32.mrb[0].mxu0
      %v2990 = vadd.f32 %v2797, %v2989
      %2991 = vmatprep.mubr.bf16.mxu0 %v2291
      %2992 = vmatmul.mubr.bf16.gmra.mrb[0].mxu0 %v2290
      %v2993 = vpop.f32.mrb[0].mxu0
      %v2994 = vadd.f32 %v2801, %v2993
      %v2995 = vpop.f32.mrb[0].mxu0
      %v2996 = vadd.f32 %v2803, %v2995
      %v2997 = vpop.f32.mrb[0].mxu0
      %v2998 = vadd.f32 %v2805, %v2997
      %v2999 = vpop.f32.mrb[0].mxu0
      %v3000 = vadd.f32 %v2807, %v2999
      %3001 = vmatprep.mubr.bf16.mxu0 %v2295
      %3002 = vmatmul.mubr.bf16.gmra.mrb[0].mxu0 %v2294
      %v3003 = vpop.f32.mrb[0].mxu0
      %v3004 = vadd.f32 %v2811, %v3003
      %v3005 = vpop.f32.mrb[0].mxu0
      %v3006 = vadd.f32 %v2813, %v3005
      %v3007 = vpop.f32.mrb[0].mxu0
      %v3008 = vadd.f32 %v2815, %v3007
      %v3009 = vpop.f32.mrb[0].mxu0
      %v3010 = vadd.f32 %v2817, %v3009
      %3011 = vmatprep.mubr.bf16.mxu0 %v2299
      %3012 = vmatmul.mubr.bf16.gmra.mrb[0].mxu0 %v2298
      %v3013 = vpop.f32.mrb[0].mxu0
      %v3014 = vadd.f32 %v2821, %v3013
      %v3015 = vpop.f32.mrb[0].mxu0
      %v3016 = vadd.f32 %v2823, %v3015
      %v3017 = vpop.f32.mrb[0].mxu0
      %v3018 = vadd.f32 %v2825, %v3017
      %v3019 = vpop.f32.mrb[0].mxu0
      %v3020 = vadd.f32 %v2827, %v3019
      %3021 = vmatprep.mubr.bf16.mxu0 %v2303
      %3022 = vmatmul.mubr.bf16.gmra.mrb[0].mxu0 %v2302
      %v3023 = vpop.f32.mrb[0].mxu0
      %v3024 = vadd.f32 %v2831, %v3023
      %v3025 = vpop.f32.mrb[0].mxu0
      %v3026 = vadd.f32 %v2833, %v3025
      %v3027 = vpop.f32.mrb[0].mxu0
      %v3028 = vadd.f32 %v2835, %v3027
      %v3029 = vpop.f32.mrb[0].mxu0
      %v3030 = vadd.f32 %v2837, %v3029
      %3031 = vmatprep.mubr.bf16.mxu0 %v2307
      %3032 = vmatmul.mubr.bf16.gmra.mrb[0].mxu0 %v2306
      %v3033 = vpop.f32.mrb[0].mxu0
      %v3034 = vadd.f32 %v2841, %v3033
      %v3035 = vpop.f32.mrb[0].mxu0
      %v3036 = vadd.f32 %v2843, %v3035
      %v3037 = vpop.f32.mrb[0].mxu0
      %v3038 = vadd.f32 %v2845, %v3037
      %v3039 = vpop.f32.mrb[0].mxu0
      %v3040 = vadd.f32 %v2847, %v3039
      %3041 = vmatprep.mubr.bf16.mxu0 %v2311
      %3042 = vmatmul.mubr.bf16.gmra.mrb[0].mxu0 %v2310
      %v3043 = vpop.f32.mrb[0].mxu0
      %v3044 = vadd.f32 %v2851, %v3043
      %v3045 = vpop.f32.mrb[0].mxu0
      %v3046 = vadd.f32 %v2853, %v3045
      %v3047 = vpop.f32.mrb[0].mxu0
      %v3048 = vadd.f32 %v2855, %v3047
      %v3049 = vpop.f32.mrb[0].mxu0
      %v3050 = vadd.f32 %v2857, %v3049
      %3051 = vmatprep.mubr.bf16.mxu0 %v2315
      %3052 = vmatmul.mubr.bf16.gmra.mrb[0].mxu0 %v2314
      %v3053 = vpop.f32.mrb[0].mxu0
      %v3054 = vadd.f32 %v2861, %v3053
      %v3055 = vpop.f32.mrb[0].mxu0
      %v3056 = vadd.f32 %v2863, %v3055
      %v3057 = vpop.f32.mrb[0].mxu0
      %v3058 = vadd.f32 %v2865, %v3057
      %v3059 = vpop.f32.mrb[0].mxu0
      %v3060 = vadd.f32 %v2867, %v3059
      %3061 = vmatprep.mubr.bf16.mxu0 %v2319
      %3062 = vmatmul.mubr.bf16.gmra.mrb[0].mxu0 %v2318
      %v3063 = vpop.f32.mrb[0].mxu0
      %v3064 = vadd.f32 %v2871, %v3063
      %v3065 = vpop.f32.mrb[0].mxu0
      %v3066 = vadd.f32 %v2873, %v3065
      %v3067 = vpop.f32.mrb[0].mxu0
      %v3068 = vadd.f32 %v2875, %v3067
      %v3069 = vpop.f32.mrb[0].mxu0
      %v3070 = vadd.f32 %v2877, %v3069
      %3071 = vmatprep.mubr.bf16.mxu0 %v2323
      %3072 = vmatmul.mubr.bf16.gmra.mrb[0].mxu0 %v2322
      %v3073 = vpop.f32.mrb[0].mxu0
      %v3074 = vadd.f32 %v2881, %v3073
      %v3075 = vpop.f32.mrb[0].mxu0
      %v3076 = vadd.f32 %v2883, %v3075
      %v3077 = vpop.f32.mrb[0].mxu0
      %v3078 = vadd.f32 %v2885, %v3077
      %v3079 = vpop.f32.mrb[0].mxu0
      %v3080 = vadd.f32 %v2887, %v3079
      %3081 = vmatprep.mubr.bf16.mxu0 %v2327
      %3082 = vmatmul.mubr.bf16.gmra.mrb[0].mxu0 %v2326
      %v3083 = vpop.f32.mrb[0].mxu0
      %v3084 = vadd.f32 %v2891, %v3083
      %v3085 = vpop.f32.mrb[0].mxu0
      %v3086 = vadd.f32 %v2893, %v3085
      %v3087 = vpop.f32.mrb[0].mxu0
      %v3088 = vadd.f32 %v2895, %v3087
      %v3089 = vpop.f32.mrb[0].mxu0
      %v3090 = vadd.f32 %v2897, %v3089
      %3091 = vmatprep.mubr.bf16.mxu0 %v2331
      %3092 = vmatmul.mubr.bf16.gmra.mrb[0].mxu0 %v2330
      %v3093 = vpop.f32.mrb[0].mxu0
      %v3094 = vadd.f32 %v2901, %v3093
      %v3095 = vpop.f32.mrb[0].mxu0
      %v3096 = vadd.f32 %v2903, %v3095
      %v3097 = vpop.f32.mrb[0].mxu0
      %v3098 = vadd.f32 %v2905, %v3097
      %v3099 = vpop.f32.mrb[0].mxu0
      %v3100 = vadd.f32 %v2907, %v3099
      %3101 = vmatprep.mubr.bf16.mxu0 %v2335
      %3102 = vmatmul.mubr.bf16.gmra.mrb[0].mxu0 %v2334
      %v3103 = vpop.f32.mrb[0].mxu0
      %v3104 = vadd.f32 %v2911, %v3103
      %v3105 = vpop.f32.mrb[0].mxu0
      %v3106 = vadd.f32 %v2913, %v3105
      %v3107 = vpop.f32.mrb[0].mxu0
      %v3108 = vadd.f32 %v2915, %v3107
      %v3109 = vpop.f32.mrb[0].mxu0
      %v3110 = vadd.f32 %v2917, %v3109
      %3111 = vmatprep.mubr.bf16.mxu0 %v2339
      %3112 = vmatmul.mubr.bf16.gmra.mrb[0].mxu0 %v2338
      %v3113 = vpop.f32.mrb[0].mxu0
      %v3114 = vadd.f32 %v2921, %v3113
      %v3115 = vpop.f32.mrb[0].mxu0
      %v3116 = vadd.f32 %v2923, %v3115
      %v3117 = vpop.f32.mrb[0].mxu0
      %v3118 = vadd.f32 %v2925, %v3117
      %v3119 = vpop.f32.mrb[0].mxu0
      %v3120 = vadd.f32 %v2927, %v3119
      %3121 = vdwg.mxu0
      %v3122 = vmax.f32 %v2964, 0.0
      %v3123 = vmax.f32 %v2966, 0.0
      %v3124 = vmax.f32 %v2968, 0.0
      %v3125 = vmax.f32 %v2970, 0.0
      %v3126 = vmax.f32 %v2974, 0.0
      %v3127 = vmax.f32 %v2976, 0.0
      %v3128 = vmax.f32 %v2978, 0.0
      %v3129 = vmax.f32 %v2980, 0.0
      %v3130 = vmax.f32 %v2984, 0.0
      %v3131 = vmax.f32 %v2986, 0.0
      %v3132 = vmax.f32 %v2988, 0.0
      %v3133 = vmax.f32 %v2990, 0.0
      %v3134 = vmax.f32 %v2994, 0.0
      %v3135 = vmax.f32 %v2996, 0.0
      %v3136 = vmax.f32 %v2998, 0.0
      %v3137 = vmax.f32 %v3000, 0.0
      %v3138 = vmax.f32 %v3004, 0.0
      %v3139 = vmax.f32 %v3006, 0.0
      %v3140 = vmax.f32 %v3008, 0.0
      %v3141 = vmax.f32 %v3010, 0.0
      %v3142 = vmax.f32 %v3014, 0.0
      %v3143 = vmax.f32 %v3016, 0.0
      %v3144 = vmax.f32 %v3018, 0.0
      %v3145 = vmax.f32 %v3020, 0.0
      %v3146 = vmax.f32 %v3024, 0.0
      %v3147 = vmax.f32 %v3026, 0.0
      %v3148 = vmax.f32 %v3028, 0.0
      %v3149 = vmax.f32 %v3030, 0.0
      %v3150 = vmax.f32 %v3034, 0.0
      %v3151 = vmax.f32 %v3036, 0.0
      %v3152 = vmax.f32 %v3038, 0.0
      %v3153 = vmax.f32 %v3040, 0.0
      %v3154 = vmax.f32 %v3044, 0.0
      %v3155 = vmax.f32 %v3046, 0.0
      %v3156 = vmax.f32 %v3048, 0.0
      %v3157 = vmax.f32 %v3050, 0.0
      %v3158 = vmax.f32 %v3054, 0.0
      %v3159 = vmax.f32 %v3056, 0.0
      %v3160 = vmax.f32 %v3058, 0.0
      %v3161 = vmax.f32 %v3060, 0.0
      %v3162 = vmax.f32 %v3064, 0.0
      %v3163 = vmax.f32 %v3066, 0.0
      %v3164 = vmax.f32 %v3068, 0.0
      %v3165 = vmax.f32 %v3070, 0.0
      %v3166 = vmax.f32 %v3074, 0.0
      %v3167 = vmax.f32 %v3076, 0.0
      %v3168 = vmax.f32 %v3078, 0.0
      %v3169 = vmax.f32 %v3080, 0.0
      %v3170 = vmax.f32 %v3084, 0.0
      %v3171 = vmax.f32 %v3086, 0.0
      %v3172 = vmax.f32 %v3088, 0.0
      %v3173 = vmax.f32 %v3090, 0.0
      %v3174 = vmax.f32 %v3094, 0.0
      %v3175 = vmax.f32 %v3096, 0.0
      %v3176 = vmax.f32 %v3098, 0.0
      %v3177 = vmax.f32 %v3100, 0.0
      %v3178 = vmax.f32 %v3104, 0.0
      %v3179 = vmax.f32 %v3106, 0.0
      %v3180 = vmax.f32 %v3108, 0.0
      %v3181 = vmax.f32 %v3110, 0.0
      %v3182 = vmax.f32 %v3114, 0.0
      %v3183 = vmax.f32 %v3116, 0.0
      %v3184 = vmax.f32 %v3118, 0.0
      %v3185 = vmax.f32 %v3120, 0.0
      %v3186 = vpack.c.bf16 %v3124, %v3122
      %v3187 = vpack.c.bf16 %v3125, %v3123
      %v3188 = vpack.c.bf16 %v3128, %v3126
      %v3189 = vpack.c.bf16 %v3129, %v3127
      %v3190 = vpack.c.bf16 %v3132, %v3130
      %v3191 = vpack.c.bf16 %v3133, %v3131
      %v3192 = vpack.c.bf16 %v3136, %v3134
      %v3193 = vpack.c.bf16 %v3137, %v3135
      %v3194 = vpack.c.bf16 %v3140, %v3138
      %v3195 = vpack.c.bf16 %v3141, %v3139
      %v3196 = vpack.c.bf16 %v3144, %v3142
      %v3197 = vpack.c.bf16 %v3145, %v3143
      %v3198 = vpack.c.bf16 %v3148, %v3146
      %v3199 = vpack.c.bf16 %v3149, %v3147
      %v3200 = vpack.c.bf16 %v3152, %v3150
      %v3201 = vpack.c.bf16 %v3153, %v3151
      %v3202 = vpack.c.bf16 %v3156, %v3154
      %v3203 = vpack.c.bf16 %v3157, %v3155
      %v3204 = vpack.c.bf16 %v3160, %v3158
      %v3205 = vpack.c.bf16 %v3161, %v3159
      %v3206 = vpack.c.bf16 %v3164, %v3162
      %v3207 = vpack.c.bf16 %v3165, %v3163
      %v3208 = vpack.c.bf16 %v3168, %v3166
      %v3209 = vpack.c.bf16 %v3169, %v3167
      %v3210 = vpack.c.bf16 %v3172, %v3170
      %v3211 = vpack.c.bf16 %v3173, %v3171
      %v3212 = vpack.c.bf16 %v3176, %v3174
      %v3213 = vpack.c.bf16 %v3177, %v3175
      %v3214 = vpack.c.bf16 %v3180, %v3178
      %v3215 = vpack.c.bf16 %v3181, %v3179
      %v3216 = vpack.c.bf16 %v3184, %v3182
      %v3217 = vpack.c.bf16 %v3185, %v3183
      %v3218 = vld [vmem:[%s5] sm:$0xf]
      %v3219 = vld [vmem:[%s5 + $0x4] sm:$0xf]
      %v3220 = vld [vmem:[%s5 + $0x8] sm:$0xf]
      %v3221 = vld [vmem:[%s5 + $0xc] sm:$0xf]
      %v3222 = vld [vmem:[%s5 + $0x10] sm:$0xf]
      %v3223 = vld [vmem:[%s5 + $0x14] sm:$0xf]
      %v3224 = vld [vmem:[%s5 + $0x18] sm:$0xf]
      %v3225 = vld [vmem:[%s5 + $0x1c] sm:$0xf]
      %v3226 = vld [vmem:[%s5 + $0x20] sm:$0xf]
      %v3227 = vld [vmem:[%s5 + $0x24] sm:$0xf]
      %v3228 = vld [vmem:[%s5 + $0x28] sm:$0xf]
      %v3229 = vld [vmem:[%s5 + $0x2c] sm:$0xf]
      %v3230 = vld [vmem:[%s5 + $0x30] sm:$0xf]
      %v3231 = vld [vmem:[%s5 + $0x34] sm:$0xf]
      %v3232 = vld [vmem:[%s5 + $0x38] sm:$0xf]
      %v3233 = vld [vmem:[%s5 + $0x3c] sm:$0xf]
      %v3234 = vld [vmem:[%s5 + $0x40] sm:$0xf]
      %v3235 = vld [vmem:[%s5 + $0x44] sm:$0xf]
      %v3236 = vld [vmem:[%s5 + $0x48] sm:$0xf]
      %v3237 = vld [vmem:[%s5 + $0x4c] sm:$0xf]
      %v3238 = vld [vmem:[%s5 + $0x50] sm:$0xf]
      %v3239 = vld [vmem:[%s5 + $0x54] sm:$0xf]
      %v3240 = vld [vmem:[%s5 + $0x58] sm:$0xf]
      %v3241 = vld [vmem:[%s5 + $0x5c] sm:$0xf]
      %v3242 = vld [vmem:[%s5 + $0x60] sm:$0xf]
      %v3243 = vld [vmem:[%s5 + $0x64] sm:$0xf]
      %v3244 = vld [vmem:[%s5 + $0x68] sm:$0xf]
      %v3245 = vld [vmem:[%s5 + $0x6c] sm:$0xf]
      %v3246 = vld [vmem:[%s5 + $0x70] sm:$0xf]
      %v3247 = vld [vmem:[%s5 + $0x74] sm:$0xf]
      %v3248 = vld [vmem:[%s5 + $0x78] sm:$0xf]
      %v3249 = vld [vmem:[%s5 + $0x7c] sm:$0xf]
      %v3250 = vld [vmem:[%s6] sm:$0x1]
      %v3252 = vlaneseq
      %v3253 = vshrl.u32 %v3252, 7
      %v3254 = vsub.s32 0, %v3253
      %v3255 = vrot.slane %v3250, %v3254
      %v3289 = vunpack.c.l.b16 %v3218
      %v3290 = vunpack.c.l.b16 %v3219
      %v3291 = vunpack.c.l.b16 %v3220
      %v3292 = vunpack.c.l.b16 %v3221
      %v3293 = vunpack.c.l.b16 %v3222
      %v3294 = vunpack.c.l.b16 %v3223
      %v3295 = vunpack.c.l.b16 %v3224
      %v3296 = vunpack.c.l.b16 %v3225
      %v3297 = vunpack.c.l.b16 %v3226
      %v3298 = vunpack.c.l.b16 %v3227
      %v3299 = vunpack.c.l.b16 %v3228
      %v3300 = vunpack.c.l.b16 %v3229
      %v3301 = vunpack.c.l.b16 %v3230
      %v3302 = vunpack.c.l.b16 %v3231
      %v3303 = vunpack.c.l.b16 %v3232
      %v3304 = vunpack.c.l.b16 %v3233
      %v3305 = vunpack.c.l.b16 %v3234
      %v3306 = vunpack.c.l.b16 %v3235
      %v3307 = vunpack.c.l.b16 %v3236
      %v3308 = vunpack.c.l.b16 %v3237
      %v3309 = vunpack.c.l.b16 %v3238
      %v3310 = vunpack.c.l.b16 %v3239
      %v3311 = vunpack.c.l.b16 %v3240
      %v3312 = vunpack.c.l.b16 %v3241
      %v3313 = vunpack.c.l.b16 %v3242
      %v3314 = vunpack.c.l.b16 %v3243
      %v3315 = vunpack.c.l.b16 %v3244
      %v3316 = vunpack.c.l.b16 %v3245
      %v3317 = vunpack.c.l.b16 %v3246
      %v3318 = vunpack.c.l.b16 %v3247
      %v3319 = vunpack.c.l.b16 %v3248
      %v3320 = vunpack.c.l.b16 %v3249
      %v3321 = vpack.c.b16 %v3290, %v3289
      %v3322 = vpack.c.b16 %v3292, %v3291
      %v3323 = vpack.c.b16 %v3294, %v3293
      %v3324 = vpack.c.b16 %v3296, %v3295
      %v3325 = vpack.c.b16 %v3298, %v3297
      %v3326 = vpack.c.b16 %v3300, %v3299
      %v3327 = vpack.c.b16 %v3302, %v3301
      %v3328 = vpack.c.b16 %v3304, %v3303
      %v3329 = vpack.c.b16 %v3306, %v3305
      %v3330 = vpack.c.b16 %v3308, %v3307
      %v3331 = vpack.c.b16 %v3310, %v3309
      %v3332 = vpack.c.b16 %v3312, %v3311
      %v3333 = vpack.c.b16 %v3314, %v3313
      %v3334 = vpack.c.b16 %v3316, %v3315
      %v3335 = vpack.c.b16 %v3318, %v3317
      %v3336 = vpack.c.b16 %v3320, %v3319
      %3353 = vmatprep.subr.bf16.mxu0 0
      %3354 = vmatpush1.bf16.msra.mxu0 %v3321
      %3355 = vmatprep.subr.bf16.mxu0 0
      %3356 = vmatpush1.bf16.msra.mxu0 %v3322
      %3357 = vmatprep.subr.bf16.mxu0 0
      %3358 = vmatpush1.bf16.msra.mxu0 %v3323
      %3359 = vmatprep.subr.bf16.mxu0 0
      %3360 = vmatpush1.bf16.msra.mxu0 %v3324
      %3361 = vmatprep.subr.bf16.mxu0 0
      %3362 = vmatpush1.bf16.msra.mxu0 %v3325
      %3363 = vmatprep.subr.bf16.mxu0 0
      %3364 = vmatpush1.bf16.msra.mxu0 %v3326
      %3365 = vmatprep.subr.bf16.mxu0 0
      %3366 = vmatpush1.bf16.msra.mxu0 %v3327
      %3367 = vmatprep.subr.bf16.mxu0 0
      %3368 = vmatpush1.bf16.msra.mxu0 %v3328
      %3369 = vmatprep.subr.bf16.mxu0 0
      %3370 = vmatpush1.bf16.msra.mxu0 %v3329
      %3371 = vmatprep.subr.bf16.mxu0 0
      %3372 = vmatpush1.bf16.msra.mxu0 %v3330
      %3373 = vmatprep.subr.bf16.mxu0 0
      %3374 = vmatpush1.bf16.msra.mxu0 %v3331
      %3375 = vmatprep.subr.bf16.mxu0 0
      %3376 = vmatpush1.bf16.msra.mxu0 %v3332
      %3377 = vmatprep.subr.bf16.mxu0 0
      %3378 = vmatpush1.bf16.msra.mxu0 %v3333
      %3379 = vmatprep.subr.bf16.mxu0 0
      %3380 = vmatpush1.bf16.msra.mxu0 %v3334
      %3381 = vmatprep.subr.bf16.mxu0 0
      %3382 = vmatpush1.bf16.msra.mxu0 %v3335
      %3383 = vmatprep.subr.bf16.mxu0 0
      %3384 = vmatpush1.bf16.msra.mxu0 %v3336
      %3385 = vmatprep.mubr.bf16.mxu0 %v3187
      %3386 = vmatmul.mubr.bf16.gmra.mrb[0].mxu0 %v3186
      %v3387 = vpop.f32.mrb[0].mxu0
      %v3388 = vadd.f32 %v3255, %v3387
      %v3389 = vpop.f32.mrb[0].mxu0
      %v3390 = vpop.f32.mrb[0].mxu0
      %v3391 = vadd.f32 %v3255, %v3390
      %v3392 = vpop.f32.mrb[0].mxu0
      %3393 = vmatprep.mubr.bf16.mxu0 %v3189
      %3394 = vmatmul.mubr.bf16.gmra.mrb[0].mxu0 %v3188
      %v3395 = vpop.f32.mrb[0].mxu0
      %v3396 = vadd.f32 %v3255, %v3395
      %v3397 = vpop.f32.mrb[0].mxu0
      %v3398 = vpop.f32.mrb[0].mxu0
      %v3399 = vadd.f32 %v3255, %v3398
      %v3400 = vpop.f32.mrb[0].mxu0
      %3401 = vmatprep.mubr.bf16.mxu0 %v3191
      %3402 = vmatmul.mubr.bf16.gmra.mrb[0].mxu0 %v3190
      %v3403 = vpop.f32.mrb[0].mxu0
      %v3404 = vadd.f32 %v3255, %v3403
      %v3405 = vpop.f32.mrb[0].mxu0
      %v3406 = vpop.f32.mrb[0].mxu0
      %v3407 = vadd.f32 %v3255, %v3406
      %v3408 = vpop.f32.mrb[0].mxu0
      %3409 = vmatprep.mubr.bf16.mxu0 %v3193
      %3410 = vmatmul.mubr.bf16.gmra.mrb[0].mxu0 %v3192
      %v3411 = vpop.f32.mrb[0].mxu0
      %v3412 = vadd.f32 %v3255, %v3411
      %v3413 = vpop.f32.mrb[0].mxu0
      %v3414 = vpop.f32.mrb[0].mxu0
      %v3415 = vadd.f32 %v3255, %v3414
      %v3416 = vpop.f32.mrb[0].mxu0
      %3417 = vmatprep.mubr.bf16.mxu0 %v3195
      %3418 = vmatmul.mubr.bf16.gmra.mrb[0].mxu0 %v3194
      %v3419 = vpop.f32.mrb[0].mxu0
      %v3420 = vadd.f32 %v3255, %v3419
      %v3421 = vpop.f32.mrb[0].mxu0
      %v3422 = vpop.f32.mrb[0].mxu0
      %v3423 = vadd.f32 %v3255, %v3422
      %v3424 = vpop.f32.mrb[0].mxu0
      %3425 = vmatprep.mubr.bf16.mxu0 %v3197
      %3426 = vmatmul.mubr.bf16.gmra.mrb[0].mxu0 %v3196
      %v3427 = vpop.f32.mrb[0].mxu0
      %v3428 = vadd.f32 %v3255, %v3427
      %v3429 = vpop.f32.mrb[0].mxu0
      %v3430 = vpop.f32.mrb[0].mxu0
      %v3431 = vadd.f32 %v3255, %v3430
      %v3432 = vpop.f32.mrb[0].mxu0
      %3433 = vmatprep.mubr.bf16.mxu0 %v3199
      %3434 = vmatmul.mubr.bf16.gmra.mrb[0].mxu0 %v3198
      %v3435 = vpop.f32.mrb[0].mxu0
      %v3436 = vadd.f32 %v3255, %v3435
      %v3437 = vpop.f32.mrb[0].mxu0
      %v3438 = vpop.f32.mrb[0].mxu0
      %v3439 = vadd.f32 %v3255, %v3438
      %v3440 = vpop.f32.mrb[0].mxu0
      %3441 = vmatprep.mubr.bf16.mxu0 %v3201
      %3442 = vmatmul.mubr.bf16.gmra.mrb[0].mxu0 %v3200
      %v3443 = vpop.f32.mrb[0].mxu0
      %v3444 = vadd.f32 %v3255, %v3443
      %v3445 = vpop.f32.mrb[0].mxu0
      %v3446 = vpop.f32.mrb[0].mxu0
      %v3447 = vadd.f32 %v3255, %v3446
      %v3448 = vpop.f32.mrb[0].mxu0
      %3449 = vmatprep.mubr.bf16.mxu0 %v3203
      %3450 = vmatmul.mubr.bf16.gmra.mrb[0].mxu0 %v3202
      %v3451 = vpop.f32.mrb[0].mxu0
      %v3452 = vadd.f32 %v3255, %v3451
      %v3453 = vpop.f32.mrb[0].mxu0
      %v3454 = vpop.f32.mrb[0].mxu0
      %v3455 = vadd.f32 %v3255, %v3454
      %v3456 = vpop.f32.mrb[0].mxu0
      %3457 = vmatprep.mubr.bf16.mxu0 %v3205
      %3458 = vmatmul.mubr.bf16.gmra.mrb[0].mxu0 %v3204
      %v3459 = vpop.f32.mrb[0].mxu0
      %v3460 = vadd.f32 %v3255, %v3459
      %v3461 = vpop.f32.mrb[0].mxu0
      %v3462 = vpop.f32.mrb[0].mxu0
      %v3463 = vadd.f32 %v3255, %v3462
      %v3464 = vpop.f32.mrb[0].mxu0
      %3465 = vmatprep.mubr.bf16.mxu0 %v3207
      %3466 = vmatmul.mubr.bf16.gmra.mrb[0].mxu0 %v3206
      %v3467 = vpop.f32.mrb[0].mxu0
      %v3468 = vadd.f32 %v3255, %v3467
      %v3469 = vpop.f32.mrb[0].mxu0
      %v3470 = vpop.f32.mrb[0].mxu0
      %v3471 = vadd.f32 %v3255, %v3470
      %v3472 = vpop.f32.mrb[0].mxu0
      %3473 = vmatprep.mubr.bf16.mxu0 %v3209
      %3474 = vmatmul.mubr.bf16.gmra.mrb[0].mxu0 %v3208
      %v3475 = vpop.f32.mrb[0].mxu0
      %v3476 = vadd.f32 %v3255, %v3475
      %v3477 = vpop.f32.mrb[0].mxu0
      %v3478 = vpop.f32.mrb[0].mxu0
      %v3479 = vadd.f32 %v3255, %v3478
      %v3480 = vpop.f32.mrb[0].mxu0
      %3481 = vmatprep.mubr.bf16.mxu0 %v3211
      %3482 = vmatmul.mubr.bf16.gmra.mrb[0].mxu0 %v3210
      %v3483 = vpop.f32.mrb[0].mxu0
      %v3484 = vadd.f32 %v3255, %v3483
      %v3485 = vpop.f32.mrb[0].mxu0
      %v3486 = vpop.f32.mrb[0].mxu0
      %v3487 = vadd.f32 %v3255, %v3486
      %v3488 = vpop.f32.mrb[0].mxu0
      %3489 = vmatprep.mubr.bf16.mxu0 %v3213
      %3490 = vmatmul.mubr.bf16.gmra.mrb[0].mxu0 %v3212
      %v3491 = vpop.f32.mrb[0].mxu0
      %v3492 = vadd.f32 %v3255, %v3491
      %v3493 = vpop.f32.mrb[0].mxu0
      %v3494 = vpop.f32.mrb[0].mxu0
      %v3495 = vadd.f32 %v3255, %v3494
      %v3496 = vpop.f32.mrb[0].mxu0
      %3497 = vmatprep.mubr.bf16.mxu0 %v3215
      %3498 = vmatmul.mubr.bf16.gmra.mrb[0].mxu0 %v3214
      %v3499 = vpop.f32.mrb[0].mxu0
      %v3500 = vadd.f32 %v3255, %v3499
      %v3501 = vpop.f32.mrb[0].mxu0
      %v3502 = vpop.f32.mrb[0].mxu0
      %v3503 = vadd.f32 %v3255, %v3502
      %v3504 = vpop.f32.mrb[0].mxu0
      %3505 = vmatprep.mubr.bf16.mxu0 %v3217
      %3506 = vmatmul.mubr.bf16.gmra.mrb[0].mxu0 %v3216
      %v3507 = vpop.f32.mrb[0].mxu0
      %v3508 = vadd.f32 %v3255, %v3507
      %v3509 = vpop.f32.mrb[0].mxu0
      %v3510 = vpop.f32.mrb[0].mxu0
      %v3511 = vadd.f32 %v3255, %v3510
      %v3512 = vpop.f32.mrb[0].mxu0
      %3513 = vdwg.mxu0
      %v3514 = vmax.f32 %v3388, 0.0
      %v3515 = vmax.f32 %v3391, 0.0
      %v3516 = vmax.f32 %v3396, 0.0
      %v3517 = vmax.f32 %v3399, 0.0
      %v3518 = vmax.f32 %v3404, 0.0
      %v3519 = vmax.f32 %v3407, 0.0
      %v3520 = vmax.f32 %v3412, 0.0
      %v3521 = vmax.f32 %v3415, 0.0
      %v3522 = vmax.f32 %v3420, 0.0
      %v3523 = vmax.f32 %v3423, 0.0
      %v3524 = vmax.f32 %v3428, 0.0
      %v3525 = vmax.f32 %v3431, 0.0
      %v3526 = vmax.f32 %v3436, 0.0
      %v3527 = vmax.f32 %v3439, 0.0
      %v3528 = vmax.f32 %v3444, 0.0
      %v3529 = vmax.f32 %v3447, 0.0
      %v3530 = vmax.f32 %v3452, 0.0
      %v3531 = vmax.f32 %v3455, 0.0
      %v3532 = vmax.f32 %v3460, 0.0
      %v3533 = vmax.f32 %v3463, 0.0
      %v3534 = vmax.f32 %v3468, 0.0
      %v3535 = vmax.f32 %v3471, 0.0
      %v3536 = vmax.f32 %v3476, 0.0
      %v3537 = vmax.f32 %v3479, 0.0
      %v3538 = vmax.f32 %v3484, 0.0
      %v3539 = vmax.f32 %v3487, 0.0
      %v3540 = vmax.f32 %v3492, 0.0
      %v3541 = vmax.f32 %v3495, 0.0
      %v3542 = vmax.f32 %v3500, 0.0
      %v3543 = vmax.f32 %v3503, 0.0
      %v3544 = vmax.f32 %v3508, 0.0
      %v3545 = vmax.f32 %v3511, 0.0
      %v3546 = vpack.c.bf16 %v3515, %v3514
      %v3547 = vpack.c.bf16 %v3517, %v3516
      %v3548 = vpack.c.bf16 %v3519, %v3518
      %v3549 = vpack.c.bf16 %v3521, %v3520
      %v3550 = vpack.c.bf16 %v3523, %v3522
      %v3551 = vpack.c.bf16 %v3525, %v3524
      %v3552 = vpack.c.bf16 %v3527, %v3526
      %v3553 = vpack.c.bf16 %v3529, %v3528
      %v3554 = vpack.c.bf16 %v3531, %v3530
      %v3555 = vpack.c.bf16 %v3533, %v3532
      %v3556 = vpack.c.bf16 %v3535, %v3534
      %v3557 = vpack.c.bf16 %v3537, %v3536
      %v3558 = vpack.c.bf16 %v3539, %v3538
      %v3559 = vpack.c.bf16 %v3541, %v3540
      %v3560 = vpack.c.bf16 %v3543, %v3542
      %v3561 = vpack.c.bf16 %v3545, %v3544
      %v3562 = vld [vmem:[%s7] sm:$0xf]
      %v3563 = vld [vmem:[%s7 + $0x4] sm:$0xf]
      %v3564 = vld [vmem:[%s7 + $0x8] sm:$0xf]
      %v3565 = vld [vmem:[%s7 + $0xc] sm:$0xf]
      %v3566 = vld [vmem:[%s7 + $0x10] sm:$0xf]
      %v3567 = vld [vmem:[%s7 + $0x14] sm:$0xf]
      %v3568 = vld [vmem:[%s7 + $0x18] sm:$0xf]
      %v3569 = vld [vmem:[%s7 + $0x1c] sm:$0xf]
      %v3570 = vld [vmem:[%s8] sm:$0xff]
      %v3571 = vld [vmem:[%s8 + $0x8] sm:$0xff]
      %v3572 = vld [vmem:[%s8 + $0x10] sm:$0xff]
      %v3573 = vld [vmem:[%s8 + $0x18] sm:$0xff]
      %v3574 = vld [vmem:[%s8 + $0x20] sm:$0xff]
      %v3575 = vld [vmem:[%s8 + $0x28] sm:$0xff]
      %v3576 = vld [vmem:[%s8 + $0x30] sm:$0xff]
      %v3577 = vld [vmem:[%s8 + $0x38] sm:$0xff]
      %3579 = vset.pattern.permute.xlu0 0
      %3580 = vperm.xlu0 %3579, %v3570
      %v3581 = vpop.permute.xlu0 %3580
      %3584 = vset.pattern.permute.xlu0 0
      %3585 = vperm.xlu0 %3584, %v3571
      %v3586 = vpop.permute.xlu0 %3585
      %3589 = vset.pattern.permute.xlu0 0
      %3590 = vperm.xlu0 %3589, %v3572
      %v3591 = vpop.permute.xlu0 %3590
      %3594 = vset.pattern.permute.xlu0 0
      %3595 = vperm.xlu0 %3594, %v3573
      %v3596 = vpop.permute.xlu0 %3595
      %3599 = vset.pattern.permute.xlu0 0
      %3600 = vperm.xlu0 %3599, %v3574
      %v3601 = vpop.permute.xlu0 %3600
      %3604 = vset.pattern.permute.xlu0 0
      %3605 = vperm.xlu0 %3604, %v3575
      %v3606 = vpop.permute.xlu0 %3605
      %3609 = vset.pattern.permute.xlu0 0
      %3610 = vperm.xlu0 %3609, %v3576
      %v3611 = vpop.permute.xlu0 %3610
      %3614 = vset.pattern.permute.xlu0 0
      %3615 = vperm.xlu0 %3614, %v3577
      %v3616 = vpop.permute.xlu0 %3615
      %v3626 = vunpack.c.l.b16 %v3562
      %v3627 = vunpack.c.l.b16 %v3563
      %v3628 = vunpack.c.l.b16 %v3564
      %v3629 = vunpack.c.l.b16 %v3565
      %v3630 = vunpack.c.l.b16 %v3566
      %v3631 = vunpack.c.l.b16 %v3567
      %v3632 = vunpack.c.l.b16 %v3568
      %v3633 = vunpack.c.l.b16 %v3569
      %v3634 = vpack.c.b16 %v3627, %v3626
      %v3635 = vpack.c.b16 %v3629, %v3628
      %v3636 = vpack.c.b16 %v3631, %v3630
      %v3637 = vpack.c.b16 %v3633, %v3632
      %3642 = vmatprep.subr.bf16.mxu0 0
      %3643 = vmatpush1.bf16.xpose.msra.mxu0 %v3546
      %3644 = vmatprep.subr.bf16.mxu0 0
      %3645 = vmatpush1.bf16.xpose.msra.mxu0 %v3547
      %3646 = vmatprep.subr.bf16.mxu0 0
      %3647 = vmatpush1.bf16.xpose.msra.mxu0 %v3548
      %3648 = vmatprep.subr.bf16.mxu0 0
      %3649 = vmatpush1.bf16.xpose.msra.mxu0 %v3549
      %3650 = vmatprep.subr.bf16.mxu0 0
      %3651 = vmatpush1.bf16.xpose.msra.mxu0 %v3550
      %3652 = vmatprep.subr.bf16.mxu0 0
      %3653 = vmatpush1.bf16.xpose.msra.mxu0 %v3551
      %3654 = vmatprep.subr.bf16.mxu0 0
      %3655 = vmatpush1.bf16.xpose.msra.mxu0 %v3552
      %3656 = vmatprep.subr.bf16.mxu0 0
      %3657 = vmatpush1.bf16.xpose.msra.mxu0 %v3553
      %3658 = vmatprep.subr.bf16.mxu0 0
      %3659 = vmatpush1.bf16.xpose.msra.mxu0 %v3554
      %3660 = vmatprep.subr.bf16.mxu0 0
      %3661 = vmatpush1.bf16.xpose.msra.mxu0 %v3555
      %3662 = vmatprep.subr.bf16.mxu0 0
      %3663 = vmatpush1.bf16.xpose.msra.mxu0 %v3556
      %3664 = vmatprep.subr.bf16.mxu0 0
      %3665 = vmatpush1.bf16.xpose.msra.mxu0 %v3557
      %3666 = vmatprep.subr.bf16.mxu0 0
      %3667 = vmatpush1.bf16.xpose.msra.mxu0 %v3558
      %3668 = vmatprep.subr.bf16.mxu0 0
      %3669 = vmatpush1.bf16.xpose.msra.mxu0 %v3559
      %3670 = vmatprep.subr.bf16.mxu0 0
      %3671 = vmatpush1.bf16.xpose.msra.mxu0 %v3560
      %3672 = vmatprep.subr.bf16.mxu0 0
      %3673 = vmatpush1.bf16.xpose.msra.mxu0 %v3561
      %3674 = vmatprep.mubr.bf16.mxu0 0
      %3675 = vmatmul.mubr.bf16.gmra.mrb[0].mxu0 %v3634
      %v3676 = vpop.f32.mrb[0].mxu0
      %v3677 = vadd.f32 %v3581, %v3676
      %v3678 = vpop.f32.mrb[0].mxu0
      %v3679 = vadd.f32 %v3581, %v3678
      %v3680 = vpop.f32.mrb[0].mxu0
      %v3681 = vadd.f32 %v3586, %v3680
      %v3682 = vpop.f32.mrb[0].mxu0
      %v3683 = vadd.f32 %v3586, %v3682
      %3684 = vmatprep.mubr.bf16.mxu0 0
      %3685 = vmatmul.mubr.bf16.gmra.mrb[0].mxu0 %v3635
      %v3686 = vpop.f32.mrb[0].mxu0
      %v3687 = vadd.f32 %v3591, %v3686
      %v3688 = vpop.f32.mrb[0].mxu0
      %v3689 = vadd.f32 %v3591, %v3688
      %v3690 = vpop.f32.mrb[0].mxu0
      %v3691 = vadd.f32 %v3596, %v3690
      %v3692 = vpop.f32.mrb[0].mxu0
      %v3693 = vadd.f32 %v3596, %v3692
      %3694 = vmatprep.mubr.bf16.mxu0 0
      %3695 = vmatmul.mubr.bf16.gmra.mrb[0].mxu0 %v3636
      %v3696 = vpop.f32.mrb[0].mxu0
      %v3697 = vadd.f32 %v3601, %v3696
      %v3698 = vpop.f32.mrb[0].mxu0
      %v3699 = vadd.f32 %v3601, %v3698
      %v3700 = vpop.f32.mrb[0].mxu0
      %v3701 = vadd.f32 %v3606, %v3700
      %v3702 = vpop.f32.mrb[0].mxu0
      %v3703 = vadd.f32 %v3606, %v3702
      %3704 = vmatprep.mubr.bf16.mxu0 0
      %3705 = vmatmul.mubr.bf16.gmra.mrb[0].mxu0 %v3637
      %v3706 = vpop.f32.mrb[0].mxu0
      %v3707 = vadd.f32 %v3611, %v3706
      %v3708 = vpop.f32.mrb[0].mxu0
      %v3709 = vadd.f32 %v3611, %v3708
      %v3710 = vpop.f32.mrb[0].mxu0
      %v3711 = vadd.f32 %v3616, %v3710
      %v3712 = vpop.f32.mrb[0].mxu0
      %v3713 = vadd.f32 %v3616, %v3712
      %3714 = vdwg.mxu0
      %v3715 = vmax.f32 %v3677, 0.0
      %v3716 = vmax.f32 %v3679, 0.0
      %v3717 = vmax.f32 %v3681, 0.0
      %v3718 = vmax.f32 %v3683, 0.0
      %v3719 = vmax.f32 %v3687, 0.0
      %v3720 = vmax.f32 %v3689, 0.0
      %v3721 = vmax.f32 %v3691, 0.0
      %v3722 = vmax.f32 %v3693, 0.0
      %v3723 = vmax.f32 %v3697, 0.0
      %v3724 = vmax.f32 %v3699, 0.0
      %v3725 = vmax.f32 %v3701, 0.0
      %v3726 = vmax.f32 %v3703, 0.0
      %v3727 = vmax.f32 %v3707, 0.0
      %v3728 = vmax.f32 %v3709, 0.0
      %v3729 = vmax.f32 %v3711, 0.0
      %v3730 = vmax.f32 %v3713, 0.0
      %v3731 = vld [vmem:[%s9] sm:$0xff]
      %v3732 = vld [vmem:[%s9 + $0x8] sm:$0xff]
      %v3733 = vld [vmem:[%s9 + $0x10] sm:$0xff]
      %v3734 = vld [vmem:[%s9 + $0x18] sm:$0xff]
      %v3735 = vld [vmem:[%s9 + $0x20] sm:$0xff]
      %v3736 = vld [vmem:[%s9 + $0x28] sm:$0xff]
      %v3737 = vld [vmem:[%s9 + $0x30] sm:$0xff]
      %v3738 = vld [vmem:[%s9 + $0x38] sm:$0xff]
      %3740 = vset.pattern.permute.xlu0 0
      %3741 = vperm.xlu0 %3740, %v3731
      %v3742 = vpop.permute.xlu0 %3741
      %3745 = vset.pattern.permute.xlu0 0
      %3746 = vperm.xlu0 %3745, %v3732
      %v3747 = vpop.permute.xlu0 %3746
      %3750 = vset.pattern.permute.xlu0 0
      %3751 = vperm.xlu0 %3750, %v3733
      %v3752 = vpop.permute.xlu0 %3751
      %3755 = vset.pattern.permute.xlu0 0
      %3756 = vperm.xlu0 %3755, %v3734
      %v3757 = vpop.permute.xlu0 %3756
      %3760 = vset.pattern.permute.xlu0 0
      %3761 = vperm.xlu0 %3760, %v3735
      %v3762 = vpop.permute.xlu0 %3761
      %3765 = vset.pattern.permute.xlu0 0
      %3766 = vperm.xlu0 %3765, %v3736
      %v3767 = vpop.permute.xlu0 %3766
      %3770 = vset.pattern.permute.xlu0 0
      %3771 = vperm.xlu0 %3770, %v3737
      %v3772 = vpop.permute.xlu0 %3771
      %3775 = vset.pattern.permute.xlu0 0
      %3776 = vperm.xlu0 %3775, %v3738
      %v3777 = vpop.permute.xlu0 %3776
      %v3779 = vmul.f32 %v3715, %v3742
      %v3780 = vmul.f32 %v3716, %v3742
      %v3781 = vmul.f32 %v3717, %v3747
      %v3782 = vmul.f32 %v3718, %v3747
      %v3783 = vmul.f32 %v3719, %v3752
      %v3784 = vmul.f32 %v3720, %v3752
      %v3785 = vmul.f32 %v3721, %v3757
      %v3786 = vmul.f32 %v3722, %v3757
      %v3787 = vmul.f32 %v3723, %v3762
      %v3788 = vmul.f32 %v3724, %v3762
      %v3789 = vmul.f32 %v3725, %v3767
      %v3790 = vmul.f32 %v3726, %v3767
      %v3791 = vmul.f32 %v3727, %v3772
      %v3792 = vmul.f32 %v3728, %v3772
      %v3793 = vmul.f32 %v3729, %v3777
      %v3794 = vmul.f32 %v3730, %v3777
      %v3795 = vadd.f32 %v3779, %v3781
      %v3796 = vadd.f32 %v3795, %v3783
      %v3797 = vadd.f32 %v3796, %v3785
      %v3798 = vadd.f32 %v3797, %v3787
      %v3799 = vadd.f32 %v3798, %v3789
      %v3800 = vadd.f32 %v3799, %v3791
      %v3801 = vadd.f32 %v3800, %v3793
      %v3802 = vrot.slane %v3801, 4
      %v3803 = vadd.f32 %v3801, %v3802
      %v3804 = vrot.slane %v3803, 2
      %v3805 = vadd.f32 %v3803, %v3804
      %v3806 = vrot.slane %v3805, 1
      %v3807 = vadd.f32 %v3805, %v3806
      %v3808 = vadd.f32 %v3780, %v3782
      %v3809 = vadd.f32 %v3808, %v3784
      %v3810 = vadd.f32 %v3809, %v3786
      %v3811 = vadd.f32 %v3810, %v3788
      %v3812 = vadd.f32 %v3811, %v3790
      %v3813 = vadd.f32 %v3812, %v3792
      %v3814 = vadd.f32 %v3813, %v3794
      %v3815 = vrot.slane %v3814, 4
      %v3816 = vadd.f32 %v3814, %v3815
      %v3817 = vrot.slane %v3816, 2
      %v3818 = vadd.f32 %v3816, %v3817
      %v3819 = vrot.slane %v3818, 1
      %v3820 = vadd.f32 %v3818, %v3819
      %v3821 = vld [vmem:[#allocation2] sm:$0x1]
      %3823 = vset.pattern.permute.xlu0 0
      %3824 = vperm.xlu0 %3823, %v3821
      %v3825 = vpop.permute.xlu0 %3824
      %v3827 = vlaneseq
      %v3828 = vshrl.u32 %v3827, 7
      %v3829 = vsub.s32 0, %v3828
      %v3830 = vrot.slane %v3825, %v3829
      %v3831 = vadd.f32 %v3807, %v3830
      %v3832 = vadd.f32 %v3820, %v3830
      %v3835 = vcombine.low %v3831, %v3832
      %v3837 = vunpack.c.l.s4 1966171168
      %v3838 = vunpack.c.0.s8 %v3837
      %v3839 = vlaneseq
      %v3840 = vshrl.u32 %v3839, 7
      %v3841 = vsub.s32 %v3838, %v3840
      %v3842 = vrot.slane %v3835, %v3841
      %v3844 = vunpack.c.l.s4 1966171168
      %v3845 = vunpack.c.0.s8 %v3844
      %v3846 = vlaneseq
      %v3847 = vshrl.u32 %v3846, 7
      %v3848 = vsub.s32 %v3845, %v3847
      %v3849 = vrot.slane %v3842, %v3848
      %v3851 = vlaneseq
      %vm3852 = vcmp.ge.s32.totalorder %v3851, 0
      %vm3853 = vcmp.lt.s32.totalorder %v3851, 256
      %vm3854 = vmand %vm3852, %vm3853
      %3855 = vst.msk [vmem:[%s391] sm:$0x3] %vm3854, %v3849
      %s3856 = smul.u32 2, %s24
      %p3857 = scmp.lt.s32.totalorder %s3856, 3
      %s3858 = scalar_select %p3857, %s3856, 3
      %s3859 = scalar_lea.vmem %s11, %s3858
      // Predicated region
      $region65: #{paper_scoring_forward.1} parent=63 // pred_check
        %p3860 = pneg %p278
      $region66: #{paper_scoring_forward.1} parent=63 // pred_check_branch
        %3862 = sbr.rel (%p3860) target = $region68
      $region67: #{paper_scoring_forward.1} parent=63 // pred_region
        %s3863 = smul.u32 2, %s24
      $region68: #{paper_scoring_forward.1} parent=63 // pred_fallthru
        _
    $region64: #{paper_scoring_forward.1} parent=5 // pred_fallthru
      _
    %p3864 = scmp.le.s32.totalorder 2, %s19
    // Predicated region
    $region69: #{paper_scoring_forward.1} parent=5 // pred_check
      %p3865 = pneg %p3864
    $region70: #{paper_scoring_forward.1} parent=5 // pred_check_branch
      %3867 = sbr.rel (%p3865) target = $region72
    $region71: #{paper_scoring_forward.1} parent=5 // pred_region
      %s3868 = ssub.s32 %s19, 2
      // Predicated region
      $region73: #{paper_scoring_forward.1} parent=71 // pred_check
        %p3869 = pneg %p284
      $region74: #{paper_scoring_forward.1} parent=71 // pred_check_branch
        %3871 = sbr.rel (%p3869) target = $region76
      $region75: #{paper_scoring_forward.1} parent=71 // pred_region
        %s3872 = smul.u32 2, %s25
        %p3873 = scmp.lt.s32.totalorder %s3872, 3
        %s3874 = scalar_select %p3873, %s3872, 3
        %s3875 = scalar_lea.vmem %s11, %s3874
      $region76: #{paper_scoring_forward.1} parent=71 // pred_fallthru
        _
    $region72: #{paper_scoring_forward.1} parent=5 // pred_fallthru
      _
  $region6: #{paper_scoring_forward.1} parent=0 // loop_footer
    %s23 = sadd.s32 1, %s19
  $region7: #{paper_scoring_forward.1} parent=0 // loop_footer_branch
    %18 = sbr.rel target = $region3
  $region8: #{paper_scoring_forward.1} parent=0 // loop_exit
    _

</llo_original>
